<compile_context>
chip_gen: v7x
topology: tpu7x:2x2x1
jax: 0.10.0
libtpu: 0.0.40
codegen_flags: <defaults>
</compile_context>

<pallas_src>
import jax
import jax.numpy as jnp
from jax.experimental import pallas as pl
from jax.experimental.pallas import tpu as pltpu

EPS = 1e-5  # nn.BatchNorm2d default eps


def _conv3x3_with_stats(src, w_ref, y_ref, s_ref, pad_ref, patch_ref):
    """3x3 'same' conv of one image + fused per-channel sum / sum-of-squares.

    src:       (H, W, Cin) f32 value (already BN'd / ReLU'd if needed)
    w_ref:     (9*Cin, Cout) bf16 im2col-reshaped weights
    y_ref:     (1, H, W, Cout) f32 output block (raw conv result)
    s_ref:     (1, 2, Cout) f32 output block (row 0: sum, row 1: sum of squares)
    pad_ref:   (H+2, W+2, Cin) f32 VMEM scratch (zero halo)
    patch_ref: (H, W, 9*Cin) bf16 VMEM scratch (im2col buffer)
    """
    H, W, Cin = src.shape
    Cout = y_ref.shape[3]
    Hp, Wp = H + 2, W + 2

    # Zero only the 1-pixel halo border (not the whole buffer).  The interior is
    # fully overwritten every grid step, so this is also megacore-safe.
    pad_ref[0:1, :, :] = jnp.zeros((1, Wp, Cin), jnp.float32)
    pad_ref[Hp - 1:Hp, :, :] = jnp.zeros((1, Wp, Cin), jnp.float32)
    pad_ref[:, 0:1, :] = jnp.zeros((Hp, 1, Cin), jnp.float32)
    pad_ref[:, Wp - 1:Wp, :] = jnp.zeros((Hp, 1, Cin), jnp.float32)
    pad_ref[1:H + 1, 1:W + 1, :] = src

    # Build the im2col buffer once per image (bf16 MXU operands).
    for dy in range(3):
        for dx in range(3):
            k = dy * 3 + dx
            tap = pad_ref[dy:dy + H, dx:dx + W, :]
            patch_ref[:, :, k * Cin:(k + 1) * Cin] = tap.astype(jnp.bfloat16)

    # One (H*W, 9*Cin) x (9*Cin, Cout) MXU matmul, f32 accumulation
    # (instead of 9 tiny K=Cin dots, and no Precision.HIGHEST multi-pass).
    patches = patch_ref[...].reshape(H * W, 9 * Cin)
    y = jnp.dot(patches, w_ref[...], preferred_element_type=jnp.float32)

    y_ref[0] = y.reshape(H, W, Cout)
    # BN statistics fused into the conv epilogue (no second pass over y).
    s_ref[0] = jnp.concatenate(
        [jnp.sum(y, axis=0, keepdims=True),
         jnp.sum(y * y, axis=0, keepdims=True)], axis=0)


def _conv1_kernel(x_ref, w_ref, y_ref, s_ref, pad_ref, patch_ref):
    _conv3x3_with_stats(x_ref[0], w_ref, y_ref, s_ref, pad_ref, patch_ref)


def _bn_relu_conv2_kernel(y1_ref, sc_ref, sh_ref, w_ref, y_ref, s_ref,
                          pad_ref, patch_ref):
    # bn1 (per-channel scale/shift) + relu fused into conv2's prologue.
    a = jnp.maximum(y1_ref[0] * sc_ref[...] + sh_ref[...], 0.0)
    _conv3x3_with_stats(a, w_ref, y_ref, s_ref, pad_ref, patch_ref)


def _bn_add_relu_kernel(y2_ref, x_ref, sc_ref, sh_ref, out_ref):
    # bn2 + residual add + relu on a lane-dense (1, H, W*C) view.
    out_ref[...] = jnp.maximum(
        y2_ref[...] * sc_ref[...] + sh_ref[...] + x_ref[...], 0.0)


def basic_block(x_nchw, params):
    """Pallas BasicBlock forward. x_nchw: (N, C, H, W) f32 -> (N, C, H, W) f32."""
    w1, g1, b1, w2, g2, b2 = params
    N, C, H, W = x_nchw.shape
    Cout = w1.shape[-1]
    assert Cout == C, "identity path requires inplanes == planes (stride=1)"
    count = N * H * W

    # Single NCHW -> NHWC transpose (channels on the lane dim inside kernels).
    x = jnp.transpose(x_nchw, (0, 2, 3, 1)).astype(jnp.float32)

    # HWIO conv weights -> im2col layout, bf16 MXU operands (f32 accumulation).
    w1r = w1.astype(jnp.bfloat16).reshape(9 * C, Cout)
    w2r = w2.astype(jnp.bfloat16).reshape(9 * Cout, Cout)

    # Independent work per image -> "parallel" batch axis (v7x megacore).
    parallel = pltpu.CompilerParams(dimension_semantics=("parallel",))

    # ---- pass 1: conv1 + per-image BN1 statistics ---------------------------
    y1, s1 = pl.pallas_call(
        _conv1_kernel,
        out_shape=(jax.ShapeDtypeStruct((N, H, W, Cout), jnp.float32),
                   jax.ShapeDtypeStruct((N, 2, Cout), jnp.float32)),
        grid=(N,),
        in_specs=[
            pl.BlockSpec((1, H, W, C), lambda n: (n, 0, 0, 0)),
            pl.BlockSpec((9 * C, Cout), lambda n: (0, 0)),
        ],
        out_specs=(
            pl.BlockSpec((1, H, W, Cout), lambda n: (n, 0, 0, 0)),
            pl.BlockSpec((1, 2, Cout), lambda n: (n, 0, 0)),
        ),
        scratch_shapes=[
            pltpu.VMEM((H + 2, W + 2, C), jnp.float32),     # halo buffer
            pltpu.VMEM((H, W, 9 * C), jnp.bfloat16),        # im2col buffer
        ],
        compiler_params=parallel,
    )(x, w1r)

    # Exact training-mode batch statistics: tiny cross-image reduction, then
    # fold BN1 into per-channel scale/shift consumed by pass 2.
    mean1 = jnp.sum(s1[:, 0, :], axis=0) / count
    var1 = jnp.sum(s1[:, 1, :], axis=0) / count - mean1 * mean1
    scale1 = g1 * jax.lax.rsqrt(var1 + EPS)
    shift1 = b1 - mean1 * scale1

    # ---- pass 2: bn1 + relu + conv2 + per-image BN2 statistics --------------
    y2, s2 = pl.pallas_call(
        _bn_relu_conv2_kernel,
        out_shape=(jax.ShapeDtypeStruct((N, H, W, Cout), jnp.float32),
                   jax.ShapeDtypeStruct((N, 2, Cout), jnp.float32)),
        grid=(N,),
        in_specs=[
            pl.BlockSpec((1, H, W, Cout), lambda n: (n, 0, 0, 0)),
            pl.BlockSpec((1, Cout), lambda n: (0, 0)),
            pl.BlockSpec((1, Cout), lambda n: (0, 0)),
            pl.BlockSpec((9 * Cout, Cout), lambda n: (0, 0)),
        ],
        out_specs=(
            pl.BlockSpec((1, H, W, Cout), lambda n: (n, 0, 0, 0)),
            pl.BlockSpec((1, 2, Cout), lambda n: (n, 0, 0)),
        ),
        scratch_shapes=[
            pltpu.VMEM((H + 2, W + 2, Cout), jnp.float32),
            pltpu.VMEM((H, W, 9 * Cout), jnp.bfloat16),
        ],
        compiler_params=parallel,
    )(y1, scale1.reshape(1, Cout), shift1.reshape(1, Cout), w2r)

    mean2 = jnp.sum(s2[:, 0, :], axis=0) / count
    var2 = jnp.sum(s2[:, 1, :], axis=0) / count - mean2 * mean2
    scale2 = g2 * jax.lax.rsqrt(var2 + EPS)
    shift2 = b2 - mean2 * scale2

    # ---- pass 3: bn2 + residual add + relu ----------------------------------
    # Free (contiguous) reshape so the last dim is W*C: lane-dense loads/stores
    # (128 lanes for the 16x8 case) instead of C=8-wide masked partial stores.
    y2_flat = y2.reshape(N, H, W * Cout)
    x_flat = x.reshape(N, H, W * C)
    sc2_t = jnp.tile(scale2.reshape(1, Cout), (1, W))       # (1, W*Cout)
    sh2_t = jnp.tile(shift2.reshape(1, Cout), (1, W))

    out_flat = pl.pallas_call(
        _bn_add_relu_kernel,
        out_shape=jax.ShapeDtypeStruct((N, H, W * Cout), jnp.float32),
        grid=(N,),
        in_specs=[
            pl.BlockSpec((1, H, W * Cout), lambda n: (n, 0, 0)),
            pl.BlockSpec((1, H, W * C), lambda n: (n, 0, 0)),
            pl.BlockSpec((1, W * Cout), lambda n: (0, 0)),
            pl.BlockSpec((1, W * Cout), lambda n: (0, 0)),
        ],
        out_specs=pl.BlockSpec((1, H, W * Cout), lambda n: (n, 0, 0)),
        compiler_params=parallel,
    )(y2_flat, x_flat, sc2_t, sh2_t)

    out = out_flat.reshape(N, H, W, Cout)
    return jnp.transpose(out, (0, 3, 1, 2))                  # back to NCHW


def basic_block_ref(x_nchw, params):
    """Pure-JAX reference with the same semantics (bf16 convs, f32 acc, batch BN)."""
    w1, g1, b1, w2, g2, b2 = params

    def conv(x, w):
        return jax.lax.conv_general_dilated(
            x.astype(jnp.bfloat16), w.astype(jnp.bfloat16),
            window_strides=(1, 1), padding="SAME",
            dimension_numbers=("NHWC", "HWIO", "NHWC"),
            preferred_element_type=jnp.float32)

    def bn(y, g, b):
        mean = jnp.mean(y, axis=(0, 1, 2), keepdims=True)
        var = jnp.mean(jnp.square(y - mean), axis=(0, 1, 2), keepdims=True)
        return (y - mean) * jax.lax.rsqrt(var + EPS) * g.reshape(1, 1, 1, -1) \
            + b.reshape(1, 1, 1, -1)

    x = jnp.transpose(x_nchw, (0, 2, 3, 1)).astype(jnp.float32)
    y = jnp.maximum(bn(conv(x, w1), g1, b1), 0.0)
    z = bn(conv(y, w2), g2, b2)
    return jnp.transpose(jnp.maximum(z + x, 0.0), (0, 3, 1, 2))


if __name__ == "__main__":
    key = jax.random.PRNGKey(0)
    k1, k2, k3, k4, k5, k6, k7 = jax.random.split(key, 7)

    # Small shapes consistent with the module: inplanes = planes = 8, stride = 1.
    N, C, H, W = 2, 8, 16, 16
    x = jax.random.normal(k1, (N, C, H, W), jnp.float32)

    fan_in = 3 * 3 * C
    w1 = jax.random.normal(k2, (3, 3, C, C), jnp.float32) * (2.0 / fan_in) ** 0.5
    w2 = jax.random.normal(k3, (3, 3, C, C), jnp.float32) * (2.0 / fan_in) ** 0.5
    g1 = 1.0 + 0.1 * jax.random.normal(k4, (C,), jnp.float32)
    b1 = 0.1 * jax.random.normal(k5, (C,), jnp.float32)
    g2 = 1.0 + 0.1 * jax.random.normal(k6, (C,), jnp.float32)
    b2 = 0.1 * jax.random.normal(k7, (C,), jnp.float32)
    params = (w1, g1, b1, w2, g2, b2)

    out = jax.jit(basic_block)(x, params)
    jax.block_until_ready(out)
    assert out.shape == (N, C, H, W)

    ref = basic_block_ref(x, params)
    max_err = float(jnp.max(jnp.abs(out - ref)))
    mean_err = float(jnp.mean(jnp.abs(out - ref)))
    # Both paths use bf16 MXU operands with f32 accumulation; residual bf16
    # rounding-boundary differences between independent conv lowerings bound
    # the expected max error well below 2e-2 (mean ~1e-5).
    if max_err > 2e-2 or mean_err > 1e-3:
        raise AssertionError(
            f"Pallas kernel mismatch vs reference: max={max_err} mean={mean_err}")
    print("KERNEL_OK")
</pallas_src>

<mosaic_0001>
module attributes {stable_mosaic.version = 11 : i64} {
  func.func @_conv1_kernel(%arg0: i32, %arg1: memref<1x16x16x8xf32, #tpu.memory_space<vmem>>, %arg2: memref<72x8xbf16, #tpu.memory_space<vmem>>, %arg3: memref<1x16x16x8xf32, #tpu.memory_space<vmem>>, %arg4: memref<1x2x8xf32, #tpu.memory_space<vmem>>, %arg5: memref<18x18x8xf32, #tpu.memory_space<vmem>>, %arg6: memref<16x16x72xbf16, #tpu.memory_space<vmem>>) attributes {dimension_semantics = [#tpu.dimension_semantics<parallel>], iteration_bounds = array<i64: 2>, scalar_prefetch = 0 : i64, scratch_operands = 2 : i64, tpu.core_type = #tpu.core_type<tc>, window_params = [{transform_indices = @transform_0, window_bounds = array<i64: 1, 16, 16, 8>}, {pipeline_mode = #tpu.pipeline_mode<synchronous>, transform_indices = @transform_1, window_bounds = array<i64: 72, 8>}, {transform_indices = @transform_2, window_bounds = array<i64: 1, 16, 16, 8>}, {transform_indices = @transform_3, window_bounds = array<i64: 1, 2, 8>}]} {
    %c0 = arith.constant 0 : index
    %c0_0 = arith.constant 0 : index
    %c0_1 = arith.constant 0 : index
    %c0_2 = arith.constant 0 : index
    %0 = vector.load %arg1[%c0, %c0_0, %c0_1, %c0_2] : memref<1x16x16x8xf32, #tpu.memory_space<vmem>>, vector<1x16x16x8xf32>
    %1 = vector.shape_cast %0 : vector<1x16x16x8xf32> to vector<16x16x8xf32>
    %cst = arith.constant 0.000000e+00 : f32
    %2 = vector.broadcast %cst : f32 to vector<1x18x8xf32>
    %c0_3 = arith.constant 0 : index
    %c0_4 = arith.constant 0 : index
    %c0_5 = arith.constant 0 : index
    %3 = vector.load %arg5[%c0_3, %c0_4, %c0_5] : memref<18x18x8xf32, #tpu.memory_space<vmem>>, vector<1x18x8xf32>
    tpu.vector_store %arg5[%c0_3, %c0_4, %c0_5], %2 {strides = array<i32>} : memref<18x18x8xf32, #tpu.memory_space<vmem>>, vector<1x18x8xf32>,
    %cst_6 = arith.constant 0.000000e+00 : f32
    %4 = vector.broadcast %cst_6 : f32 to vector<1x18x8xf32>
    %c17 = arith.constant 17 : index
    %c0_7 = arith.constant 0 : index
    %c0_8 = arith.constant 0 : index
    %5 = vector.load %arg5[%c17, %c0_7, %c0_8] : memref<18x18x8xf32, #tpu.memory_space<vmem>>, vector<1x18x8xf32>
    tpu.vector_store %arg5[%c17, %c0_7, %c0_8], %4 {strides = array<i32>} : memref<18x18x8xf32, #tpu.memory_space<vmem>>, vector<1x18x8xf32>,
    %cst_9 = arith.constant 0.000000e+00 : f32
    %6 = vector.broadcast %cst_9 : f32 to vector<18x1x8xf32>
    %c0_10 = arith.constant 0 : index
    %c0_11 = arith.constant 0 : index
    %c0_12 = arith.constant 0 : index
    %7 = vector.load %arg5[%c0_10, %c0_11, %c0_12] : memref<18x18x8xf32, #tpu.memory_space<vmem>>, vector<18x1x8xf32>
    tpu.vector_store %arg5[%c0_10, %c0_11, %c0_12], %6 {strides = array<i32>} : memref<18x18x8xf32, #tpu.memory_space<vmem>>, vector<18x1x8xf32>,
    %cst_13 = arith.constant 0.000000e+00 : f32
    %8 = vector.broadcast %cst_13 : f32 to vector<18x1x8xf32>
    %c0_14 = arith.constant 0 : index
    %c17_15 = arith.constant 17 : index
    %c0_16 = arith.constant 0 : index
    %9 = vector.load %arg5[%c0_14, %c17_15, %c0_16] : memref<18x18x8xf32, #tpu.memory_space<vmem>>, vector<18x1x8xf32>
    tpu.vector_store %arg5[%c0_14, %c17_15, %c0_16], %8 {strides = array<i32>} : memref<18x18x8xf32, #tpu.memory_space<vmem>>, vector<18x1x8xf32>,
    %c1 = arith.constant 1 : index
    %c1_17 = arith.constant 1 : index
    %c0_18 = arith.constant 0 : index
    %10 = vector.load %arg5[%c1, %c1_17, %c0_18] : memref<18x18x8xf32, #tpu.memory_space<vmem>>, vector<16x16x8xf32>
    tpu.vector_store %arg5[%c1, %c1_17, %c0_18], %1 {strides = array<i32>} : memref<18x18x8xf32, #tpu.memory_space<vmem>>, vector<16x16x8xf32>,
    %c0_19 = arith.constant 0 : index
    %c0_20 = arith.constant 0 : index
    %c0_21 = arith.constant 0 : index
    %11 = vector.load %arg5[%c0_19, %c0_20, %c0_21] : memref<18x18x8xf32, #tpu.memory_space<vmem>>, vector<16x16x8xf32>
    %12 = arith.truncf %11 : vector<16x16x8xf32> to vector<16x16x8xbf16>
    %c0_22 = arith.constant 0 : index
    %c0_23 = arith.constant 0 : index
    %c0_24 = arith.constant 0 : index
    %13 = vector.load %arg6[%c0_22, %c0_23, %c0_24] : memref<16x16x72xbf16, #tpu.memory_space<vmem>>, vector<16x16x8xbf16>
    tpu.vector_store %arg6[%c0_22, %c0_23, %c0_24], %12 {strides = array<i32>} : memref<16x16x72xbf16, #tpu.memory_space<vmem>>, vector<16x16x8xbf16>,
    %c0_25 = arith.constant 0 : index
    %c1_26 = arith.constant 1 : index
    %c0_27 = arith.constant 0 : index
    %14 = vector.load %arg5[%c0_25, %c1_26, %c0_27] : memref<18x18x8xf32, #tpu.memory_space<vmem>>, vector<16x16x8xf32>
    %15 = arith.truncf %14 : vector<16x16x8xf32> to vector<16x16x8xbf16>
    %c0_28 = arith.constant 0 : index
    %c0_29 = arith.constant 0 : index
    %c8 = arith.constant 8 : index
    %16 = vector.load %arg6[%c0_28, %c0_29, %c8] : memref<16x16x72xbf16, #tpu.memory_space<vmem>>, vector<16x16x8xbf16>
    tpu.vector_store %arg6[%c0_28, %c0_29, %c8], %15 {strides = array<i32>} : memref<16x16x72xbf16, #tpu.memory_space<vmem>>, vector<16x16x8xbf16>,
    %c0_30 = arith.constant 0 : index
    %c2 = arith.constant 2 : index
    %c0_31 = arith.constant 0 : index
    %17 = vector.load %arg5[%c0_30, %c2, %c0_31] : memref<18x18x8xf32, #tpu.memory_space<vmem>>, vector<16x16x8xf32>
    %18 = arith.truncf %17 : vector<16x16x8xf32> to vector<16x16x8xbf16>
    %c0_32 = arith.constant 0 : index
    %c0_33 = arith.constant 0 : index
    %c16 = arith.constant 16 : index
    %19 = vector.load %arg6[%c0_32, %c0_33, %c16] : memref<16x16x72xbf16, #tpu.memory_space<vmem>>, vector<16x16x8xbf16>
    tpu.vector_store %arg6[%c0_32, %c0_33, %c16], %18 {strides = array<i32>} : memref<16x16x72xbf16, #tpu.memory_space<vmem>>, vector<16x16x8xbf16>,
    %c1_34 = arith.constant 1 : index
    %c0_35 = arith.constant 0 : index
    %c0_36 = arith.constant 0 : index
    %20 = vector.load %arg5[%c1_34, %c0_35, %c0_36] : memref<18x18x8xf32, #tpu.memory_space<vmem>>, vector<16x16x8xf32>
    %21 = arith.truncf %20 : vector<16x16x8xf32> to vector<16x16x8xbf16>
    %c0_37 = arith.constant 0 : index
    %c0_38 = arith.constant 0 : index
    %c24 = arith.constant 24 : index
    %22 = vector.load %arg6[%c0_37, %c0_38, %c24] : memref<16x16x72xbf16, #tpu.memory_space<vmem>>, vector<16x16x8xbf16>
    tpu.vector_store %arg6[%c0_37, %c0_38, %c24], %21 {strides = array<i32>} : memref<16x16x72xbf16, #tpu.memory_space<vmem>>, vector<16x16x8xbf16>,
    %c1_39 = arith.constant 1 : index
    %c1_40 = arith.constant 1 : index
    %c0_41 = arith.constant 0 : index
    %23 = vector.load %arg5[%c1_39, %c1_40, %c0_41] : memref<18x18x8xf32, #tpu.memory_space<vmem>>, vector<16x16x8xf32>
    %24 = arith.truncf %23 : vector<16x16x8xf32> to vector<16x16x8xbf16>
    %c0_42 = arith.constant 0 : index
    %c0_43 = arith.constant 0 : index
    %c32 = arith.constant 32 : index
    %25 = vector.load %arg6[%c0_42, %c0_43, %c32] : memref<16x16x72xbf16, #tpu.memory_space<vmem>>, vector<16x16x8xbf16>
    tpu.vector_store %arg6[%c0_42, %c0_43, %c32], %24 {strides = array<i32>} : memref<16x16x72xbf16, #tpu.memory_space<vmem>>, vector<16x16x8xbf16>,
    %c1_44 = arith.constant 1 : index
    %c2_45 = arith.constant 2 : index
    %c0_46 = arith.constant 0 : index
    %26 = vector.load %arg5[%c1_44, %c2_45, %c0_46] : memref<18x18x8xf32, #tpu.memory_space<vmem>>, vector<16x16x8xf32>
    %27 = arith.truncf %26 : vector<16x16x8xf32> to vector<16x16x8xbf16>
    %c0_47 = arith.constant 0 : index
    %c0_48 = arith.constant 0 : index
    %c40 = arith.constant 40 : index
    %28 = vector.load %arg6[%c0_47, %c0_48, %c40] : memref<16x16x72xbf16, #tpu.memory_space<vmem>>, vector<16x16x8xbf16>
    tpu.vector_store %arg6[%c0_47, %c0_48, %c40], %27 {strides = array<i32>} : memref<16x16x72xbf16, #tpu.memory_space<vmem>>, vector<16x16x8xbf16>,
    %c2_49 = arith.constant 2 : index
    %c0_50 = arith.constant 0 : index
    %c0_51 = arith.constant 0 : index
    %29 = vector.load %arg5[%c2_49, %c0_50, %c0_51] : memref<18x18x8xf32, #tpu.memory_space<vmem>>, vector<16x16x8xf32>
    %30 = arith.truncf %29 : vector<16x16x8xf32> to vector<16x16x8xbf16>
    %c0_52 = arith.constant 0 : index
    %c0_53 = arith.constant 0 : index
    %c48 = arith.constant 48 : index
    %31 = vector.load %arg6[%c0_52, %c0_53, %c48] : memref<16x16x72xbf16, #tpu.memory_space<vmem>>, vector<16x16x8xbf16>
    tpu.vector_store %arg6[%c0_52, %c0_53, %c48], %30 {strides = array<i32>} : memref<16x16x72xbf16, #tpu.memory_space<vmem>>, vector<16x16x8xbf16>,
    %c2_54 = arith.constant 2 : index
    %c1_55 = arith.constant 1 : index
    %c0_56 = arith.constant 0 : index
    %32 = vector.load %arg5[%c2_54, %c1_55, %c0_56] : memref<18x18x8xf32, #tpu.memory_space<vmem>>, vector<16x16x8xf32>
    %33 = arith.truncf %32 : vector<16x16x8xf32> to vector<16x16x8xbf16>
    %c0_57 = arith.constant 0 : index
    %c0_58 = arith.constant 0 : index
    %c56 = arith.constant 56 : index
    %34 = vector.load %arg6[%c0_57, %c0_58, %c56] : memref<16x16x72xbf16, #tpu.memory_space<vmem>>, vector<16x16x8xbf16>
    tpu.vector_store %arg6[%c0_57, %c0_58, %c56], %33 {strides = array<i32>} : memref<16x16x72xbf16, #tpu.memory_space<vmem>>, vector<16x16x8xbf16>,
    %c2_59 = arith.constant 2 : index
    %c2_60 = arith.constant 2 : index
    %c0_61 = arith.constant 0 : index
    %35 = vector.load %arg5[%c2_59, %c2_60, %c0_61] : memref<18x18x8xf32, #tpu.memory_space<vmem>>, vector<16x16x8xf32>
    %36 = arith.truncf %35 : vector<16x16x8xf32> to vector<16x16x8xbf16>
    %c0_62 = arith.constant 0 : index
    %c0_63 = arith.constant 0 : index
    %c64 = arith.constant 64 : index
    %37 = vector.load %arg6[%c0_62, %c0_63, %c64] : memref<16x16x72xbf16, #tpu.memory_space<vmem>>, vector<16x16x8xbf16>
    tpu.vector_store %arg6[%c0_62, %c0_63, %c64], %36 {strides = array<i32>} : memref<16x16x72xbf16, #tpu.memory_space<vmem>>, vector<16x16x8xbf16>,
    %c0_64 = arith.constant 0 : index
    %c0_65 = arith.constant 0 : index
    %c0_66 = arith.constant 0 : index
    %38 = vector.load %arg6[%c0_64, %c0_65, %c0_66] : memref<16x16x72xbf16, #tpu.memory_space<vmem>>, vector<16x16x72xbf16>
    %39 = vector.shape_cast %38 : vector<16x16x72xbf16> to vector<256x72xbf16>
    %c0_67 = arith.constant 0 : index
    %c0_68 = arith.constant 0 : index
    %40 = vector.load %arg2[%c0_67, %c0_68] : memref<72x8xbf16, #tpu.memory_space<vmem>>, vector<72x8xbf16>
    %cst_69 = arith.constant dense<0.000000e+00> : vector<256x8xf32>
    %41 = tpu.matmul %39, %40, %cst_69 {dimension_numbers = #tpu.dot_dimension_numbers<[1], [0], [0], [1], [0, 0, 1, 1], [], []>} : vector<256x72xbf16>, vector<72x8xbf16>, vector<256x8xf32> -> vector<256x8xf32>
    %42 = vector.shape_cast %41 : vector<256x8xf32> to vector<16x16x8xf32>
    %c0_70 = arith.constant 0 : index
    %c0_71 = arith.constant 0 : index
    %c0_72 = arith.constant 0 : index
    %c0_73 = arith.constant 0 : index
    %43 = vector.load %arg3[%c0_70, %c0_71, %c0_72, %c0_73] : memref<1x16x16x8xf32, #tpu.memory_space<vmem>>, vector<1x16x16x8xf32>
    %44 = vector.shape_cast %43 : vector<1x16x16x8xf32> to vector<16x16x8xf32>
    %45 = vector.shape_cast %42 : vector<16x16x8xf32> to vector<1x16x16x8xf32>
    tpu.vector_store %arg3[%c0_70, %c0_71, %c0_72, %c0_73], %45 {strides = array<i32>} : memref<1x16x16x8xf32, #tpu.memory_space<vmem>>, vector<1x16x16x8xf32>,
    %cst_74 = arith.constant dense<0.000000e+00> : vector<8xf32>
    %46 = vector.multi_reduction <add>, %41, %cst_74 [0] : vector<256x8xf32> to vector<8xf32>
    %47 = vector.shape_cast %46 : vector<8xf32> to vector<1x8xf32>
    %48 = arith.mulf %41, %41 : vector<256x8xf32>
    %cst_75 = arith.constant dense<0.000000e+00> : vector<8xf32>
    %49 = vector.multi_reduction <add>, %48, %cst_75 [0] : vector<256x8xf32> to vector<8xf32>
    %50 = vector.shape_cast %49 : vector<8xf32> to vector<1x8xf32>
    %51 = tpu.concatenate %47, %50 in 0 : vector<1x8xf32>, vector<1x8xf32> -> vector<2x8xf32>
    %c0_76 = arith.constant 0 : index
    %c0_77 = arith.constant 0 : index
    %c0_78 = arith.constant 0 : index
    %52 = vector.load %arg4[%c0_76, %c0_77, %c0_78] : memref<1x2x8xf32, #tpu.memory_space<vmem>>, vector<1x2x8xf32>
    %53 = vector.shape_cast %52 : vector<1x2x8xf32> to vector<2x8xf32>
    %54 = vector.shape_cast %51 : vector<2x8xf32> to vector<1x2x8xf32>
    tpu.vector_store %arg4[%c0_76, %c0_77, %c0_78], %54 {strides = array<i32>} : memref<1x2x8xf32, #tpu.memory_space<vmem>>, vector<1x2x8xf32>,
    return
  }
  func.func @transform_0(%arg0: i32) -> (i32, i32, i32, i32) {
    %c0_i32 = arith.constant 0 : i32
    %c0_i32_0 = arith.constant 0 : i32
    %c0_i32_1 = arith.constant 0 : i32
    %c0_i32_2 = arith.constant 0 : i32
    return %arg0, %c0_i32, %c0_i32_0, %c0_i32_1 : i32, i32, i32, i32
  }
  func.func @transform_1(%arg0: i32) -> (i32, i32) {
    %c0_i32 = arith.constant 0 : i32
    %c0_i32_0 = arith.constant 0 : i32
    %c0_i32_1 = arith.constant 0 : i32
    return %c0_i32, %c0_i32_0 : i32, i32
  }
  func.func @transform_2(%arg0: i32) -> (i32, i32, i32, i32) {
    %c0_i32 = arith.constant 0 : i32
    %c0_i32_0 = arith.constant 0 : i32
    %c0_i32_1 = arith.constant 0 : i32
    %c0_i32_2 = arith.constant 0 : i32
    return %arg0, %c0_i32, %c0_i32_0, %c0_i32_1 : i32, i32, i32, i32
  }
  func.func @transform_3(%arg0: i32) -> (i32, i32, i32) {
    %c0_i32 = arith.constant 0 : i32
    %c0_i32_0 = arith.constant 0 : i32
    %c0_i32_1 = arith.constant 0 : i32
    return %arg0, %c0_i32, %c0_i32_0 : i32, i32, i32
  }
}

module attributes {stable_mosaic.version = 11 : i64} {
  func.func @_bn_relu_conv2_kernel(%arg0: i32, %arg1: memref<1x16x16x8xf32, #tpu.memory_space<vmem>>, %arg2: memref<1x8xf32, #tpu.memory_space<vmem>>, %arg3: memref<1x8xf32, #tpu.memory_space<vmem>>, %arg4: memref<72x8xbf16, #tpu.memory_space<vmem>>, %arg5: memref<1x16x16x8xf32, #tpu.memory_space<vmem>>, %arg6: memref<1x2x8xf32, #tpu.memory_space<vmem>>, %arg7: memref<18x18x8xf32, #tpu.memory_space<vmem>>, %arg8: memref<16x16x72xbf16, #tpu.memory_space<vmem>>) attributes {dimension_semantics = [#tpu.dimension_semantics<parallel>], iteration_bounds = array<i64: 2>, scalar_prefetch = 0 : i64, scratch_operands = 2 : i64, tpu.core_type = #tpu.core_type<tc>, window_params = [{transform_indices = @transform_0, window_bounds = array<i64: 1, 16, 16, 8>}, {pipeline_mode = #tpu.pipeline_mode<synchronous>, transform_indices = @transform_1, window_bounds = array<i64: 1, 8>}, {pipeline_mode = #tpu.pipeline_mode<synchronous>, transform_indices = @transform_2, window_bounds = array<i64: 1, 8>}, {pipeline_mode = #tpu.pipeline_mode<synchronous>, transform_indices = @transform_3, window_bounds = array<i64: 72, 8>}, {transform_indices = @transform_4, window_bounds = array<i64: 1, 16, 16, 8>}, {transform_indices = @transform_5, window_bounds = array<i64: 1, 2, 8>}]} {
    %c0 = arith.constant 0 : index
    %c0_0 = arith.constant 0 : index
    %c0_1 = arith.constant 0 : index
    %c0_2 = arith.constant 0 : index
    %0 = vector.load %arg1[%c0, %c0_0, %c0_1, %c0_2] : memref<1x16x16x8xf32, #tpu.memory_space<vmem>>, vector<1x16x16x8xf32>
    %1 = vector.shape_cast %0 : vector<1x16x16x8xf32> to vector<16x16x8xf32>
    %c0_3 = arith.constant 0 : index
    %c0_4 = arith.constant 0 : index
    %2 = vector.load %arg2[%c0_3, %c0_4] : memref<1x8xf32, #tpu.memory_space<vmem>>, vector<1x8xf32>
    %3 = vector.shape_cast %2 : vector<1x8xf32> to vector<1x1x8xf32>
    %4 = vector.broadcast %3 : vector<1x1x8xf32> to vector<16x16x8xf32>
    %5 = arith.mulf %1, %4 : vector<16x16x8xf32>
    %c0_5 = arith.constant 0 : index
    %c0_6 = arith.constant 0 : index
    %6 = vector.load %arg3[%c0_5, %c0_6] : memref<1x8xf32, #tpu.memory_space<vmem>>, vector<1x8xf32>
    %7 = vector.shape_cast %6 : vector<1x8xf32> to vector<1x1x8xf32>
    %8 = vector.broadcast %7 : vector<1x1x8xf32> to vector<16x16x8xf32>
    %9 = arith.addf %5, %8 : vector<16x16x8xf32>
    %cst = arith.constant 0.000000e+00 : f32
    %10 = vector.broadcast %cst : f32 to vector<16x16x8xf32>
    %11 = arith.maximumf %9, %10 : vector<16x16x8xf32>
    %cst_7 = arith.constant 0.000000e+00 : f32
    %12 = vector.broadcast %cst_7 : f32 to vector<1x18x8xf32>
    %c0_8 = arith.constant 0 : index
    %c0_9 = arith.constant 0 : index
    %c0_10 = arith.constant 0 : index
    %13 = vector.load %arg7[%c0_8, %c0_9, %c0_10] : memref<18x18x8xf32, #tpu.memory_space<vmem>>, vector<1x18x8xf32>
    tpu.vector_store %arg7[%c0_8, %c0_9, %c0_10], %12 {strides = array<i32>} : memref<18x18x8xf32, #tpu.memory_space<vmem>>, vector<1x18x8xf32>,
    %cst_11 = arith.constant 0.000000e+00 : f32
    %14 = vector.broadcast %cst_11 : f32 to vector<1x18x8xf32>
    %c17 = arith.constant 17 : index
    %c0_12 = arith.constant 0 : index
    %c0_13 = arith.constant 0 : index
    %15 = vector.load %arg7[%c17, %c0_12, %c0_13] : memref<18x18x8xf32, #tpu.memory_space<vmem>>, vector<1x18x8xf32>
    tpu.vector_store %arg7[%c17, %c0_12, %c0_13], %14 {strides = array<i32>} : memref<18x18x8xf32, #tpu.memory_space<vmem>>, vector<1x18x8xf32>,
    %cst_14 = arith.constant 0.000000e+00 : f32
    %16 = vector.broadcast %cst_14 : f32 to vector<18x1x8xf32>
    %c0_15 = arith.constant 0 : index
    %c0_16 = arith.constant 0 : index
    %c0_17 = arith.constant 0 : index
    %17 = vector.load %arg7[%c0_15, %c0_16, %c0_17] : memref<18x18x8xf32, #tpu.memory_space<vmem>>, vector<18x1x8xf32>
    tpu.vector_store %arg7[%c0_15, %c0_16, %c0_17], %16 {strides = array<i32>} : memref<18x18x8xf32, #tpu.memory_space<vmem>>, vector<18x1x8xf32>,
    %cst_18 = arith.constant 0.000000e+00 : f32
    %18 = vector.broadcast %cst_18 : f32 to vector<18x1x8xf32>
    %c0_19 = arith.constant 0 : index
    %c17_20 = arith.constant 17 : index
    %c0_21 = arith.constant 0 : index
    %19 = vector.load %arg7[%c0_19, %c17_20, %c0_21] : memref<18x18x8xf32, #tpu.memory_space<vmem>>, vector<18x1x8xf32>
    tpu.vector_store %arg7[%c0_19, %c17_20, %c0_21], %18 {strides = array<i32>} : memref<18x18x8xf32, #tpu.memory_space<vmem>>, vector<18x1x8xf32>,
    %c1 = arith.constant 1 : index
    %c1_22 = arith.constant 1 : index
    %c0_23 = arith.constant 0 : index
    %20 = vector.load %arg7[%c1, %c1_22, %c0_23] : memref<18x18x8xf32, #tpu.memory_space<vmem>>, vector<16x16x8xf32>
    tpu.vector_store %arg7[%c1, %c1_22, %c0_23], %11 {strides = array<i32>} : memref<18x18x8xf32, #tpu.memory_space<vmem>>, vector<16x16x8xf32>,
    %c0_24 = arith.constant 0 : index
    %c0_25 = arith.constant 0 : index
    %c0_26 = arith.constant 0 : index
    %21 = vector.load %arg7[%c0_24, %c0_25, %c0_26] : memref<18x18x8xf32, #tpu.memory_space<vmem>>, vector<16x16x8xf32>
    %22 = arith.truncf %21 : vector<16x16x8xf32> to vector<16x16x8xbf16>
    %c0_27 = arith.constant 0 : index
    %c0_28 = arith.constant 0 : index
    %c0_29 = arith.constant 0 : index
    %23 = vector.load %arg8[%c0_27, %c0_28, %c0_29] : memref<16x16x72xbf16, #tpu.memory_space<vmem>>, vector<16x16x8xbf16>
    tpu.vector_store %arg8[%c0_27, %c0_28, %c0_29], %22 {strides = array<i32>} : memref<16x16x72xbf16, #tpu.memory_space<vmem>>, vector<16x16x8xbf16>,
    %c0_30 = arith.constant 0 : index
    %c1_31 = arith.constant 1 : index
    %c0_32 = arith.constant 0 : index
    %24 = vector.load %arg7[%c0_30, %c1_31, %c0_32] : memref<18x18x8xf32, #tpu.memory_space<vmem>>, vector<16x16x8xf32>
    %25 = arith.truncf %24 : vector<16x16x8xf32> to vector<16x16x8xbf16>
    %c0_33 = arith.constant 0 : index
    %c0_34 = arith.constant 0 : index
    %c8 = arith.constant 8 : index
    %26 = vector.load %arg8[%c0_33, %c0_34, %c8] : memref<16x16x72xbf16, #tpu.memory_space<vmem>>, vector<16x16x8xbf16>
    tpu.vector_store %arg8[%c0_33, %c0_34, %c8], %25 {strides = array<i32>} : memref<16x16x72xbf16, #tpu.memory_space<vmem>>, vector<16x16x8xbf16>,
    %c0_35 = arith.constant 0 : index
    %c2 = arith.constant 2 : index
    %c0_36 = arith.constant 0 : index
    %27 = vector.load %arg7[%c0_35, %c2, %c0_36] : memref<18x18x8xf32, #tpu.memory_space<vmem>>, vector<16x16x8xf32>
    %28 = arith.truncf %27 : vector<16x16x8xf32> to vector<16x16x8xbf16>
    %c0_37 = arith.constant 0 : index
    %c0_38 = arith.constant 0 : index
    %c16 = arith.constant 16 : index
    %29 = vector.load %arg8[%c0_37, %c0_38, %c16] : memref<16x16x72xbf16, #tpu.memory_space<vmem>>, vector<16x16x8xbf16>
    tpu.vector_store %arg8[%c0_37, %c0_38, %c16], %28 {strides = array<i32>} : memref<16x16x72xbf16, #tpu.memory_space<vmem>>, vector<16x16x8xbf16>,
    %c1_39 = arith.constant 1 : index
    %c0_40 = arith.constant 0 : index
    %c0_41 = arith.constant 0 : index
    %30 = vector.load %arg7[%c1_39, %c0_40, %c0_41] : memref<18x18x8xf32, #tpu.memory_space<vmem>>, vector<16x16x8xf32>
    %31 = arith.truncf %30 : vector<16x16x8xf32> to vector<16x16x8xbf16>
    %c0_42 = arith.constant 0 : index
    %c0_43 = arith.constant 0 : index
    %c24 = arith.constant 24 : index
    %32 = vector.load %arg8[%c0_42, %c0_43, %c24] : memref<16x16x72xbf16, #tpu.memory_space<vmem>>, vector<16x16x8xbf16>
    tpu.vector_store %arg8[%c0_42, %c0_43, %c24], %31 {strides = array<i32>} : memref<16x16x72xbf16, #tpu.memory_space<vmem>>, vector<16x16x8xbf16>,
    %c1_44 = arith.constant 1 : index
    %c1_45 = arith.constant 1 : index
    %c0_46 = arith.constant 0 : index
    %33 = vector.load %arg7[%c1_44, %c1_45, %c0_46] : memref<18x18x8xf32, #tpu.memory_space<vmem>>, vector<16x16x8xf32>
    %34 = arith.truncf %33 : vector<16x16x8xf32> to vector<16x16x8xbf16>
    %c0_47 = arith.constant 0 : index
    %c0_48 = arith.constant 0 : index
    %c32 = arith.constant 32 : index
    %35 = vector.load %arg8[%c0_47, %c0_48, %c32] : memref<16x16x72xbf16, #tpu.memory_space<vmem>>, vector<16x16x8xbf16>
    tpu.vector_store %arg8[%c0_47, %c0_48, %c32], %34 {strides = array<i32>} : memref<16x16x72xbf16, #tpu.memory_space<vmem>>, vector<16x16x8xbf16>,
    %c1_49 = arith.constant 1 : index
    %c2_50 = arith.constant 2 : index
    %c0_51 = arith.constant 0 : index
    %36 = vector.load %arg7[%c1_49, %c2_50, %c0_51] : memref<18x18x8xf32, #tpu.memory_space<vmem>>, vector<16x16x8xf32>
    %37 = arith.truncf %36 : vector<16x16x8xf32> to vector<16x16x8xbf16>
    %c0_52 = arith.constant 0 : index
    %c0_53 = arith.constant 0 : index
    %c40 = arith.constant 40 : index
    %38 = vector.load %arg8[%c0_52, %c0_53, %c40] : memref<16x16x72xbf16, #tpu.memory_space<vmem>>, vector<16x16x8xbf16>
    tpu.vector_store %arg8[%c0_52, %c0_53, %c40], %37 {strides = array<i32>} : memref<16x16x72xbf16, #tpu.memory_space<vmem>>, vector<16x16x8xbf16>,
    %c2_54 = arith.constant 2 : index
    %c0_55 = arith.constant 0 : index
    %c0_56 = arith.constant 0 : index
    %39 = vector.load %arg7[%c2_54, %c0_55, %c0_56] : memref<18x18x8xf32, #tpu.memory_space<vmem>>, vector<16x16x8xf32>
    %40 = arith.truncf %39 : vector<16x16x8xf32> to vector<16x16x8xbf16>
    %c0_57 = arith.constant 0 : index
    %c0_58 = arith.constant 0 : index
    %c48 = arith.constant 48 : index
    %41 = vector.load %arg8[%c0_57, %c0_58, %c48] : memref<16x16x72xbf16, #tpu.memory_space<vmem>>, vector<16x16x8xbf16>
    tpu.vector_store %arg8[%c0_57, %c0_58, %c48], %40 {strides = array<i32>} : memref<16x16x72xbf16, #tpu.memory_space<vmem>>, vector<16x16x8xbf16>,
    %c2_59 = arith.constant 2 : index
    %c1_60 = arith.constant 1 : index
    %c0_61 = arith.constant 0 : index
    %42 = vector.load %arg7[%c2_59, %c1_60, %c0_61] : memref<18x18x8xf32, #tpu.memory_space<vmem>>, vector<16x16x8xf32>
    %43 = arith.truncf %42 : vector<16x16x8xf32> to vector<16x16x8xbf16>
    %c0_62 = arith.constant 0 : index
    %c0_63 = arith.constant 0 : index
    %c56 = arith.constant 56 : index
    %44 = vector.load %arg8[%c0_62, %c0_63, %c56] : memref<16x16x72xbf16, #tpu.memory_space<vmem>>, vector<16x16x8xbf16>
    tpu.vector_store %arg8[%c0_62, %c0_63, %c56], %43 {strides = array<i32>} : memref<16x16x72xbf16, #tpu.memory_space<vmem>>, vector<16x16x8xbf16>,
    %c2_64 = arith.constant 2 : index
    %c2_65 = arith.constant 2 : index
    %c0_66 = arith.constant 0 : index
    %45 = vector.load %arg7[%c2_64, %c2_65, %c0_66] : memref<18x18x8xf32, #tpu.memory_space<vmem>>, vector<16x16x8xf32>
    %46 = arith.truncf %45 : vector<16x16x8xf32> to vector<16x16x8xbf16>
    %c0_67 = arith.constant 0 : index
    %c0_68 = arith.constant 0 : index
    %c64 = arith.constant 64 : index
    %47 = vector.load %arg8[%c0_67, %c0_68, %c64] : memref<16x16x72xbf16, #tpu.memory_space<vmem>>, vector<16x16x8xbf16>
    tpu.vector_store %arg8[%c0_67, %c0_68, %c64], %46 {strides = array<i32>} : memref<16x16x72xbf16, #tpu.memory_space<vmem>>, vector<16x16x8xbf16>,
    %c0_69 = arith.constant 0 : index
    %c0_70 = arith.constant 0 : index
    %c0_71 = arith.constant 0 : index
    %48 = vector.load %arg8[%c0_69, %c0_70, %c0_71] : memref<16x16x72xbf16, #tpu.memory_space<vmem>>, vector<16x16x72xbf16>
    %49 = vector.shape_cast %48 : vector<16x16x72xbf16> to vector<256x72xbf16>
    %c0_72 = arith.constant 0 : index
    %c0_73 = arith.constant 0 : index
    %50 = vector.load %arg4[%c0_72, %c0_73] : memref<72x8xbf16, #tpu.memory_space<vmem>>, vector<72x8xbf16>
    %cst_74 = arith.constant dense<0.000000e+00> : vector<256x8xf32>
    %51 = tpu.matmul %49, %50, %cst_74 {dimension_numbers = #tpu.dot_dimension_numbers<[1], [0], [0], [1], [0, 0, 1, 1], [], []>} : vector<256x72xbf16>, vector<72x8xbf16>, vector<256x8xf32> -> vector<256x8xf32>
    %52 = vector.shape_cast %51 : vector<256x8xf32> to vector<16x16x8xf32>
    %c0_75 = arith.constant 0 : index
    %c0_76 = arith.constant 0 : index
    %c0_77 = arith.constant 0 : index
    %c0_78 = arith.constant 0 : index
    %53 = vector.load %arg5[%c0_75, %c0_76, %c0_77, %c0_78] : memref<1x16x16x8xf32, #tpu.memory_space<vmem>>, vector<1x16x16x8xf32>
    %54 = vector.shape_cast %53 : vector<1x16x16x8xf32> to vector<16x16x8xf32>
    %55 = vector.shape_cast %52 : vector<16x16x8xf32> to vector<1x16x16x8xf32>
    tpu.vector_store %arg5[%c0_75, %c0_76, %c0_77, %c0_78], %55 {strides = array<i32>} : memref<1x16x16x8xf32, #tpu.memory_space<vmem>>, vector<1x16x16x8xf32>,
    %cst_79 = arith.constant dense<0.000000e+00> : vector<8xf32>
    %56 = vector.multi_reduction <add>, %51, %cst_79 [0] : vector<256x8xf32> to vector<8xf32>
    %57 = vector.shape_cast %56 : vector<8xf32> to vector<1x8xf32>
    %58 = arith.mulf %51, %51 : vector<256x8xf32>
    %cst_80 = arith.constant dense<0.000000e+00> : vector<8xf32>
    %59 = vector.multi_reduction <add>, %58, %cst_80 [0] : vector<256x8xf32> to vector<8xf32>
    %60 = vector.shape_cast %59 : vector<8xf32> to vector<1x8xf32>
    %61 = tpu.concatenate %57, %60 in 0 : vector<1x8xf32>, vector<1x8xf32> -> vector<2x8xf32>
    %c0_81 = arith.constant 0 : index
    %c0_82 = arith.constant 0 : index
    %c0_83 = arith.constant 0 : index
    %62 = vector.load %arg6[%c0_81, %c0_82, %c0_83] : memref<1x2x8xf32, #tpu.memory_space<vmem>>, vector<1x2x8xf32>
    %63 = vector.shape_cast %62 : vector<1x2x8xf32> to vector<2x8xf32>
    %64 = vector.shape_cast %61 : vector<2x8xf32> to vector<1x2x8xf32>
    tpu.vector_store %arg6[%c0_81, %c0_82, %c0_83], %64 {strides = array<i32>} : memref<1x2x8xf32, #tpu.memory_space<vmem>>, vector<1x2x8xf32>,
    return
  }
  func.func @transform_0(%arg0: i32) -> (i32, i32, i32, i32) {
    %c0_i32 = arith.constant 0 : i32
    %c0_i32_0 = arith.constant 0 : i32
    %c0_i32_1 = arith.constant 0 : i32
    %c0_i32_2 = arith.constant 0 : i32
    return %arg0, %c0_i32, %c0_i32_0, %c0_i32_1 : i32, i32, i32, i32
  }
  func.func @transform_1(%arg0: i32) -> (i32, i32) {
    %c0_i32 = arith.constant 0 : i32
    %c0_i32_0 = arith.constant 0 : i32
    %c0_i32_1 = arith.constant 0 : i32
    return %c0_i32, %c0_i32_0 : i32, i32
  }
  func.func @transform_2(%arg0: i32) -> (i32, i32) {
    %c0_i32 = arith.constant 0 : i32
    %c0_i32_0 = arith.constant 0 : i32
    %c0_i32_1 = arith.constant 0 : i32
    return %c0_i32, %c0_i32_0 : i32, i32
  }
  func.func @transform_3(%arg0: i32) -> (i32, i32) {
    %c0_i32 = arith.constant 0 : i32
    %c0_i32_0 = arith.constant 0 : i32
    %c0_i32_1 = arith.constant 0 : i32
    return %c0_i32, %c0_i32_0 : i32, i32
  }
  func.func @transform_4(%arg0: i32) -> (i32, i32, i32, i32) {
    %c0_i32 = arith.constant 0 : i32
    %c0_i32_0 = arith.constant 0 : i32
    %c0_i32_1 = arith.constant 0 : i32
    %c0_i32_2 = arith.constant 0 : i32
    return %arg0, %c0_i32, %c0_i32_0, %c0_i32_1 : i32, i32, i32, i32
  }
  func.func @transform_5(%arg0: i32) -> (i32, i32, i32) {
    %c0_i32 = arith.constant 0 : i32
    %c0_i32_0 = arith.constant 0 : i32
    %c0_i32_1 = arith.constant 0 : i32
    return %arg0, %c0_i32, %c0_i32_0 : i32, i32, i32
  }
}

module attributes {stable_mosaic.version = 11 : i64} {
  func.func @_bn_add_relu_kernel(%arg0: i32, %arg1: memref<1x16x128xf32, #tpu.memory_space<vmem>>, %arg2: memref<1x16x128xf32, #tpu.memory_space<vmem>>, %arg3: memref<1x128xf32, #tpu.memory_space<vmem>>, %arg4: memref<1x128xf32, #tpu.memory_space<vmem>>, %arg5: memref<1x16x128xf32, #tpu.memory_space<vmem>>) attributes {dimension_semantics = [#tpu.dimension_semantics<parallel>], iteration_bounds = array<i64: 2>, scalar_prefetch = 0 : i64, scratch_operands = 0 : i64, tpu.core_type = #tpu.core_type<tc>, window_params = [{transform_indices = @transform_0, window_bounds = array<i64: 1, 16, 128>}, {transform_indices = @transform_1, window_bounds = array<i64: 1, 16, 128>}, {pipeline_mode = #tpu.pipeline_mode<synchronous>, transform_indices = @transform_2, window_bounds = array<i64: 1, 128>}, {pipeline_mode = #tpu.pipeline_mode<synchronous>, transform_indices = @transform_3, window_bounds = array<i64: 1, 128>}, {transform_indices = @transform_4, window_bounds = array<i64: 1, 16, 128>}]} {
    %c0 = arith.constant 0 : index
    %c0_0 = arith.constant 0 : index
    %c0_1 = arith.constant 0 : index
    %0 = vector.load %arg1[%c0, %c0_0, %c0_1] : memref<1x16x128xf32, #tpu.memory_space<vmem>>, vector<1x16x128xf32>
    %c0_2 = arith.constant 0 : index
    %c0_3 = arith.constant 0 : index
    %1 = vector.load %arg3[%c0_2, %c0_3] : memref<1x128xf32, #tpu.memory_space<vmem>>, vector<1x128xf32>
    %2 = vector.shape_cast %1 : vector<1x128xf32> to vector<1x1x128xf32>
    %3 = vector.broadcast %2 : vector<1x1x128xf32> to vector<1x16x128xf32>
    %4 = arith.mulf %0, %3 : vector<1x16x128xf32>
    %c0_4 = arith.constant 0 : index
    %c0_5 = arith.constant 0 : index
    %5 = vector.load %arg4[%c0_4, %c0_5] : memref<1x128xf32, #tpu.memory_space<vmem>>, vector<1x128xf32>
    %6 = vector.shape_cast %5 : vector<1x128xf32> to vector<1x1x128xf32>
    %7 = vector.broadcast %6 : vector<1x1x128xf32> to vector<1x16x128xf32>
    %8 = arith.addf %4, %7 : vector<1x16x128xf32>
    %c0_6 = arith.constant 0 : index
    %c0_7 = arith.constant 0 : index
    %c0_8 = arith.constant 0 : index
    %9 = vector.load %arg2[%c0_6, %c0_7, %c0_8] : memref<1x16x128xf32, #tpu.memory_space<vmem>>, vector<1x16x128xf32>
    %10 = arith.addf %8, %9 : vector<1x16x128xf32>
    %cst = arith.constant 0.000000e+00 : f32
    %11 = vector.broadcast %cst : f32 to vector<1x16x128xf32>
    %12 = arith.maximumf %10, %11 : vector<1x16x128xf32>
    %c0_9 = arith.constant 0 : index
    %c0_10 = arith.constant 0 : index
    %c0_11 = arith.constant 0 : index
    %13 = vector.load %arg5[%c0_9, %c0_10, %c0_11] : memref<1x16x128xf32, #tpu.memory_space<vmem>>, vector<1x16x128xf32>
    tpu.vector_store %arg5[%c0_9, %c0_10, %c0_11], %12 {strides = array<i32>} : memref<1x16x128xf32, #tpu.memory_space<vmem>>, vector<1x16x128xf32>,
    return
  }
  func.func @transform_0(%arg0: i32) -> (i32, i32, i32) {
    %c0_i32 = arith.constant 0 : i32
    %c0_i32_0 = arith.constant 0 : i32
    %c0_i32_1 = arith.constant 0 : i32
    return %arg0, %c0_i32, %c0_i32_0 : i32, i32, i32
  }
  func.func @transform_1(%arg0: i32) -> (i32, i32, i32) {
    %c0_i32 = arith.constant 0 : i32
    %c0_i32_0 = arith.constant 0 : i32
    %c0_i32_1 = arith.constant 0 : i32
    return %arg0, %c0_i32, %c0_i32_0 : i32, i32, i32
  }
  func.func @transform_2(%arg0: i32) -> (i32, i32) {
    %c0_i32 = arith.constant 0 : i32
    %c0_i32_0 = arith.constant 0 : i32
    %c0_i32_1 = arith.constant 0 : i32
    return %c0_i32, %c0_i32_0 : i32, i32
  }
  func.func @transform_3(%arg0: i32) -> (i32, i32) {
    %c0_i32 = arith.constant 0 : i32
    %c0_i32_0 = arith.constant 0 : i32
    %c0_i32_1 = arith.constant 0 : i32
    return %c0_i32, %c0_i32_0 : i32, i32
  }
  func.func @transform_4(%arg0: i32) -> (i32, i32, i32) {
    %c0_i32 = arith.constant 0 : i32
    %c0_i32_0 = arith.constant 0 : i32
    %c0_i32_1 = arith.constant 0 : i32
    return %arg0, %c0_i32, %c0_i32_0 : i32, i32, i32
  }
}

</mosaic_0001>

<llo_original>
// kernel: basic_block.5
$region0: #{basic_block.5}
  #allocation0 [shape = 'u32[]', space=smem, size = 0x4, offset = 0x4, fixed_abs, tag = 'smem constant byte address 0x4 - core index']
  #allocation1 [shape = 'u32[144,128]{1,0:T(1,128)}', space=vmem, size = 0x12000, scoped, tag = 'internal scratch']
  %s0 = inlined_call_operand.vmem [shape: f32[2,16,128], index: 0, kind: input, shape index: {}]
  %s1 = inlined_call_operand.vmem [shape: f32[2,16,128], index: 1, kind: input, shape index: {}]
  %s2 = inlined_call_operand.vmem [shape: f32[1,128], index: 2, kind: input, shape index: {}]
  %s3 = inlined_call_operand.vmem [shape: f32[1,128], index: 3, kind: input, shape index: {}]
  %s4 = inlined_call_operand.vmem [shape: f32[2,16,128], index: 4, kind: output, shape index: {}]
  %s5 = sld [smem:[#allocation0]]
  $region49: #{basic_block.5} parent=0
    _
  %s7 = ssub.s32 1, %s5
  %s8 = scalar_select 0, %s7, %s5
  loop: start=0, step=1, limit=4
  $region2: #{basic_block.5} parent=0 // loop_pre_header
    _
  $region3: #{basic_block.5} parent=0 // loop_header
    %s10 = sphi 0, %s14
    %p11 = scmp.ge.s32.totalorder %s10, 4
    %s20 = sphi 0, %s22
    %s23 = sphi 0, %s20
    %s24 = sphi 0, %s23
    %s40 = sphi 0, %s24
    %s46 = sphi 0, %s48
    %s49 = sphi 0, %s46
    %s50 = sphi 0, %s49
    %s66 = sphi 0, %s50
    %s70 = sphi 0, %s70
    %s72 = sphi 0, %s70
    %s73 = sphi 0, %s72
    %s87 = sphi 0, %s73
    %s91 = sphi 0, %s91
    %s93 = sphi 0, %s91
    %s94 = sphi 0, %s93
    %s108 = sphi 0, %s94
    %s114 = sphi 0, %s116
    %s117 = sphi 0, %s114
    %s118 = sphi 0, %s117
    %s134 = sphi 0, %s118
  $region4: #{basic_block.5} parent=0 // loop_header_branch
    %13 = sbr.rel (%p11) target = $region8
  $region5: #{basic_block.5} parent=0 // loop_body
    %s15 = ssub.s32 %s10, 1
    %s16 = ssub.s32 %s10, 2
    %s17 = sadd.s32 %s10, 1
    %s18 = ssub.s32 %s10, %s17
    %p19 = scmp.eq.s32.totalorder %s18, 0
    %s21 = sadd.s32 %s20, 1
    %s22 = scalar_select %p19, %s20, %s21
    %p25 = pneg %p19
    %p26 = scmp.eq.s32.totalorder %s10, 1
    %p27 = por %p25, %p26
    %p28 = scmp.ne.s32.totalorder %s20, %s23
    %p29 = scmp.eq.s32.totalorder %s10, 0
    %p30 = por %p28, %p29
    %p31 = scmp.ne.s32.totalorder %s20, %s23
    %p32 = scmp.eq.s32.totalorder %s15, 1
    %p33 = por %p31, %p32
    %p34 = scmp.ne.s32.totalorder %s23, %s24
    %p35 = scmp.eq.s32.totalorder %s15, 0
    %p36 = por %p34, %p35
    %p37 = scmp.ne.s32.totalorder %s23, %s24
    %p38 = scmp.eq.s32.totalorder %s16, 1
    %p39 = por %p37, %p38
    %p41 = scmp.ne.s32.totalorder %s24, %s40
    %p42 = scmp.eq.s32.totalorder %s16, 0
    %p43 = por %p41, %p42
    %s44 = ssub.s32 %s10, %s17
    %p45 = scmp.eq.s32.totalorder %s44, 0
    %s47 = sadd.s32 %s46, 1
    %s48 = scalar_select %p45, %s46, %s47
    %p51 = pneg %p45
    %p52 = scmp.eq.s32.totalorder %s10, 1
    %p53 = por %p51, %p52
    %p54 = scmp.ne.s32.totalorder %s46, %s49
    %p55 = scmp.eq.s32.totalorder %s10, 0
    %p56 = por %p54, %p55
    %p57 = scmp.ne.s32.totalorder %s46, %s49
    %p58 = scmp.eq.s32.totalorder %s15, 1
    %p59 = por %p57, %p58
    %p60 = scmp.ne.s32.totalorder %s49, %s50
    %p61 = scmp.eq.s32.totalorder %s15, 0
    %p62 = por %p60, %p61
    %p63 = scmp.ne.s32.totalorder %s49, %s50
    %p64 = scmp.eq.s32.totalorder %s16, 1
    %p65 = por %p63, %p64
    %p67 = scmp.ne.s32.totalorder %s50, %s66
    %p68 = scmp.eq.s32.totalorder %s16, 0
    %p69 = por %p67, %p68
    %s71 = sadd.s32 %s70, 1
    %p74 = scmp.eq.s32.totalorder %s10, 1
    %p75 = scmp.ne.s32.totalorder %s70, %s72
    %p76 = scmp.eq.s32.totalorder %s10, 0
    %p77 = por %p75, %p76
    %p78 = scmp.ne.s32.totalorder %s70, %s72
    %p79 = scmp.eq.s32.totalorder %s15, 1
    %p80 = por %p78, %p79
    %p81 = scmp.ne.s32.totalorder %s72, %s73
    %p82 = scmp.eq.s32.totalorder %s15, 0
    %p83 = por %p81, %p82
    %p84 = scmp.ne.s32.totalorder %s72, %s73
    %p85 = scmp.eq.s32.totalorder %s16, 1
    %p86 = por %p84, %p85
    %p88 = scmp.ne.s32.totalorder %s73, %s87
    %p89 = scmp.eq.s32.totalorder %s16, 0
    %p90 = por %p88, %p89
    %s92 = sadd.s32 %s91, 1
    %p95 = scmp.eq.s32.totalorder %s10, 1
    %p96 = scmp.ne.s32.totalorder %s91, %s93
    %p97 = scmp.eq.s32.totalorder %s10, 0
    %p98 = por %p96, %p97
    %p99 = scmp.ne.s32.totalorder %s91, %s93
    %p100 = scmp.eq.s32.totalorder %s15, 1
    %p101 = por %p99, %p100
    %p102 = scmp.ne.s32.totalorder %s93, %s94
    %p103 = scmp.eq.s32.totalorder %s15, 0
    %p104 = por %p102, %p103
    %p105 = scmp.ne.s32.totalorder %s93, %s94
    %p106 = scmp.eq.s32.totalorder %s16, 1
    %p107 = por %p105, %p106
    %p109 = scmp.ne.s32.totalorder %s94, %s108
    %p110 = scmp.eq.s32.totalorder %s16, 0
    %p111 = por %p109, %p110
    %s112 = ssub.s32 %s10, %s17
    %p113 = scmp.eq.s32.totalorder %s112, 0
    %s115 = sadd.s32 %s114, 1
    %s116 = scalar_select %p113, %s114, %s115
    %p119 = pneg %p113
    %p120 = scmp.eq.s32.totalorder %s10, 1
    %p121 = por %p119, %p120
    %p122 = scmp.ne.s32.totalorder %s114, %s117
    %p123 = scmp.eq.s32.totalorder %s10, 0
    %p124 = por %p122, %p123
    %p125 = scmp.ne.s32.totalorder %s114, %s117
    %p126 = scmp.eq.s32.totalorder %s15, 1
    %p127 = por %p125, %p126
    %p128 = scmp.ne.s32.totalorder %s117, %s118
    %p129 = scmp.eq.s32.totalorder %s15, 0
    %p130 = por %p128, %p129
    %p131 = scmp.ne.s32.totalorder %s117, %s118
    %p132 = scmp.eq.s32.totalorder %s16, 1
    %p133 = por %p131, %p132
    %p135 = scmp.ne.s32.totalorder %s118, %s134
    %p136 = scmp.eq.s32.totalorder %s16, 0
    %p137 = por %p135, %p136
    %p138 = scmp.le.s32.totalorder 1, %s10
    %p139 = scmp.lt.s32.totalorder %s10, 3
    %p140 = pnand %p138, %p139
    %p141 = pneg %p140
    // Predicated region
    $region9: #{basic_block.5} parent=5 // pred_check
      _
    $region10: #{basic_block.5} parent=5 // pred_check_branch
      %143 = sbr.rel (%p140) target = $region12
    $region11: #{basic_block.5} parent=5 // pred_region
      %s144 = ssub.s32 %s10, 1
      // Predicated region
      $region13: #{basic_block.5} parent=11 // pred_check
        %p145 = pneg %p83
      $region14: #{basic_block.5} parent=11 // pred_check_branch
        %147 = sbr.rel (%p145) target = $region16
      $region15: #{basic_block.5} parent=11 // pred_region
        _
      $region16: #{basic_block.5} parent=11 // pred_fallthru
        _
      // Predicated region
      $region17: #{basic_block.5} parent=11 // pred_check
        %p148 = pneg %p104
      $region18: #{basic_block.5} parent=11 // pred_check_branch
        %150 = sbr.rel (%p148) target = $region20
      $region19: #{basic_block.5} parent=11 // pred_region
        _
      $region20: #{basic_block.5} parent=11 // pred_fallthru
        _
    $region12: #{basic_block.5} parent=5 // pred_fallthru
      _
    %p151 = scmp.lt.s32.totalorder %s10, 2
    // Predicated region
    $region21: #{basic_block.5} parent=5 // pred_check
      %p152 = pneg %p151
    $region22: #{basic_block.5} parent=5 // pred_check_branch
      %154 = sbr.rel (%p152) target = $region24
    $region23: #{basic_block.5} parent=5 // pred_region
      // Predicated region
      $region25: #{basic_block.5} parent=23 // pred_check
        %p155 = pneg %p30
      $region26: #{basic_block.5} parent=23 // pred_check_branch
        %157 = sbr.rel (%p155) target = $region28
      $region27: #{basic_block.5} parent=23 // pred_region
        %p158 = scmp.lt.s32.totalorder %s10, 1
        %s159 = scalar_select %p158, %s10, 1
        %s160 = smul.addr %s159, 2
        %s161 = smul.addr %s160, 8
        %s162 = scalar_lea.vmem %s0, %s161
      $region28: #{basic_block.5} parent=23 // pred_fallthru
        _
      // Predicated region
      $region29: #{basic_block.5} parent=23 // pred_check
        %p163 = pneg %p56
      $region30: #{basic_block.5} parent=23 // pred_check_branch
        %165 = sbr.rel (%p163) target = $region32
      $region31: #{basic_block.5} parent=23 // pred_region
        %p166 = scmp.lt.s32.totalorder %s10, 1
        %s167 = scalar_select %p166, %s10, 1
        %s168 = smul.addr %s167, 2
        %s169 = smul.addr %s168, 8
        %s170 = scalar_lea.vmem %s1, %s169
      $region32: #{basic_block.5} parent=23 // pred_fallthru
        _
    $region24: #{basic_block.5} parent=5 // pred_fallthru
      _
    %p171 = scmp.le.s32.totalorder 1, %s10
    %p172 = scmp.lt.s32.totalorder %s10, 3
    %p173 = pnand %p171, %p172
    %p174 = pneg %p173
    // Predicated region
    $region33: #{basic_block.5} parent=5 // pred_check
      _
    $region34: #{basic_block.5} parent=5 // pred_check_branch
      %176 = sbr.rel (%p173) target = $region36
    $region35: #{basic_block.5} parent=5 // pred_region
      %s177 = ssub.s32 %s10, 1
      %p178 = scmp.lt.s32.totalorder %s15, 1
      %s179 = scalar_select %p178, %s15, 1
      %s180 = smul.addr %s179, 2
      %s181 = smul.addr %s180, 8
      %s182 = scalar_lea.vmem %s0, %s181
      %p183 = pneg %p36
      %p184 = pneg %p33
      %p185 = scmp.lt.s32.totalorder %s15, 1
      %s186 = scalar_select %p185, %s15, 1
      %s187 = smul.addr %s186, 2
      %s188 = smul.addr %s187, 8
      %s189 = scalar_lea.vmem %s1, %s188
      %p190 = pneg %p62
      %p191 = pneg %p59
      %p192 = pneg %p83
      %p193 = pneg %p80
      %p194 = pneg %p104
      %p195 = pneg %p101
      %p196 = pneg %p130
      %p197 = pneg %p127
      %p198 = scmp.lt.s32.totalorder %s15, 1
      %s199 = scalar_select %p198, %s15, 1
      %s200 = smul.addr %s199, 2
      %s201 = smul.addr %s200, 8
      %s202 = scalar_lea.vmem %s4, %s201
      %p203 = scmp.lt.s32.totalorder %s15, 1
      %s204 = scalar_select %p203, %s15, 1
      %s205 = smul.addr %s204, 2
      %s206 = smul.addr %s205, 8
      %s207 = scalar_lea.vmem %s0, %s206
      %p208 = scmp.lt.s32.totalorder %s15, 1
      %s209 = scalar_select %p208, %s15, 1
      %s210 = smul.addr %s209, 2
      %s211 = smul.addr %s210, 8
      %s212 = scalar_lea.vmem %s1, %s211
      %p213 = scmp.lt.s32.totalorder %s15, 1
      %s214 = scalar_select %p213, %s15, 1
      %s215 = smul.addr %s214, 2
      %s216 = smul.addr %s215, 8
      %s217 = scalar_lea.vmem %s4, %s216
      %v218 = vld [vmem:[%s207] sm:$0xff]
      %v219 = vld [vmem:[%s207 + $0x8] sm:$0xff]
      %v220 = vld [vmem:[%s2] sm:$0x1]
      %v222 = vlaneseq
      %v223 = vshrl.u32 %v222, 7
      %v224 = vsub.s32 0, %v223
      %v225 = vrot.slane %v220, %v224
      %v227 = vmul.f32 %v218, %v225
      %v228 = vmul.f32 %v219, %v225
      %v229 = vld [vmem:[%s3] sm:$0x1]
      %v231 = vlaneseq
      %v232 = vshrl.u32 %v231, 7
      %v233 = vsub.s32 0, %v232
      %v234 = vrot.slane %v229, %v233
      %v236 = vadd.f32 %v227, %v234
      %v237 = vadd.f32 %v228, %v234
      %v238 = vld [vmem:[%s212] sm:$0xff]
      %v239 = vld [vmem:[%s212 + $0x8] sm:$0xff]
      %v240 = vadd.f32 %v236, %v238
      %v241 = vadd.f32 %v237, %v239
      %v242 = vmax.f32 %v240, 0.0
      %v243 = vmax.f32 %v241, 0.0
      %244 = vst [vmem:[%s217] sm:$0xff] %v242
      %245 = vst [vmem:[%s217 + $0x8] sm:$0xff] %v243
      %p246 = scmp.lt.s32.totalorder %s15, 1
      %s247 = scalar_select %p246, %s15, 1
      %s248 = smul.addr %s247, 2
      %s249 = smul.addr %s248, 8
      %s250 = scalar_lea.vmem %s4, %s249
      // Predicated region
      $region37: #{basic_block.5} parent=35 // pred_check
        %p251 = pneg %p127
      $region38: #{basic_block.5} parent=35 // pred_check_branch
        %253 = sbr.rel (%p251) target = $region40
      $region39: #{basic_block.5} parent=35 // pred_region
        _
      $region40: #{basic_block.5} parent=35 // pred_fallthru
        _
    $region36: #{basic_block.5} parent=5 // pred_fallthru
      _
    %p254 = scmp.le.s32.totalorder 2, %s10
    // Predicated region
    $region41: #{basic_block.5} parent=5 // pred_check
      %p255 = pneg %p254
    $region42: #{basic_block.5} parent=5 // pred_check_branch
      %257 = sbr.rel (%p255) target = $region44
    $region43: #{basic_block.5} parent=5 // pred_region
      %s258 = ssub.s32 %s10, 2
      // Predicated region
      $region45: #{basic_block.5} parent=43 // pred_check
        %p259 = pneg %p133
      $region46: #{basic_block.5} parent=43 // pred_check_branch
        %261 = sbr.rel (%p259) target = $region48
      $region47: #{basic_block.5} parent=43 // pred_region
        %p262 = scmp.lt.s32.totalorder %s16, 1
        %s263 = scalar_select %p262, %s16, 1
        %s264 = smul.addr %s263, 2
        %s265 = smul.addr %s264, 8
        %s266 = scalar_lea.vmem %s4, %s265
      $region48: #{basic_block.5} parent=43 // pred_fallthru
        _
    $region44: #{basic_block.5} parent=5 // pred_fallthru
      _
  $region6: #{basic_block.5} parent=0 // loop_footer
    %s14 = sadd.s32 1, %s10
  $region7: #{basic_block.5} parent=0 // loop_footer_branch
    %9 = sbr.rel target = $region3
  $region8: #{basic_block.5} parent=0 // loop_exit
    _

// kernel: basic_block.3
$region0: #{basic_block.3}
  #allocation0 [shape = 'u32[]', space=smem, size = 0x4, offset = 0x4, fixed_abs, tag = 'smem constant byte address 0x4 - core index']
  #allocation1 [shape = 'u32[144,128]{1,0:T(1,128)}', space=vmem, size = 0x12000, scoped, tag = 'internal scratch']
  #allocation2 [shape = 'f32[18,18,8]{2,1,0:T(8,128)}', space=vmem, size = 0x36000, scoped, tag = 'scratch operand']
  #allocation3 [shape = 'bf16[16,16,72]{2,1,0:T(16,128)(2,1)}', space=vmem, size = 0x10000, scoped, tag = 'scratch operand']
  %s0 = inlined_call_operand.vmem [shape: f32[2,16,16,8], index: 0, kind: input, shape index: {}]
  %s1 = inlined_call_operand.vmem [shape: bf16[72,8], index: 1, kind: input, shape index: {}]
  %s2 = inlined_call_operand.vmem [shape: f32[2,16,16,8], index: 2, kind: output, shape index: {0}]
  %s3 = inlined_call_operand.vmem [shape: f32[2,2,8], index: 3, kind: output, shape index: {1}]
  %4 = xla_tuple %s2, %s3
  %s5 = sld [smem:[#allocation0]]
  $region49: #{basic_block.3} parent=0
    _
  %s7 = ssub.s32 1, %s5
  %s8 = scalar_select 0, %s7, %s5
  loop: start=0, step=1, limit=4
  $region2: #{basic_block.3} parent=0 // loop_pre_header
    _
  $region3: #{basic_block.3} parent=0 // loop_header
    %s10 = sphi 0, %s14
    %p11 = scmp.ge.s32.totalorder %s10, 4
    %s20 = sphi 0, %s22
    %s23 = sphi 0, %s20
    %s24 = sphi 0, %s23
    %s40 = sphi 0, %s24
    %s44 = sphi 0, %s44
    %s46 = sphi 0, %s44
    %s47 = sphi 0, %s46
    %s61 = sphi 0, %s47
    %s67 = sphi 0, %s69
    %s70 = sphi 0, %s67
    %s71 = sphi 0, %s70
    %s87 = sphi 0, %s71
    %s93 = sphi 0, %s95
    %s96 = sphi 0, %s93
    %s97 = sphi 0, %s96
    %s113 = sphi 0, %s97
  $region4: #{basic_block.3} parent=0 // loop_header_branch
    %13 = sbr.rel (%p11) target = $region8
  $region5: #{basic_block.3} parent=0 // loop_body
    %s15 = ssub.s32 %s10, 1
    %s16 = ssub.s32 %s10, 2
    %s17 = sadd.s32 %s10, 1
    %s18 = ssub.s32 %s10, %s17
    %p19 = scmp.eq.s32.totalorder %s18, 0
    %s21 = sadd.s32 %s20, 1
    %s22 = scalar_select %p19, %s20, %s21
    %p25 = pneg %p19
    %p26 = scmp.eq.s32.totalorder %s10, 1
    %p27 = por %p25, %p26
    %p28 = scmp.ne.s32.totalorder %s20, %s23
    %p29 = scmp.eq.s32.totalorder %s10, 0
    %p30 = por %p28, %p29
    %p31 = scmp.ne.s32.totalorder %s20, %s23
    %p32 = scmp.eq.s32.totalorder %s15, 1
    %p33 = por %p31, %p32
    %p34 = scmp.ne.s32.totalorder %s23, %s24
    %p35 = scmp.eq.s32.totalorder %s15, 0
    %p36 = por %p34, %p35
    %p37 = scmp.ne.s32.totalorder %s23, %s24
    %p38 = scmp.eq.s32.totalorder %s16, 1
    %p39 = por %p37, %p38
    %p41 = scmp.ne.s32.totalorder %s24, %s40
    %p42 = scmp.eq.s32.totalorder %s16, 0
    %p43 = por %p41, %p42
    %s45 = sadd.s32 %s44, 1
    %p48 = scmp.eq.s32.totalorder %s10, 1
    %p49 = scmp.ne.s32.totalorder %s44, %s46
    %p50 = scmp.eq.s32.totalorder %s10, 0
    %p51 = por %p49, %p50
    %p52 = scmp.ne.s32.totalorder %s44, %s46
    %p53 = scmp.eq.s32.totalorder %s15, 1
    %p54 = por %p52, %p53
    %p55 = scmp.ne.s32.totalorder %s46, %s47
    %p56 = scmp.eq.s32.totalorder %s15, 0
    %p57 = por %p55, %p56
    %p58 = scmp.ne.s32.totalorder %s46, %s47
    %p59 = scmp.eq.s32.totalorder %s16, 1
    %p60 = por %p58, %p59
    %p62 = scmp.ne.s32.totalorder %s47, %s61
    %p63 = scmp.eq.s32.totalorder %s16, 0
    %p64 = por %p62, %p63
    %s65 = ssub.s32 %s10, %s17
    %p66 = scmp.eq.s32.totalorder %s65, 0
    %s68 = sadd.s32 %s67, 1
    %s69 = scalar_select %p66, %s67, %s68
    %p72 = pneg %p66
    %p73 = scmp.eq.s32.totalorder %s10, 1
    %p74 = por %p72, %p73
    %p75 = scmp.ne.s32.totalorder %s67, %s70
    %p76 = scmp.eq.s32.totalorder %s10, 0
    %p77 = por %p75, %p76
    %p78 = scmp.ne.s32.totalorder %s67, %s70
    %p79 = scmp.eq.s32.totalorder %s15, 1
    %p80 = por %p78, %p79
    %p81 = scmp.ne.s32.totalorder %s70, %s71
    %p82 = scmp.eq.s32.totalorder %s15, 0
    %p83 = por %p81, %p82
    %p84 = scmp.ne.s32.totalorder %s70, %s71
    %p85 = scmp.eq.s32.totalorder %s16, 1
    %p86 = por %p84, %p85
    %p88 = scmp.ne.s32.totalorder %s71, %s87
    %p89 = scmp.eq.s32.totalorder %s16, 0
    %p90 = por %p88, %p89
    %s91 = ssub.s32 %s10, %s17
    %p92 = scmp.eq.s32.totalorder %s91, 0
    %s94 = sadd.s32 %s93, 1
    %s95 = scalar_select %p92, %s93, %s94
    %p98 = pneg %p92
    %p99 = scmp.eq.s32.totalorder %s10, 1
    %p100 = por %p98, %p99
    %p101 = scmp.ne.s32.totalorder %s93, %s96
    %p102 = scmp.eq.s32.totalorder %s10, 0
    %p103 = por %p101, %p102
    %p104 = scmp.ne.s32.totalorder %s93, %s96
    %p105 = scmp.eq.s32.totalorder %s15, 1
    %p106 = por %p104, %p105
    %p107 = scmp.ne.s32.totalorder %s96, %s97
    %p108 = scmp.eq.s32.totalorder %s15, 0
    %p109 = por %p107, %p108
    %p110 = scmp.ne.s32.totalorder %s96, %s97
    %p111 = scmp.eq.s32.totalorder %s16, 1
    %p112 = por %p110, %p111
    %p114 = scmp.ne.s32.totalorder %s97, %s113
    %p115 = scmp.eq.s32.totalorder %s16, 0
    %p116 = por %p114, %p115
    %p117 = scmp.le.s32.totalorder 1, %s10
    %p118 = scmp.lt.s32.totalorder %s10, 3
    %p119 = pnand %p117, %p118
    %p120 = pneg %p119
    // Predicated region
    $region9: #{basic_block.3} parent=5 // pred_check
      _
    $region10: #{basic_block.3} parent=5 // pred_check_branch
      %122 = sbr.rel (%p119) target = $region12
    $region11: #{basic_block.3} parent=5 // pred_region
      %s123 = ssub.s32 %s10, 1
      // Predicated region
      $region13: #{basic_block.3} parent=11 // pred_check
        %p124 = pneg %p57
      $region14: #{basic_block.3} parent=11 // pred_check_branch
        %126 = sbr.rel (%p124) target = $region16
      $region15: #{basic_block.3} parent=11 // pred_region
        _
      $region16: #{basic_block.3} parent=11 // pred_fallthru
        _
    $region12: #{basic_block.3} parent=5 // pred_fallthru
      _
    %p127 = scmp.lt.s32.totalorder %s10, 2
    // Predicated region
    $region17: #{basic_block.3} parent=5 // pred_check
      %p128 = pneg %p127
    $region18: #{basic_block.3} parent=5 // pred_check_branch
      %130 = sbr.rel (%p128) target = $region20
    $region19: #{basic_block.3} parent=5 // pred_region
      // Predicated region
      $region21: #{basic_block.3} parent=19 // pred_check
        %p131 = pneg %p30
      $region22: #{basic_block.3} parent=19 // pred_check_branch
        %133 = sbr.rel (%p131) target = $region24
      $region23: #{basic_block.3} parent=19 // pred_region
        %p134 = scmp.lt.s32.totalorder %s10, 1
        %s135 = scalar_select %p134, %s10, 1
        %s136 = smul.addr %s135, 32
        %s137 = smul.addr %s136, 8
        %s138 = scalar_lea.vmem %s0, %s137
      $region24: #{basic_block.3} parent=19 // pred_fallthru
        _
    $region20: #{basic_block.3} parent=5 // pred_fallthru
      _
    %p139 = scmp.le.s32.totalorder 1, %s10
    %p140 = scmp.lt.s32.totalorder %s10, 3
    %p141 = pnand %p139, %p140
    %p142 = pneg %p141
    // Predicated region
    $region25: #{basic_block.3} parent=5 // pred_check
      _
    $region26: #{basic_block.3} parent=5 // pred_check_branch
      %144 = sbr.rel (%p141) target = $region28
    $region27: #{basic_block.3} parent=5 // pred_region
      %s145 = ssub.s32 %s10, 1
      %p146 = scmp.lt.s32.totalorder %s15, 1
      %s147 = scalar_select %p146, %s15, 1
      %s148 = smul.addr %s147, 32
      %s149 = smul.addr %s148, 8
      %s150 = scalar_lea.vmem %s0, %s149
      %p151 = pneg %p36
      %p152 = pneg %p33
      %p153 = pneg %p57
      %p154 = pneg %p54
      %p155 = pneg %p83
      %p156 = pneg %p80
      %p157 = scmp.lt.s32.totalorder %s15, 1
      %s158 = scalar_select %p157, %s15, 1
      %s159 = smul.addr %s158, 32
      %s160 = smul.addr %s159, 8
      %s161 = scalar_lea.vmem %s2, %s160
      %p162 = pneg %p109
      %p163 = pneg %p106
      %p164 = scmp.lt.s32.totalorder %s15, 1
      %s165 = scalar_select %p164, %s15, 1
      %s166 = smul.addr %s165, 2
      %s167 = scalar_lea.vmem %s3, %s166
      %p168 = scmp.lt.s32.totalorder %s15, 1
      %s169 = scalar_select %p168, %s15, 1
      %s170 = smul.addr %s169, 32
      %s171 = smul.addr %s170, 8
      %s172 = scalar_lea.vmem %s0, %s171
      %p173 = scmp.lt.s32.totalorder %s15, 1
      %s174 = scalar_select %p173, %s15, 1
      %s175 = smul.addr %s174, 32
      %s176 = smul.addr %s175, 8
      %s177 = scalar_lea.vmem %s2, %s176
      %p178 = scmp.lt.s32.totalorder %s15, 1
      %s179 = scalar_select %p178, %s15, 1
      %s180 = smul.addr %s179, 2
      %s181 = scalar_lea.vmem %s3, %s180
      %v183 = vld [vmem:[%s172] sm:$0xff]
      %v184 = vld [vmem:[%s172 + $0x8] sm:$0xff]
      %v185 = vld [vmem:[%s172 + $0x10] sm:$0xff]
      %v186 = vld [vmem:[%s172 + $0x18] sm:$0xff]
      %v187 = vld [vmem:[%s172 + $0x20] sm:$0xff]
      %v188 = vld [vmem:[%s172 + $0x28] sm:$0xff]
      %v189 = vld [vmem:[%s172 + $0x30] sm:$0xff]
      %v190 = vld [vmem:[%s172 + $0x38] sm:$0xff]
      %v191 = vld [vmem:[%s172 + $0x40] sm:$0xff]
      %v192 = vld [vmem:[%s172 + $0x48] sm:$0xff]
      %v193 = vld [vmem:[%s172 + $0x50] sm:$0xff]
      %v194 = vld [vmem:[%s172 + $0x58] sm:$0xff]
      %v195 = vld [vmem:[%s172 + $0x60] sm:$0xff]
      %v196 = vld [vmem:[%s172 + $0x68] sm:$0xff]
      %v197 = vld [vmem:[%s172 + $0x70] sm:$0xff]
      %v198 = vld [vmem:[%s172 + $0x78] sm:$0xff]
      %v199 = vld [vmem:[%s172 + $0x80] sm:$0xff]
      %v200 = vld [vmem:[%s172 + $0x88] sm:$0xff]
      %v201 = vld [vmem:[%s172 + $0x90] sm:$0xff]
      %v202 = vld [vmem:[%s172 + $0x98] sm:$0xff]
      %v203 = vld [vmem:[%s172 + $0xa0] sm:$0xff]
      %v204 = vld [vmem:[%s172 + $0xa8] sm:$0xff]
      %v205 = vld [vmem:[%s172 + $0xb0] sm:$0xff]
      %v206 = vld [vmem:[%s172 + $0xb8] sm:$0xff]
      %v207 = vld [vmem:[%s172 + $0xc0] sm:$0xff]
      %v208 = vld [vmem:[%s172 + $0xc8] sm:$0xff]
      %v209 = vld [vmem:[%s172 + $0xd0] sm:$0xff]
      %v210 = vld [vmem:[%s172 + $0xd8] sm:$0xff]
      %v211 = vld [vmem:[%s172 + $0xe0] sm:$0xff]
      %v212 = vld [vmem:[%s172 + $0xe8] sm:$0xff]
      %v213 = vld [vmem:[%s172 + $0xf0] sm:$0xff]
      %v214 = vld [vmem:[%s172 + $0xf8] sm:$0xff]
      %vm215 = vcmask 64512
      %216 = vst.msk [vmem:[#allocation2] sm:$0xff] %vm215, 0.0
      %217 = vst.msk [vmem:[#allocation2 + $0x8] sm:$0xff] %vm215, 0.0
      %vm218 = vcmask 58368
      %219 = vst.msk [vmem:[#allocation2 + $0x10] sm:$0x3] %vm218, 0.0
      %s220 = scalar_lea.vmem [#allocation2], 408
      %221 = vst.msk [vmem:[%s220] sm:$0xff] %vm215, 0.0
      %222 = vst.msk [vmem:[%s220 + $0x8] sm:$0xff] %vm215, 0.0
      %223 = vst.msk [vmem:[%s220 + $0x10] sm:$0x3] %vm218, 0.0
      %vm224 = vcmask 57344
      %225 = vst.msk [vmem:[#allocation2] sm:$0x1] %vm224, 0.0
      %226 = vst.msk [vmem:[#allocation2 + $0x18] sm:$0x1] %vm224, 0.0
      %227 = vst.msk [vmem:[#allocation2 + $0x30] sm:$0x1] %vm224, 0.0
      %228 = vst.msk [vmem:[#allocation2 + $0x48] sm:$0x1] %vm224, 0.0
      %229 = vst.msk [vmem:[#allocation2 + $0x60] sm:$0x1] %vm224, 0.0
      %230 = vst.msk [vmem:[#allocation2 + $0x78] sm:$0x1] %vm224, 0.0
      %231 = vst.msk [vmem:[#allocation2 + $0x90] sm:$0x1] %vm224, 0.0
      %232 = vst.msk [vmem:[#allocation2 + $0xa8] sm:$0x1] %vm224, 0.0
      %233 = vst.msk [vmem:[#allocation2 + $0xc0] sm:$0x1] %vm224, 0.0
      %234 = vst.msk [vmem:[#allocation2 + $0xd8] sm:$0x1] %vm224, 0.0
      %235 = vst.msk [vmem:[#allocation2 + $0xf0] sm:$0x1] %vm224, 0.0
      %236 = vst.msk [vmem:[#allocation2 + $0x108] sm:$0x1] %vm224, 0.0
      %237 = vst.msk [vmem:[#allocation2 + $0x120] sm:$0x1] %vm224, 0.0
      %238 = vst.msk [vmem:[#allocation2 + $0x138] sm:$0x1] %vm224, 0.0
      %239 = vst.msk [vmem:[#allocation2 + $0x150] sm:$0x1] %vm224, 0.0
      %240 = vst.msk [vmem:[#allocation2 + $0x168] sm:$0x1] %vm224, 0.0
      %241 = vst.msk [vmem:[#allocation2 + $0x180] sm:$0x1] %vm224, 0.0
      %242 = vst.msk [vmem:[#allocation2 + $0x198] sm:$0x1] %vm224, 0.0
      %243 = vst.msk [vmem:[#allocation2 + $0x11] sm:$0x1] %vm224, 0.0
      %244 = vst.msk [vmem:[#allocation2 + $0x29] sm:$0x1] %vm224, 0.0
      %245 = vst.msk [vmem:[#allocation2 + $0x41] sm:$0x1] %vm224, 0.0
      %246 = vst.msk [vmem:[#allocation2 + $0x59] sm:$0x1] %vm224, 0.0
      %247 = vst.msk [vmem:[#allocation2 + $0x71] sm:$0x1] %vm224, 0.0
      %248 = vst.msk [vmem:[#allocation2 + $0x89] sm:$0x1] %vm224, 0.0
      %249 = vst.msk [vmem:[#allocation2 + $0xa1] sm:$0x1] %vm224, 0.0
      %250 = vst.msk [vmem:[#allocation2 + $0xb9] sm:$0x1] %vm224, 0.0
      %251 = vst.msk [vmem:[#allocation2 + $0xd1] sm:$0x1] %vm224, 0.0
      %252 = vst.msk [vmem:[#allocation2 + $0xe9] sm:$0x1] %vm224, 0.0
      %253 = vst.msk [vmem:[#allocation2 + $0x101] sm:$0x1] %vm224, 0.0
      %254 = vst.msk [vmem:[#allocation2 + $0x119] sm:$0x1] %vm224, 0.0
      %255 = vst.msk [vmem:[#allocation2 + $0x131] sm:$0x1] %vm224, 0.0
      %256 = vst.msk [vmem:[#allocation2 + $0x149] sm:$0x1] %vm224, 0.0
      %257 = vst.msk [vmem:[#allocation2 + $0x161] sm:$0x1] %vm224, 0.0
      %258 = vst.msk [vmem:[#allocation2 + $0x179] sm:$0x1] %vm224, 0.0
      %259 = vst.msk [vmem:[#allocation2 + $0x191] sm:$0x1] %vm224, 0.0
      %260 = vst.msk [vmem:[#allocation2 + $0x1a9] sm:$0x1] %vm224, 0.0
      %s261 = scalar_lea.vmem [#allocation2], 24
      %262 = vst.msk [vmem:[%s261 + $0x1] sm:$0xff] %vm215, %v183
      %263 = vst.msk [vmem:[%s261 + $0x9] sm:$0xff] %vm215, %v184
      %264 = vst.msk [vmem:[%s261 + $0x19] sm:$0xff] %vm215, %v185
      %265 = vst.msk [vmem:[%s261 + $0x21] sm:$0xff] %vm215, %v186
      %266 = vst.msk [vmem:[%s261 + $0x31] sm:$0xff] %vm215, %v187
      %267 = vst.msk [vmem:[%s261 + $0x39] sm:$0xff] %vm215, %v188
      %268 = vst.msk [vmem:[%s261 + $0x49] sm:$0xff] %vm215, %v189
      %269 = vst.msk [vmem:[%s261 + $0x51] sm:$0xff] %vm215, %v190
      %270 = vst.msk [vmem:[%s261 + $0x61] sm:$0xff] %vm215, %v191
      %271 = vst.msk [vmem:[%s261 + $0x69] sm:$0xff] %vm215, %v192
      %272 = vst.msk [vmem:[%s261 + $0x79] sm:$0xff] %vm215, %v193
      %273 = vst.msk [vmem:[%s261 + $0x81] sm:$0xff] %vm215, %v194
      %274 = vst.msk [vmem:[%s261 + $0x91] sm:$0xff] %vm215, %v195
      %275 = vst.msk [vmem:[%s261 + $0x99] sm:$0xff] %vm215, %v196
      %276 = vst.msk [vmem:[%s261 + $0xa9] sm:$0xff] %vm215, %v197
      %277 = vst.msk [vmem:[%s261 + $0xb1] sm:$0xff] %vm215, %v198
      %278 = vst.msk [vmem:[%s261 + $0xc1] sm:$0xff] %vm215, %v199
      %279 = vst.msk [vmem:[%s261 + $0xc9] sm:$0xff] %vm215, %v200
      %280 = vst.msk [vmem:[%s261 + $0xd9] sm:$0xff] %vm215, %v201
      %281 = vst.msk [vmem:[%s261 + $0xe1] sm:$0xff] %vm215, %v202
      %282 = vst.msk [vmem:[%s261 + $0xf1] sm:$0xff] %vm215, %v203
      %283 = vst.msk [vmem:[%s261 + $0xf9] sm:$0xff] %vm215, %v204
      %284 = vst.msk [vmem:[%s261 + $0x109] sm:$0xff] %vm215, %v205
      %285 = vst.msk [vmem:[%s261 + $0x111] sm:$0xff] %vm215, %v206
      %286 = vst.msk [vmem:[%s261 + $0x121] sm:$0xff] %vm215, %v207
      %287 = vst.msk [vmem:[%s261 + $0x129] sm:$0xff] %vm215, %v208
      %288 = vst.msk [vmem:[%s261 + $0x139] sm:$0xff] %vm215, %v209
      %289 = vst.msk [vmem:[%s261 + $0x141] sm:$0xff] %vm215, %v210
      %290 = vst.msk [vmem:[%s261 + $0x151] sm:$0xff] %vm215, %v211
      %291 = vst.msk [vmem:[%s261 + $0x159] sm:$0xff] %vm215, %v212
      %292 = vst.msk [vmem:[%s261 + $0x169] sm:$0xff] %vm215, %v213
      %293 = vst.msk [vmem:[%s261 + $0x171] sm:$0xff] %vm215, %v214
      %v294 = vld [vmem:[#allocation2] sm:$0xff]
      %v295 = vld [vmem:[#allocation2 + $0x8] sm:$0xff]
      %v296 = vld [vmem:[#allocation2 + $0x18] sm:$0xff]
      %v297 = vld [vmem:[#allocation2 + $0x20] sm:$0xff]
      %v298 = vld [vmem:[#allocation2 + $0x30] sm:$0xff]
      %v299 = vld [vmem:[#allocation2 + $0x38] sm:$0xff]
      %v300 = vld [vmem:[#allocation2 + $0x48] sm:$0xff]
      %v301 = vld [vmem:[#allocation2 + $0x50] sm:$0xff]
      %v302 = vld [vmem:[#allocation2 + $0x60] sm:$0xff]
      %v303 = vld [vmem:[#allocation2 + $0x68] sm:$0xff]
      %v304 = vld [vmem:[#allocation2 + $0x78] sm:$0xff]
      %v305 = vld [vmem:[#allocation2 + $0x80] sm:$0xff]
      %v306 = vld [vmem:[#allocation2 + $0x90] sm:$0xff]
      %v307 = vld [vmem:[#allocation2 + $0x98] sm:$0xff]
      %v308 = vld [vmem:[#allocation2 + $0xa8] sm:$0xff]
      %v309 = vld [vmem:[#allocation2 + $0xb0] sm:$0xff]
      %v310 = vld [vmem:[#allocation2 + $0xc0] sm:$0xff]
      %v311 = vld [vmem:[#allocation2 + $0xc8] sm:$0xff]
      %v312 = vld [vmem:[#allocation2 + $0xd8] sm:$0xff]
      %v313 = vld [vmem:[#allocation2 + $0xe0] sm:$0xff]
      %v314 = vld [vmem:[#allocation2 + $0xf0] sm:$0xff]
      %v315 = vld [vmem:[#allocation2 + $0xf8] sm:$0xff]
      %v316 = vld [vmem:[#allocation2 + $0x108] sm:$0xff]
      %v317 = vld [vmem:[#allocation2 + $0x110] sm:$0xff]
      %v318 = vld [vmem:[#allocation2 + $0x120] sm:$0xff]
      %v319 = vld [vmem:[#allocation2 + $0x128] sm:$0xff]
      %v320 = vld [vmem:[#allocation2 + $0x138] sm:$0xff]
      %v321 = vld [vmem:[#allocation2 + $0x140] sm:$0xff]
      %v322 = vld [vmem:[#allocation2 + $0x150] sm:$0xff]
      %v323 = vld [vmem:[#allocation2 + $0x158] sm:$0xff]
      %v324 = vld [vmem:[#allocation2 + $0x168] sm:$0xff]
      %v325 = vld [vmem:[#allocation2 + $0x170] sm:$0xff]
      %v326 = vpack.c.bf16 %v295, %v294
      %v327 = vpack.c.bf16 %v297, %v296
      %v328 = vpack.c.bf16 %v299, %v298
      %v329 = vpack.c.bf16 %v301, %v300
      %v330 = vpack.c.bf16 %v303, %v302
      %v331 = vpack.c.bf16 %v305, %v304
      %v332 = vpack.c.bf16 %v307, %v306
      %v333 = vpack.c.bf16 %v309, %v308
      %v334 = vpack.c.bf16 %v311, %v310
      %v335 = vpack.c.bf16 %v313, %v312
      %v336 = vpack.c.bf16 %v315, %v314
      %v337 = vpack.c.bf16 %v317, %v316
      %v338 = vpack.c.bf16 %v319, %v318
      %v339 = vpack.c.bf16 %v321, %v320
      %v340 = vpack.c.bf16 %v323, %v322
      %v341 = vpack.c.bf16 %v325, %v324
      %342 = vst.msk [vmem:[#allocation3] sm:$0xff] %vm215, %v326
      %343 = vst.msk [vmem:[#allocation3 + $0x8] sm:$0xff] %vm215, %v327
      %344 = vst.msk [vmem:[#allocation3 + $0x10] sm:$0xff] %vm215, %v328
      %345 = vst.msk [vmem:[#allocation3 + $0x18] sm:$0xff] %vm215, %v329
      %346 = vst.msk [vmem:[#allocation3 + $0x20] sm:$0xff] %vm215, %v330
      %347 = vst.msk [vmem:[#allocation3 + $0x28] sm:$0xff] %vm215, %v331
      %348 = vst.msk [vmem:[#allocation3 + $0x30] sm:$0xff] %vm215, %v332
      %349 = vst.msk [vmem:[#allocation3 + $0x38] sm:$0xff] %vm215, %v333
      %350 = vst.msk [vmem:[#allocation3 + $0x40] sm:$0xff] %vm215, %v334
      %351 = vst.msk [vmem:[#allocation3 + $0x48] sm:$0xff] %vm215, %v335
      %352 = vst.msk [vmem:[#allocation3 + $0x50] sm:$0xff] %vm215, %v336
      %353 = vst.msk [vmem:[#allocation3 + $0x58] sm:$0xff] %vm215, %v337
      %354 = vst.msk [vmem:[#allocation3 + $0x60] sm:$0xff] %vm215, %v338
      %355 = vst.msk [vmem:[#allocation3 + $0x68] sm:$0xff] %vm215, %v339
      %356 = vst.msk [vmem:[#allocation3 + $0x70] sm:$0xff] %vm215, %v340
      %357 = vst.msk [vmem:[#allocation3 + $0x78] sm:$0xff] %vm215, %v341
      %v358 = vld [vmem:[#allocation2 + $0x1] sm:$0xff]
      %v359 = vld [vmem:[#allocation2 + $0x9] sm:$0xff]
      %v360 = vld [vmem:[#allocation2 + $0x19] sm:$0xff]
      %v361 = vld [vmem:[#allocation2 + $0x21] sm:$0xff]
      %v362 = vld [vmem:[#allocation2 + $0x31] sm:$0xff]
      %v363 = vld [vmem:[#allocation2 + $0x39] sm:$0xff]
      %v364 = vld [vmem:[#allocation2 + $0x49] sm:$0xff]
      %v365 = vld [vmem:[#allocation2 + $0x51] sm:$0xff]
      %v366 = vld [vmem:[#allocation2 + $0x61] sm:$0xff]
      %v367 = vld [vmem:[#allocation2 + $0x69] sm:$0xff]
      %v368 = vld [vmem:[#allocation2 + $0x79] sm:$0xff]
      %v369 = vld [vmem:[#allocation2 + $0x81] sm:$0xff]
      %v370 = vld [vmem:[#allocation2 + $0x91] sm:$0xff]
      %v371 = vld [vmem:[#allocation2 + $0x99] sm:$0xff]
      %v372 = vld [vmem:[#allocation2 + $0xa9] sm:$0xff]
      %v373 = vld [vmem:[#allocation2 + $0xb1] sm:$0xff]
      %v374 = vld [vmem:[#allocation2 + $0xc1] sm:$0xff]
      %v375 = vld [vmem:[#allocation2 + $0xc9] sm:$0xff]
      %v376 = vld [vmem:[#allocation2 + $0xd9] sm:$0xff]
      %v377 = vld [vmem:[#allocation2 + $0xe1] sm:$0xff]
      %v378 = vld [vmem:[#allocation2 + $0xf1] sm:$0xff]
      %v379 = vld [vmem:[#allocation2 + $0xf9] sm:$0xff]
      %v380 = vld [vmem:[#allocation2 + $0x109] sm:$0xff]
      %v381 = vld [vmem:[#allocation2 + $0x111] sm:$0xff]
      %v382 = vld [vmem:[#allocation2 + $0x121] sm:$0xff]
      %v383 = vld [vmem:[#allocation2 + $0x129] sm:$0xff]
      %v384 = vld [vmem:[#allocation2 + $0x139] sm:$0xff]
      %v385 = vld [vmem:[#allocation2 + $0x141] sm:$0xff]
      %v386 = vld [vmem:[#allocation2 + $0x151] sm:$0xff]
      %v387 = vld [vmem:[#allocation2 + $0x159] sm:$0xff]
      %v388 = vld [vmem:[#allocation2 + $0x169] sm:$0xff]
      %v389 = vld [vmem:[#allocation2 + $0x171] sm:$0xff]
      %v390 = vpack.c.bf16 %v359, %v358
      %v391 = vpack.c.bf16 %v361, %v360
      %v392 = vpack.c.bf16 %v363, %v362
      %v393 = vpack.c.bf16 %v365, %v364
      %v394 = vpack.c.bf16 %v367, %v366
      %v395 = vpack.c.bf16 %v369, %v368
      %v396 = vpack.c.bf16 %v371, %v370
      %v397 = vpack.c.bf16 %v373, %v372
      %v398 = vpack.c.bf16 %v375, %v374
      %v399 = vpack.c.bf16 %v377, %v376
      %v400 = vpack.c.bf16 %v379, %v378
      %v401 = vpack.c.bf16 %v381, %v380
      %v402 = vpack.c.bf16 %v383, %v382
      %v403 = vpack.c.bf16 %v385, %v384
      %v404 = vpack.c.bf16 %v387, %v386
      %v405 = vpack.c.bf16 %v389, %v388
      %422 = vrot.lane.b32.xlu0 %v390, 8
      %v423 = vpop.permute.xlu0 %422
      %424 = vrot.lane.b32.xlu0 %v391, 8
      %v425 = vpop.permute.xlu0 %424
      %426 = vrot.lane.b32.xlu0 %v392, 8
      %v427 = vpop.permute.xlu0 %426
      %428 = vrot.lane.b32.xlu0 %v393, 8
      %v429 = vpop.permute.xlu0 %428
      %430 = vrot.lane.b32.xlu0 %v394, 8
      %v431 = vpop.permute.xlu0 %430
      %432 = vrot.lane.b32.xlu0 %v395, 8
      %v433 = vpop.permute.xlu0 %432
      %434 = vrot.lane.b32.xlu0 %v396, 8
      %v435 = vpop.permute.xlu0 %434
      %436 = vrot.lane.b32.xlu0 %v397, 8
      %v437 = vpop.permute.xlu0 %436
      %438 = vrot.lane.b32.xlu0 %v398, 8
      %v439 = vpop.permute.xlu0 %438
      %440 = vrot.lane.b32.xlu0 %v399, 8
      %v441 = vpop.permute.xlu0 %440
      %442 = vrot.lane.b32.xlu0 %v400, 8
      %v443 = vpop.permute.xlu0 %442
      %444 = vrot.lane.b32.xlu0 %v401, 8
      %v445 = vpop.permute.xlu0 %444
      %446 = vrot.lane.b32.xlu0 %v402, 8
      %v447 = vpop.permute.xlu0 %446
      %448 = vrot.lane.b32.xlu0 %v403, 8
      %v449 = vpop.permute.xlu0 %448
      %450 = vrot.lane.b32.xlu0 %v404, 8
      %v451 = vpop.permute.xlu0 %450
      %452 = vrot.lane.b32.xlu0 %v405, 8
      %v453 = vpop.permute.xlu0 %452
      %vm470 = vcmask 130112
      %471 = vst.msk [vmem:[#allocation3] sm:$0xff] %vm470, %v423
      %472 = vst.msk [vmem:[#allocation3 + $0x8] sm:$0xff] %vm470, %v425
      %473 = vst.msk [vmem:[#allocation3 + $0x10] sm:$0xff] %vm470, %v427
      %474 = vst.msk [vmem:[#allocation3 + $0x18] sm:$0xff] %vm470, %v429
      %475 = vst.msk [vmem:[#allocation3 + $0x20] sm:$0xff] %vm470, %v431
      %476 = vst.msk [vmem:[#allocation3 + $0x28] sm:$0xff] %vm470, %v433
      %477 = vst.msk [vmem:[#allocation3 + $0x30] sm:$0xff] %vm470, %v435
      %478 = vst.msk [vmem:[#allocation3 + $0x38] sm:$0xff] %vm470, %v437
      %479 = vst.msk [vmem:[#allocation3 + $0x40] sm:$0xff] %vm470, %v439
      %480 = vst.msk [vmem:[#allocation3 + $0x48] sm:$0xff] %vm470, %v441
      %481 = vst.msk [vmem:[#allocation3 + $0x50] sm:$0xff] %vm470, %v443
      %482 = vst.msk [vmem:[#allocation3 + $0x58] sm:$0xff] %vm470, %v445
      %483 = vst.msk [vmem:[#allocation3 + $0x60] sm:$0xff] %vm470, %v447
      %484 = vst.msk [vmem:[#allocation3 + $0x68] sm:$0xff] %vm470, %v449
      %485 = vst.msk [vmem:[#allocation3 + $0x70] sm:$0xff] %vm470, %v451
      %486 = vst.msk [vmem:[#allocation3 + $0x78] sm:$0xff] %vm470, %v453
      %v487 = vld [vmem:[#allocation2 + $0x2] sm:$0xff]
      %v488 = vld [vmem:[#allocation2 + $0xa] sm:$0xff]
      %v489 = vld [vmem:[#allocation2 + $0x1a] sm:$0xff]
      %v490 = vld [vmem:[#allocation2 + $0x22] sm:$0xff]
      %v491 = vld [vmem:[#allocation2 + $0x32] sm:$0xff]
      %v492 = vld [vmem:[#allocation2 + $0x3a] sm:$0xff]
      %v493 = vld [vmem:[#allocation2 + $0x4a] sm:$0xff]
      %v494 = vld [vmem:[#allocation2 + $0x52] sm:$0xff]
      %v495 = vld [vmem:[#allocation2 + $0x62] sm:$0xff]
      %v496 = vld [vmem:[#allocation2 + $0x6a] sm:$0xff]
      %v497 = vld [vmem:[#allocation2 + $0x7a] sm:$0xff]
      %v498 = vld [vmem:[#allocation2 + $0x82] sm:$0xff]
      %v499 = vld [vmem:[#allocation2 + $0x92] sm:$0xff]
      %v500 = vld [vmem:[#allocation2 + $0x9a] sm:$0xff]
      %v501 = vld [vmem:[#allocation2 + $0xaa] sm:$0xff]
      %v502 = vld [vmem:[#allocation2 + $0xb2] sm:$0xff]
      %v503 = vld [vmem:[#allocation2 + $0xc2] sm:$0xff]
      %v504 = vld [vmem:[#allocation2 + $0xca] sm:$0xff]
      %v505 = vld [vmem:[#allocation2 + $0xda] sm:$0xff]
      %v506 = vld [vmem:[#allocation2 + $0xe2] sm:$0xff]
      %v507 = vld [vmem:[#allocation2 + $0xf2] sm:$0xff]
      %v508 = vld [vmem:[#allocation2 + $0xfa] sm:$0xff]
      %v509 = vld [vmem:[#allocation2 + $0x10a] sm:$0xff]
      %v510 = vld [vmem:[#allocation2 + $0x112] sm:$0xff]
      %v511 = vld [vmem:[#allocation2 + $0x122] sm:$0xff]
      %v512 = vld [vmem:[#allocation2 + $0x12a] sm:$0xff]
      %v513 = vld [vmem:[#allocation2 + $0x13a] sm:$0xff]
      %v514 = vld [vmem:[#allocation2 + $0x142] sm:$0xff]
      %v515 = vld [vmem:[#allocation2 + $0x152] sm:$0xff]
      %v516 = vld [vmem:[#allocation2 + $0x15a] sm:$0xff]
      %v517 = vld [vmem:[#allocation2 + $0x16a] sm:$0xff]
      %v518 = vld [vmem:[#allocation2 + $0x172] sm:$0xff]
      %v519 = vpack.c.bf16 %v488, %v487
      %v520 = vpack.c.bf16 %v490, %v489
      %v521 = vpack.c.bf16 %v492, %v491
      %v522 = vpack.c.bf16 %v494, %v493
      %v523 = vpack.c.bf16 %v496, %v495
      %v524 = vpack.c.bf16 %v498, %v497
      %v525 = vpack.c.bf16 %v500, %v499
      %v526 = vpack.c.bf16 %v502, %v501
      %v527 = vpack.c.bf16 %v504, %v503
      %v528 = vpack.c.bf16 %v506, %v505
      %v529 = vpack.c.bf16 %v508, %v507
      %v530 = vpack.c.bf16 %v510, %v509
      %v531 = vpack.c.bf16 %v512, %v511
      %v532 = vpack.c.bf16 %v514, %v513
      %v533 = vpack.c.bf16 %v516, %v515
      %v534 = vpack.c.bf16 %v518, %v517
      %551 = vrot.lane.b32.xlu0 %v519, 16
      %v552 = vpop.permute.xlu0 %551
      %553 = vrot.lane.b32.xlu0 %v520, 16
      %v554 = vpop.permute.xlu0 %553
      %555 = vrot.lane.b32.xlu0 %v521, 16
      %v556 = vpop.permute.xlu0 %555
      %557 = vrot.lane.b32.xlu0 %v522, 16
      %v558 = vpop.permute.xlu0 %557
      %559 = vrot.lane.b32.xlu0 %v523, 16
      %v560 = vpop.permute.xlu0 %559
      %561 = vrot.lane.b32.xlu0 %v524, 16
      %v562 = vpop.permute.xlu0 %561
      %563 = vrot.lane.b32.xlu0 %v525, 16
      %v564 = vpop.permute.xlu0 %563
      %565 = vrot.lane.b32.xlu0 %v526, 16
      %v566 = vpop.permute.xlu0 %565
      %567 = vrot.lane.b32.xlu0 %v527, 16
      %v568 = vpop.permute.xlu0 %567
      %569 = vrot.lane.b32.xlu0 %v528, 16
      %v570 = vpop.permute.xlu0 %569
      %571 = vrot.lane.b32.xlu0 %v529, 16
      %v572 = vpop.permute.xlu0 %571
      %573 = vrot.lane.b32.xlu0 %v530, 16
      %v574 = vpop.permute.xlu0 %573
      %575 = vrot.lane.b32.xlu0 %v531, 16
      %v576 = vpop.permute.xlu0 %575
      %577 = vrot.lane.b32.xlu0 %v532, 16
      %v578 = vpop.permute.xlu0 %577
      %579 = vrot.lane.b32.xlu0 %v533, 16
      %v580 = vpop.permute.xlu0 %579
      %581 = vrot.lane.b32.xlu0 %v534, 16
      %v582 = vpop.permute.xlu0 %581
      %vm599 = vcmask 195712
      %600 = vst.msk [vmem:[#allocation3] sm:$0xff] %vm599, %v552
      %601 = vst.msk [vmem:[#allocation3 + $0x8] sm:$0xff] %vm599, %v554
      %602 = vst.msk [vmem:[#allocation3 + $0x10] sm:$0xff] %vm599, %v556
      %603 = vst.msk [vmem:[#allocation3 + $0x18] sm:$0xff] %vm599, %v558
      %604 = vst.msk [vmem:[#allocation3 + $0x20] sm:$0xff] %vm599, %v560
      %605 = vst.msk [vmem:[#allocation3 + $0x28] sm:$0xff] %vm599, %v562
      %606 = vst.msk [vmem:[#allocation3 + $0x30] sm:$0xff] %vm599, %v564
      %607 = vst.msk [vmem:[#allocation3 + $0x38] sm:$0xff] %vm599, %v566
      %608 = vst.msk [vmem:[#allocation3 + $0x40] sm:$0xff] %vm599, %v568
      %609 = vst.msk [vmem:[#allocation3 + $0x48] sm:$0xff] %vm599, %v570
      %610 = vst.msk [vmem:[#allocation3 + $0x50] sm:$0xff] %vm599, %v572
      %611 = vst.msk [vmem:[#allocation3 + $0x58] sm:$0xff] %vm599, %v574
      %612 = vst.msk [vmem:[#allocation3 + $0x60] sm:$0xff] %vm599, %v576
      %613 = vst.msk [vmem:[#allocation3 + $0x68] sm:$0xff] %vm599, %v578
      %614 = vst.msk [vmem:[#allocation3 + $0x70] sm:$0xff] %vm599, %v580
      %615 = vst.msk [vmem:[#allocation3 + $0x78] sm:$0xff] %vm599, %v582
      %v616 = vld [vmem:[%s261] sm:$0xff]
      %v617 = vld [vmem:[%s261 + $0x8] sm:$0xff]
      %v618 = vld [vmem:[%s261 + $0x18] sm:$0xff]
      %v619 = vld [vmem:[%s261 + $0x20] sm:$0xff]
      %v620 = vld [vmem:[%s261 + $0x30] sm:$0xff]
      %v621 = vld [vmem:[%s261 + $0x38] sm:$0xff]
      %v622 = vld [vmem:[%s261 + $0x48] sm:$0xff]
      %v623 = vld [vmem:[%s261 + $0x50] sm:$0xff]
      %v624 = vld [vmem:[%s261 + $0x60] sm:$0xff]
      %v625 = vld [vmem:[%s261 + $0x68] sm:$0xff]
      %v626 = vld [vmem:[%s261 + $0x78] sm:$0xff]
      %v627 = vld [vmem:[%s261 + $0x80] sm:$0xff]
      %v628 = vld [vmem:[%s261 + $0x90] sm:$0xff]
      %v629 = vld [vmem:[%s261 + $0x98] sm:$0xff]
      %v630 = vld [vmem:[%s261 + $0xa8] sm:$0xff]
      %v631 = vld [vmem:[%s261 + $0xb0] sm:$0xff]
      %v632 = vld [vmem:[%s261 + $0xc0] sm:$0xff]
      %v633 = vld [vmem:[%s261 + $0xc8] sm:$0xff]
      %v634 = vld [vmem:[%s261 + $0xd8] sm:$0xff]
      %v635 = vld [vmem:[%s261 + $0xe0] sm:$0xff]
      %v636 = vld [vmem:[%s261 + $0xf0] sm:$0xff]
      %v637 = vld [vmem:[%s261 + $0xf8] sm:$0xff]
      %v638 = vld [vmem:[%s261 + $0x108] sm:$0xff]
      %v639 = vld [vmem:[%s261 + $0x110] sm:$0xff]
      %v640 = vld [vmem:[%s261 + $0x120] sm:$0xff]
      %v641 = vld [vmem:[%s261 + $0x128] sm:$0xff]
      %v642 = vld [vmem:[%s261 + $0x138] sm:$0xff]
      %v643 = vld [vmem:[%s261 + $0x140] sm:$0xff]
      %v644 = vld [vmem:[%s261 + $0x150] sm:$0xff]
      %v645 = vld [vmem:[%s261 + $0x158] sm:$0xff]
      %v646 = vld [vmem:[%s261 + $0x168] sm:$0xff]
      %v647 = vld [vmem:[%s261 + $0x170] sm:$0xff]
      %v648 = vpack.c.bf16 %v617, %v616
      %v649 = vpack.c.bf16 %v619, %v618
      %v650 = vpack.c.bf16 %v621, %v620
      %v651 = vpack.c.bf16 %v623, %v622
      %v652 = vpack.c.bf16 %v625, %v624
      %v653 = vpack.c.bf16 %v627, %v626
      %v654 = vpack.c.bf16 %v629, %v628
      %v655 = vpack.c.bf16 %v631, %v630
      %v656 = vpack.c.bf16 %v633, %v632
      %v657 = vpack.c.bf16 %v635, %v634
      %v658 = vpack.c.bf16 %v637, %v636
      %v659 = vpack.c.bf16 %v639, %v638
      %v660 = vpack.c.bf16 %v641, %v640
      %v661 = vpack.c.bf16 %v643, %v642
      %v662 = vpack.c.bf16 %v645, %v644
      %v663 = vpack.c.bf16 %v647, %v646
      %680 = vrot.lane.b32.xlu0 %v648, 24
      %v681 = vpop.permute.xlu0 %680
      %682 = vrot.lane.b32.xlu0 %v649, 24
      %v683 = vpop.permute.xlu0 %682
      %684 = vrot.lane.b32.xlu0 %v650, 24
      %v685 = vpop.permute.xlu0 %684
      %686 = vrot.lane.b32.xlu0 %v651, 24
      %v687 = vpop.permute.xlu0 %686
      %688 = vrot.lane.b32.xlu0 %v652, 24
      %v689 = vpop.permute.xlu0 %688
      %690 = vrot.lane.b32.xlu0 %v653, 24
      %v691 = vpop.permute.xlu0 %690
      %692 = vrot.lane.b32.xlu0 %v654, 24
      %v693 = vpop.permute.xlu0 %692
      %694 = vrot.lane.b32.xlu0 %v655, 24
      %v695 = vpop.permute.xlu0 %694
      %696 = vrot.lane.b32.xlu0 %v656, 24
      %v697 = vpop.permute.xlu0 %696
      %698 = vrot.lane.b32.xlu0 %v657, 24
      %v699 = vpop.permute.xlu0 %698
      %700 = vrot.lane.b32.xlu0 %v658, 24
      %v701 = vpop.permute.xlu0 %700
      %702 = vrot.lane.b32.xlu0 %v659, 24
      %v703 = vpop.permute.xlu0 %702
      %704 = vrot.lane.b32.xlu0 %v660, 24
      %v705 = vpop.permute.xlu0 %704
      %706 = vrot.lane.b32.xlu0 %v661, 24
      %v707 = vpop.permute.xlu0 %706
      %708 = vrot.lane.b32.xlu0 %v662, 24
      %v709 = vpop.permute.xlu0 %708
      %710 = vrot.lane.b32.xlu0 %v663, 24
      %v711 = vpop.permute.xlu0 %710
      %vm728 = vcmask 261312
      %729 = vst.msk [vmem:[#allocation3] sm:$0xff] %vm728, %v681
      %730 = vst.msk [vmem:[#allocation3 + $0x8] sm:$0xff] %vm728, %v683
      %731 = vst.msk [vmem:[#allocation3 + $0x10] sm:$0xff] %vm728, %v685
      %732 = vst.msk [vmem:[#allocation3 + $0x18] sm:$0xff] %vm728, %v687
      %733 = vst.msk [vmem:[#allocation3 + $0x20] sm:$0xff] %vm728, %v689
      %734 = vst.msk [vmem:[#allocation3 + $0x28] sm:$0xff] %vm728, %v691
      %735 = vst.msk [vmem:[#allocation3 + $0x30] sm:$0xff] %vm728, %v693
      %736 = vst.msk [vmem:[#allocation3 + $0x38] sm:$0xff] %vm728, %v695
      %737 = vst.msk [vmem:[#allocation3 + $0x40] sm:$0xff] %vm728, %v697
      %738 = vst.msk [vmem:[#allocation3 + $0x48] sm:$0xff] %vm728, %v699
      %739 = vst.msk [vmem:[#allocation3 + $0x50] sm:$0xff] %vm728, %v701
      %740 = vst.msk [vmem:[#allocation3 + $0x58] sm:$0xff] %vm728, %v703
      %741 = vst.msk [vmem:[#allocation3 + $0x60] sm:$0xff] %vm728, %v705
      %742 = vst.msk [vmem:[#allocation3 + $0x68] sm:$0xff] %vm728, %v707
      %743 = vst.msk [vmem:[#allocation3 + $0x70] sm:$0xff] %vm728, %v709
      %744 = vst.msk [vmem:[#allocation3 + $0x78] sm:$0xff] %vm728, %v711
      %v745 = vld [vmem:[%s261 + $0x1] sm:$0xff]
      %v746 = vld [vmem:[%s261 + $0x9] sm:$0xff]
      %v747 = vld [vmem:[%s261 + $0x19] sm:$0xff]
      %v748 = vld [vmem:[%s261 + $0x21] sm:$0xff]
      %v749 = vld [vmem:[%s261 + $0x31] sm:$0xff]
      %v750 = vld [vmem:[%s261 + $0x39] sm:$0xff]
      %v751 = vld [vmem:[%s261 + $0x49] sm:$0xff]
      %v752 = vld [vmem:[%s261 + $0x51] sm:$0xff]
      %v753 = vld [vmem:[%s261 + $0x61] sm:$0xff]
      %v754 = vld [vmem:[%s261 + $0x69] sm:$0xff]
      %v755 = vld [vmem:[%s261 + $0x79] sm:$0xff]
      %v756 = vld [vmem:[%s261 + $0x81] sm:$0xff]
      %v757 = vld [vmem:[%s261 + $0x91] sm:$0xff]
      %v758 = vld [vmem:[%s261 + $0x99] sm:$0xff]
      %v759 = vld [vmem:[%s261 + $0xa9] sm:$0xff]
      %v760 = vld [vmem:[%s261 + $0xb1] sm:$0xff]
      %v761 = vld [vmem:[%s261 + $0xc1] sm:$0xff]
      %v762 = vld [vmem:[%s261 + $0xc9] sm:$0xff]
      %v763 = vld [vmem:[%s261 + $0xd9] sm:$0xff]
      %v764 = vld [vmem:[%s261 + $0xe1] sm:$0xff]
      %v765 = vld [vmem:[%s261 + $0xf1] sm:$0xff]
      %v766 = vld [vmem:[%s261 + $0xf9] sm:$0xff]
      %v767 = vld [vmem:[%s261 + $0x109] sm:$0xff]
      %v768 = vld [vmem:[%s261 + $0x111] sm:$0xff]
      %v769 = vld [vmem:[%s261 + $0x121] sm:$0xff]
      %v770 = vld [vmem:[%s261 + $0x129] sm:$0xff]
      %v771 = vld [vmem:[%s261 + $0x139] sm:$0xff]
      %v772 = vld [vmem:[%s261 + $0x141] sm:$0xff]
      %v773 = vld [vmem:[%s261 + $0x151] sm:$0xff]
      %v774 = vld [vmem:[%s261 + $0x159] sm:$0xff]
      %v775 = vld [vmem:[%s261 + $0x169] sm:$0xff]
      %v776 = vld [vmem:[%s261 + $0x171] sm:$0xff]
      %v777 = vpack.c.bf16 %v746, %v745
      %v778 = vpack.c.bf16 %v748, %v747
      %v779 = vpack.c.bf16 %v750, %v749
      %v780 = vpack.c.bf16 %v752, %v751
      %v781 = vpack.c.bf16 %v754, %v753
      %v782 = vpack.c.bf16 %v756, %v755
      %v783 = vpack.c.bf16 %v758, %v757
      %v784 = vpack.c.bf16 %v760, %v759
      %v785 = vpack.c.bf16 %v762, %v761
      %v786 = vpack.c.bf16 %v764, %v763
      %v787 = vpack.c.bf16 %v766, %v765
      %v788 = vpack.c.bf16 %v768, %v767
      %v789 = vpack.c.bf16 %v770, %v769
      %v790 = vpack.c.bf16 %v772, %v771
      %v791 = vpack.c.bf16 %v774, %v773
      %v792 = vpack.c.bf16 %v776, %v775
      %809 = vrot.lane.b32.xlu0 %v777, 32
      %v810 = vpop.permute.xlu0 %809
      %811 = vrot.lane.b32.xlu0 %v778, 32
      %v812 = vpop.permute.xlu0 %811
      %813 = vrot.lane.b32.xlu0 %v779, 32
      %v814 = vpop.permute.xlu0 %813
      %815 = vrot.lane.b32.xlu0 %v780, 32
      %v816 = vpop.permute.xlu0 %815
      %817 = vrot.lane.b32.xlu0 %v781, 32
      %v818 = vpop.permute.xlu0 %817
      %819 = vrot.lane.b32.xlu0 %v782, 32
      %v820 = vpop.permute.xlu0 %819
      %821 = vrot.lane.b32.xlu0 %v783, 32
      %v822 = vpop.permute.xlu0 %821
      %823 = vrot.lane.b32.xlu0 %v784, 32
      %v824 = vpop.permute.xlu0 %823
      %825 = vrot.lane.b32.xlu0 %v785, 32
      %v826 = vpop.permute.xlu0 %825
      %827 = vrot.lane.b32.xlu0 %v786, 32
      %v828 = vpop.permute.xlu0 %827
      %829 = vrot.lane.b32.xlu0 %v787, 32
      %v830 = vpop.permute.xlu0 %829
      %831 = vrot.lane.b32.xlu0 %v788, 32
      %v832 = vpop.permute.xlu0 %831
      %833 = vrot.lane.b32.xlu0 %v789, 32
      %v834 = vpop.permute.xlu0 %833
      %835 = vrot.lane.b32.xlu0 %v790, 32
      %v836 = vpop.permute.xlu0 %835
      %837 = vrot.lane.b32.xlu0 %v791, 32
      %v838 = vpop.permute.xlu0 %837
      %839 = vrot.lane.b32.xlu0 %v792, 32
      %v840 = vpop.permute.xlu0 %839
      %vm857 = vcmask 326912
      %858 = vst.msk [vmem:[#allocation3] sm:$0xff] %vm857, %v810
      %859 = vst.msk [vmem:[#allocation3 + $0x8] sm:$0xff] %vm857, %v812
      %860 = vst.msk [vmem:[#allocation3 + $0x10] sm:$0xff] %vm857, %v814
      %861 = vst.msk [vmem:[#allocation3 + $0x18] sm:$0xff] %vm857, %v816
      %862 = vst.msk [vmem:[#allocation3 + $0x20] sm:$0xff] %vm857, %v818
      %863 = vst.msk [vmem:[#allocation3 + $0x28] sm:$0xff] %vm857, %v820
      %864 = vst.msk [vmem:[#allocation3 + $0x30] sm:$0xff] %vm857, %v822
      %865 = vst.msk [vmem:[#allocation3 + $0x38] sm:$0xff] %vm857, %v824
      %866 = vst.msk [vmem:[#allocation3 + $0x40] sm:$0xff] %vm857, %v826
      %867 = vst.msk [vmem:[#allocation3 + $0x48] sm:$0xff] %vm857, %v828
      %868 = vst.msk [vmem:[#allocation3 + $0x50] sm:$0xff] %vm857, %v830
      %869 = vst.msk [vmem:[#allocation3 + $0x58] sm:$0xff] %vm857, %v832
      %870 = vst.msk [vmem:[#allocation3 + $0x60] sm:$0xff] %vm857, %v834
      %871 = vst.msk [vmem:[#allocation3 + $0x68] sm:$0xff] %vm857, %v836
      %872 = vst.msk [vmem:[#allocation3 + $0x70] sm:$0xff] %vm857, %v838
      %873 = vst.msk [vmem:[#allocation3 + $0x78] sm:$0xff] %vm857, %v840
      %v874 = vld [vmem:[%s261 + $0x2] sm:$0xff]
      %v875 = vld [vmem:[%s261 + $0xa] sm:$0xff]
      %v876 = vld [vmem:[%s261 + $0x1a] sm:$0xff]
      %v877 = vld [vmem:[%s261 + $0x22] sm:$0xff]
      %v878 = vld [vmem:[%s261 + $0x32] sm:$0xff]
      %v879 = vld [vmem:[%s261 + $0x3a] sm:$0xff]
      %v880 = vld [vmem:[%s261 + $0x4a] sm:$0xff]
      %v881 = vld [vmem:[%s261 + $0x52] sm:$0xff]
      %v882 = vld [vmem:[%s261 + $0x62] sm:$0xff]
      %v883 = vld [vmem:[%s261 + $0x6a] sm:$0xff]
      %v884 = vld [vmem:[%s261 + $0x7a] sm:$0xff]
      %v885 = vld [vmem:[%s261 + $0x82] sm:$0xff]
      %v886 = vld [vmem:[%s261 + $0x92] sm:$0xff]
      %v887 = vld [vmem:[%s261 + $0x9a] sm:$0xff]
      %v888 = vld [vmem:[%s261 + $0xaa] sm:$0xff]
      %v889 = vld [vmem:[%s261 + $0xb2] sm:$0xff]
      %v890 = vld [vmem:[%s261 + $0xc2] sm:$0xff]
      %v891 = vld [vmem:[%s261 + $0xca] sm:$0xff]
      %v892 = vld [vmem:[%s261 + $0xda] sm:$0xff]
      %v893 = vld [vmem:[%s261 + $0xe2] sm:$0xff]
      %v894 = vld [vmem:[%s261 + $0xf2] sm:$0xff]
      %v895 = vld [vmem:[%s261 + $0xfa] sm:$0xff]
      %v896 = vld [vmem:[%s261 + $0x10a] sm:$0xff]
      %v897 = vld [vmem:[%s261 + $0x112] sm:$0xff]
      %v898 = vld [vmem:[%s261 + $0x122] sm:$0xff]
      %v899 = vld [vmem:[%s261 + $0x12a] sm:$0xff]
      %v900 = vld [vmem:[%s261 + $0x13a] sm:$0xff]
      %v901 = vld [vmem:[%s261 + $0x142] sm:$0xff]
      %v902 = vld [vmem:[%s261 + $0x152] sm:$0xff]
      %v903 = vld [vmem:[%s261 + $0x15a] sm:$0xff]
      %v904 = vld [vmem:[%s261 + $0x16a] sm:$0xff]
      %v905 = vld [vmem:[%s261 + $0x172] sm:$0xff]
      %v906 = vpack.c.bf16 %v875, %v874
      %v907 = vpack.c.bf16 %v877, %v876
      %v908 = vpack.c.bf16 %v879, %v878
      %v909 = vpack.c.bf16 %v881, %v880
      %v910 = vpack.c.bf16 %v883, %v882
      %v911 = vpack.c.bf16 %v885, %v884
      %v912 = vpack.c.bf16 %v887, %v886
      %v913 = vpack.c.bf16 %v889, %v888
      %v914 = vpack.c.bf16 %v891, %v890
      %v915 = vpack.c.bf16 %v893, %v892
      %v916 = vpack.c.bf16 %v895, %v894
      %v917 = vpack.c.bf16 %v897, %v896
      %v918 = vpack.c.bf16 %v899, %v898
      %v919 = vpack.c.bf16 %v901, %v900
      %v920 = vpack.c.bf16 %v903, %v902
      %v921 = vpack.c.bf16 %v905, %v904
      %938 = vrot.lane.b32.xlu0 %v906, 40
      %v939 = vpop.permute.xlu0 %938
      %940 = vrot.lane.b32.xlu0 %v907, 40
      %v941 = vpop.permute.xlu0 %940
      %942 = vrot.lane.b32.xlu0 %v908, 40
      %v943 = vpop.permute.xlu0 %942
      %944 = vrot.lane.b32.xlu0 %v909, 40
      %v945 = vpop.permute.xlu0 %944
      %946 = vrot.lane.b32.xlu0 %v910, 40
      %v947 = vpop.permute.xlu0 %946
      %948 = vrot.lane.b32.xlu0 %v911, 40
      %v949 = vpop.permute.xlu0 %948
      %950 = vrot.lane.b32.xlu0 %v912, 40
      %v951 = vpop.permute.xlu0 %950
      %952 = vrot.lane.b32.xlu0 %v913, 40
      %v953 = vpop.permute.xlu0 %952
      %954 = vrot.lane.b32.xlu0 %v914, 40
      %v955 = vpop.permute.xlu0 %954
      %956 = vrot.lane.b32.xlu0 %v915, 40
      %v957 = vpop.permute.xlu0 %956
      %958 = vrot.lane.b32.xlu0 %v916, 40
      %v959 = vpop.permute.xlu0 %958
      %960 = vrot.lane.b32.xlu0 %v917, 40
      %v961 = vpop.permute.xlu0 %960
      %962 = vrot.lane.b32.xlu0 %v918, 40
      %v963 = vpop.permute.xlu0 %962
      %964 = vrot.lane.b32.xlu0 %v919, 40
      %v965 = vpop.permute.xlu0 %964
      %966 = vrot.lane.b32.xlu0 %v920, 40
      %v967 = vpop.permute.xlu0 %966
      %968 = vrot.lane.b32.xlu0 %v921, 40
      %v969 = vpop.permute.xlu0 %968
      %vm986 = vcmask 392512
      %987 = vst.msk [vmem:[#allocation3] sm:$0xff] %vm986, %v939
      %988 = vst.msk [vmem:[#allocation3 + $0x8] sm:$0xff] %vm986, %v941
      %989 = vst.msk [vmem:[#allocation3 + $0x10] sm:$0xff] %vm986, %v943
      %990 = vst.msk [vmem:[#allocation3 + $0x18] sm:$0xff] %vm986, %v945
      %991 = vst.msk [vmem:[#allocation3 + $0x20] sm:$0xff] %vm986, %v947
      %992 = vst.msk [vmem:[#allocation3 + $0x28] sm:$0xff] %vm986, %v949
      %993 = vst.msk [vmem:[#allocation3 + $0x30] sm:$0xff] %vm986, %v951
      %994 = vst.msk [vmem:[#allocation3 + $0x38] sm:$0xff] %vm986, %v953
      %995 = vst.msk [vmem:[#allocation3 + $0x40] sm:$0xff] %vm986, %v955
      %996 = vst.msk [vmem:[#allocation3 + $0x48] sm:$0xff] %vm986, %v957
      %997 = vst.msk [vmem:[#allocation3 + $0x50] sm:$0xff] %vm986, %v959
      %998 = vst.msk [vmem:[#allocation3 + $0x58] sm:$0xff] %vm986, %v961
      %999 = vst.msk [vmem:[#allocation3 + $0x60] sm:$0xff] %vm986, %v963
      %1000 = vst.msk [vmem:[#allocation3 + $0x68] sm:$0xff] %vm986, %v965
      %1001 = vst.msk [vmem:[#allocation3 + $0x70] sm:$0xff] %vm986, %v967
      %1002 = vst.msk [vmem:[#allocation3 + $0x78] sm:$0xff] %vm986, %v969
      %s1003 = scalar_lea.vmem [#allocation2], 48
      %v1004 = vld [vmem:[%s1003] sm:$0xff]
      %v1005 = vld [vmem:[%s1003 + $0x8] sm:$0xff]
      %v1006 = vld [vmem:[%s1003 + $0x18] sm:$0xff]
      %v1007 = vld [vmem:[%s1003 + $0x20] sm:$0xff]
      %v1008 = vld [vmem:[%s1003 + $0x30] sm:$0xff]
      %v1009 = vld [vmem:[%s1003 + $0x38] sm:$0xff]
      %v1010 = vld [vmem:[%s1003 + $0x48] sm:$0xff]
      %v1011 = vld [vmem:[%s1003 + $0x50] sm:$0xff]
      %v1012 = vld [vmem:[%s1003 + $0x60] sm:$0xff]
      %v1013 = vld [vmem:[%s1003 + $0x68] sm:$0xff]
      %v1014 = vld [vmem:[%s1003 + $0x78] sm:$0xff]
      %v1015 = vld [vmem:[%s1003 + $0x80] sm:$0xff]
      %v1016 = vld [vmem:[%s1003 + $0x90] sm:$0xff]
      %v1017 = vld [vmem:[%s1003 + $0x98] sm:$0xff]
      %v1018 = vld [vmem:[%s1003 + $0xa8] sm:$0xff]
      %v1019 = vld [vmem:[%s1003 + $0xb0] sm:$0xff]
      %v1020 = vld [vmem:[%s1003 + $0xc0] sm:$0xff]
      %v1021 = vld [vmem:[%s1003 + $0xc8] sm:$0xff]
      %v1022 = vld [vmem:[%s1003 + $0xd8] sm:$0xff]
      %v1023 = vld [vmem:[%s1003 + $0xe0] sm:$0xff]
      %v1024 = vld [vmem:[%s1003 + $0xf0] sm:$0xff]
      %v1025 = vld [vmem:[%s1003 + $0xf8] sm:$0xff]
      %v1026 = vld [vmem:[%s1003 + $0x108] sm:$0xff]
      %v1027 = vld [vmem:[%s1003 + $0x110] sm:$0xff]
      %v1028 = vld [vmem:[%s1003 + $0x120] sm:$0xff]
      %v1029 = vld [vmem:[%s1003 + $0x128] sm:$0xff]
      %v1030 = vld [vmem:[%s1003 + $0x138] sm:$0xff]
      %v1031 = vld [vmem:[%s1003 + $0x140] sm:$0xff]
      %v1032 = vld [vmem:[%s1003 + $0x150] sm:$0xff]
      %v1033 = vld [vmem:[%s1003 + $0x158] sm:$0xff]
      %v1034 = vld [vmem:[%s1003 + $0x168] sm:$0xff]
      %v1035 = vld [vmem:[%s1003 + $0x170] sm:$0xff]
      %v1036 = vpack.c.bf16 %v1005, %v1004
      %v1037 = vpack.c.bf16 %v1007, %v1006
      %v1038 = vpack.c.bf16 %v1009, %v1008
      %v1039 = vpack.c.bf16 %v1011, %v1010
      %v1040 = vpack.c.bf16 %v1013, %v1012
      %v1041 = vpack.c.bf16 %v1015, %v1014
      %v1042 = vpack.c.bf16 %v1017, %v1016
      %v1043 = vpack.c.bf16 %v1019, %v1018
      %v1044 = vpack.c.bf16 %v1021, %v1020
      %v1045 = vpack.c.bf16 %v1023, %v1022
      %v1046 = vpack.c.bf16 %v1025, %v1024
      %v1047 = vpack.c.bf16 %v1027, %v1026
      %v1048 = vpack.c.bf16 %v1029, %v1028
      %v1049 = vpack.c.bf16 %v1031, %v1030
      %v1050 = vpack.c.bf16 %v1033, %v1032
      %v1051 = vpack.c.bf16 %v1035, %v1034
      %1068 = vrot.lane.b32.xlu0 %v1036, 48
      %v1069 = vpop.permute.xlu0 %1068
      %1070 = vrot.lane.b32.xlu0 %v1037, 48
      %v1071 = vpop.permute.xlu0 %1070
      %1072 = vrot.lane.b32.xlu0 %v1038, 48
      %v1073 = vpop.permute.xlu0 %1072
      %1074 = vrot.lane.b32.xlu0 %v1039, 48
      %v1075 = vpop.permute.xlu0 %1074
      %1076 = vrot.lane.b32.xlu0 %v1040, 48
      %v1077 = vpop.permute.xlu0 %1076
      %1078 = vrot.lane.b32.xlu0 %v1041, 48
      %v1079 = vpop.permute.xlu0 %1078
      %1080 = vrot.lane.b32.xlu0 %v1042, 48
      %v1081 = vpop.permute.xlu0 %1080
      %1082 = vrot.lane.b32.xlu0 %v1043, 48
      %v1083 = vpop.permute.xlu0 %1082
      %1084 = vrot.lane.b32.xlu0 %v1044, 48
      %v1085 = vpop.permute.xlu0 %1084
      %1086 = vrot.lane.b32.xlu0 %v1045, 48
      %v1087 = vpop.permute.xlu0 %1086
      %1088 = vrot.lane.b32.xlu0 %v1046, 48
      %v1089 = vpop.permute.xlu0 %1088
      %1090 = vrot.lane.b32.xlu0 %v1047, 48
      %v1091 = vpop.permute.xlu0 %1090
      %1092 = vrot.lane.b32.xlu0 %v1048, 48
      %v1093 = vpop.permute.xlu0 %1092
      %1094 = vrot.lane.b32.xlu0 %v1049, 48
      %v1095 = vpop.permute.xlu0 %1094
      %1096 = vrot.lane.b32.xlu0 %v1050, 48
      %v1097 = vpop.permute.xlu0 %1096
      %1098 = vrot.lane.b32.xlu0 %v1051, 48
      %v1099 = vpop.permute.xlu0 %1098
      %vm1116 = vcmask 458112
      %1117 = vst.msk [vmem:[#allocation3] sm:$0xff] %vm1116, %v1069
      %1118 = vst.msk [vmem:[#allocation3 + $0x8] sm:$0xff] %vm1116, %v1071
      %1119 = vst.msk [vmem:[#allocation3 + $0x10] sm:$0xff] %vm1116, %v1073
      %1120 = vst.msk [vmem:[#allocation3 + $0x18] sm:$0xff] %vm1116, %v1075
      %1121 = vst.msk [vmem:[#allocation3 + $0x20] sm:$0xff] %vm1116, %v1077
      %1122 = vst.msk [vmem:[#allocation3 + $0x28] sm:$0xff] %vm1116, %v1079
      %1123 = vst.msk [vmem:[#allocation3 + $0x30] sm:$0xff] %vm1116, %v1081
      %1124 = vst.msk [vmem:[#allocation3 + $0x38] sm:$0xff] %vm1116, %v1083
      %1125 = vst.msk [vmem:[#allocation3 + $0x40] sm:$0xff] %vm1116, %v1085
      %1126 = vst.msk [vmem:[#allocation3 + $0x48] sm:$0xff] %vm1116, %v1087
      %1127 = vst.msk [vmem:[#allocation3 + $0x50] sm:$0xff] %vm1116, %v1089
      %1128 = vst.msk [vmem:[#allocation3 + $0x58] sm:$0xff] %vm1116, %v1091
      %1129 = vst.msk [vmem:[#allocation3 + $0x60] sm:$0xff] %vm1116, %v1093
      %1130 = vst.msk [vmem:[#allocation3 + $0x68] sm:$0xff] %vm1116, %v1095
      %1131 = vst.msk [vmem:[#allocation3 + $0x70] sm:$0xff] %vm1116, %v1097
      %1132 = vst.msk [vmem:[#allocation3 + $0x78] sm:$0xff] %vm1116, %v1099
      %v1133 = vld [vmem:[%s1003 + $0x1] sm:$0xff]
      %v1134 = vld [vmem:[%s1003 + $0x9] sm:$0xff]
      %v1135 = vld [vmem:[%s1003 + $0x19] sm:$0xff]
      %v1136 = vld [vmem:[%s1003 + $0x21] sm:$0xff]
      %v1137 = vld [vmem:[%s1003 + $0x31] sm:$0xff]
      %v1138 = vld [vmem:[%s1003 + $0x39] sm:$0xff]
      %v1139 = vld [vmem:[%s1003 + $0x49] sm:$0xff]
      %v1140 = vld [vmem:[%s1003 + $0x51] sm:$0xff]
      %v1141 = vld [vmem:[%s1003 + $0x61] sm:$0xff]
      %v1142 = vld [vmem:[%s1003 + $0x69] sm:$0xff]
      %v1143 = vld [vmem:[%s1003 + $0x79] sm:$0xff]
      %v1144 = vld [vmem:[%s1003 + $0x81] sm:$0xff]
      %v1145 = vld [vmem:[%s1003 + $0x91] sm:$0xff]
      %v1146 = vld [vmem:[%s1003 + $0x99] sm:$0xff]
      %v1147 = vld [vmem:[%s1003 + $0xa9] sm:$0xff]
      %v1148 = vld [vmem:[%s1003 + $0xb1] sm:$0xff]
      %v1149 = vld [vmem:[%s1003 + $0xc1] sm:$0xff]
      %v1150 = vld [vmem:[%s1003 + $0xc9] sm:$0xff]
      %v1151 = vld [vmem:[%s1003 + $0xd9] sm:$0xff]
      %v1152 = vld [vmem:[%s1003 + $0xe1] sm:$0xff]
      %v1153 = vld [vmem:[%s1003 + $0xf1] sm:$0xff]
      %v1154 = vld [vmem:[%s1003 + $0xf9] sm:$0xff]
      %v1155 = vld [vmem:[%s1003 + $0x109] sm:$0xff]
      %v1156 = vld [vmem:[%s1003 + $0x111] sm:$0xff]
      %v1157 = vld [vmem:[%s1003 + $0x121] sm:$0xff]
      %v1158 = vld [vmem:[%s1003 + $0x129] sm:$0xff]
      %v1159 = vld [vmem:[%s1003 + $0x139] sm:$0xff]
      %v1160 = vld [vmem:[%s1003 + $0x141] sm:$0xff]
      %v1161 = vld [vmem:[%s1003 + $0x151] sm:$0xff]
      %v1162 = vld [vmem:[%s1003 + $0x159] sm:$0xff]
      %v1163 = vld [vmem:[%s1003 + $0x169] sm:$0xff]
      %v1164 = vld [vmem:[%s1003 + $0x171] sm:$0xff]
      %v1165 = vpack.c.bf16 %v1134, %v1133
      %v1166 = vpack.c.bf16 %v1136, %v1135
      %v1167 = vpack.c.bf16 %v1138, %v1137
      %v1168 = vpack.c.bf16 %v1140, %v1139
      %v1169 = vpack.c.bf16 %v1142, %v1141
      %v1170 = vpack.c.bf16 %v1144, %v1143
      %v1171 = vpack.c.bf16 %v1146, %v1145
      %v1172 = vpack.c.bf16 %v1148, %v1147
      %v1173 = vpack.c.bf16 %v1150, %v1149
      %v1174 = vpack.c.bf16 %v1152, %v1151
      %v1175 = vpack.c.bf16 %v1154, %v1153
      %v1176 = vpack.c.bf16 %v1156, %v1155
      %v1177 = vpack.c.bf16 %v1158, %v1157
      %v1178 = vpack.c.bf16 %v1160, %v1159
      %v1179 = vpack.c.bf16 %v1162, %v1161
      %v1180 = vpack.c.bf16 %v1164, %v1163
      %1197 = vrot.lane.b32.xlu0 %v1165, 56
      %v1198 = vpop.permute.xlu0 %1197
      %1199 = vrot.lane.b32.xlu0 %v1166, 56
      %v1200 = vpop.permute.xlu0 %1199
      %1201 = vrot.lane.b32.xlu0 %v1167, 56
      %v1202 = vpop.permute.xlu0 %1201
      %1203 = vrot.lane.b32.xlu0 %v1168, 56
      %v1204 = vpop.permute.xlu0 %1203
      %1205 = vrot.lane.b32.xlu0 %v1169, 56
      %v1206 = vpop.permute.xlu0 %1205
      %1207 = vrot.lane.b32.xlu0 %v1170, 56
      %v1208 = vpop.permute.xlu0 %1207
      %1209 = vrot.lane.b32.xlu0 %v1171, 56
      %v1210 = vpop.permute.xlu0 %1209
      %1211 = vrot.lane.b32.xlu0 %v1172, 56
      %v1212 = vpop.permute.xlu0 %1211
      %1213 = vrot.lane.b32.xlu0 %v1173, 56
      %v1214 = vpop.permute.xlu0 %1213
      %1215 = vrot.lane.b32.xlu0 %v1174, 56
      %v1216 = vpop.permute.xlu0 %1215
      %1217 = vrot.lane.b32.xlu0 %v1175, 56
      %v1218 = vpop.permute.xlu0 %1217
      %1219 = vrot.lane.b32.xlu0 %v1176, 56
      %v1220 = vpop.permute.xlu0 %1219
      %1221 = vrot.lane.b32.xlu0 %v1177, 56
      %v1222 = vpop.permute.xlu0 %1221
      %1223 = vrot.lane.b32.xlu0 %v1178, 56
      %v1224 = vpop.permute.xlu0 %1223
      %1225 = vrot.lane.b32.xlu0 %v1179, 56
      %v1226 = vpop.permute.xlu0 %1225
      %1227 = vrot.lane.b32.xlu0 %v1180, 56
      %v1228 = vpop.permute.xlu0 %1227
      %vm1245 = vcmask 523712
      %1246 = vst.msk [vmem:[#allocation3] sm:$0xff] %vm1245, %v1198
      %1247 = vst.msk [vmem:[#allocation3 + $0x8] sm:$0xff] %vm1245, %v1200
      %1248 = vst.msk [vmem:[#allocation3 + $0x10] sm:$0xff] %vm1245, %v1202
      %1249 = vst.msk [vmem:[#allocation3 + $0x18] sm:$0xff] %vm1245, %v1204
      %1250 = vst.msk [vmem:[#allocation3 + $0x20] sm:$0xff] %vm1245, %v1206
      %1251 = vst.msk [vmem:[#allocation3 + $0x28] sm:$0xff] %vm1245, %v1208
      %1252 = vst.msk [vmem:[#allocation3 + $0x30] sm:$0xff] %vm1245, %v1210
      %1253 = vst.msk [vmem:[#allocation3 + $0x38] sm:$0xff] %vm1245, %v1212
      %1254 = vst.msk [vmem:[#allocation3 + $0x40] sm:$0xff] %vm1245, %v1214
      %1255 = vst.msk [vmem:[#allocation3 + $0x48] sm:$0xff] %vm1245, %v1216
      %1256 = vst.msk [vmem:[#allocation3 + $0x50] sm:$0xff] %vm1245, %v1218
      %1257 = vst.msk [vmem:[#allocation3 + $0x58] sm:$0xff] %vm1245, %v1220
      %1258 = vst.msk [vmem:[#allocation3 + $0x60] sm:$0xff] %vm1245, %v1222
      %1259 = vst.msk [vmem:[#allocation3 + $0x68] sm:$0xff] %vm1245, %v1224
      %1260 = vst.msk [vmem:[#allocation3 + $0x70] sm:$0xff] %vm1245, %v1226
      %1261 = vst.msk [vmem:[#allocation3 + $0x78] sm:$0xff] %vm1245, %v1228
      %v1262 = vld [vmem:[%s1003 + $0x2] sm:$0xff]
      %v1263 = vld [vmem:[%s1003 + $0xa] sm:$0xff]
      %v1264 = vld [vmem:[%s1003 + $0x1a] sm:$0xff]
      %v1265 = vld [vmem:[%s1003 + $0x22] sm:$0xff]
      %v1266 = vld [vmem:[%s1003 + $0x32] sm:$0xff]
      %v1267 = vld [vmem:[%s1003 + $0x3a] sm:$0xff]
      %v1268 = vld [vmem:[%s1003 + $0x4a] sm:$0xff]
      %v1269 = vld [vmem:[%s1003 + $0x52] sm:$0xff]
      %v1270 = vld [vmem:[%s1003 + $0x62] sm:$0xff]
      %v1271 = vld [vmem:[%s1003 + $0x6a] sm:$0xff]
      %v1272 = vld [vmem:[%s1003 + $0x7a] sm:$0xff]
      %v1273 = vld [vmem:[%s1003 + $0x82] sm:$0xff]
      %v1274 = vld [vmem:[%s1003 + $0x92] sm:$0xff]
      %v1275 = vld [vmem:[%s1003 + $0x9a] sm:$0xff]
      %v1276 = vld [vmem:[%s1003 + $0xaa] sm:$0xff]
      %v1277 = vld [vmem:[%s1003 + $0xb2] sm:$0xff]
      %v1278 = vld [vmem:[%s1003 + $0xc2] sm:$0xff]
      %v1279 = vld [vmem:[%s1003 + $0xca] sm:$0xff]
      %v1280 = vld [vmem:[%s1003 + $0xda] sm:$0xff]
      %v1281 = vld [vmem:[%s1003 + $0xe2] sm:$0xff]
      %v1282 = vld [vmem:[%s1003 + $0xf2] sm:$0xff]
      %v1283 = vld [vmem:[%s1003 + $0xfa] sm:$0xff]
      %v1284 = vld [vmem:[%s1003 + $0x10a] sm:$0xff]
      %v1285 = vld [vmem:[%s1003 + $0x112] sm:$0xff]
      %v1286 = vld [vmem:[%s1003 + $0x122] sm:$0xff]
      %v1287 = vld [vmem:[%s1003 + $0x12a] sm:$0xff]
      %v1288 = vld [vmem:[%s1003 + $0x13a] sm:$0xff]
      %v1289 = vld [vmem:[%s1003 + $0x142] sm:$0xff]
      %v1290 = vld [vmem:[%s1003 + $0x152] sm:$0xff]
      %v1291 = vld [vmem:[%s1003 + $0x15a] sm:$0xff]
      %v1292 = vld [vmem:[%s1003 + $0x16a] sm:$0xff]
      %v1293 = vld [vmem:[%s1003 + $0x172] sm:$0xff]
      %v1294 = vpack.c.bf16 %v1263, %v1262
      %v1295 = vpack.c.bf16 %v1265, %v1264
      %v1296 = vpack.c.bf16 %v1267, %v1266
      %v1297 = vpack.c.bf16 %v1269, %v1268
      %v1298 = vpack.c.bf16 %v1271, %v1270
      %v1299 = vpack.c.bf16 %v1273, %v1272
      %v1300 = vpack.c.bf16 %v1275, %v1274
      %v1301 = vpack.c.bf16 %v1277, %v1276
      %v1302 = vpack.c.bf16 %v1279, %v1278
      %v1303 = vpack.c.bf16 %v1281, %v1280
      %v1304 = vpack.c.bf16 %v1283, %v1282
      %v1305 = vpack.c.bf16 %v1285, %v1284
      %v1306 = vpack.c.bf16 %v1287, %v1286
      %v1307 = vpack.c.bf16 %v1289, %v1288
      %v1308 = vpack.c.bf16 %v1291, %v1290
      %v1309 = vpack.c.bf16 %v1293, %v1292
      %1326 = vrot.lane.b32.xlu0 %v1294, 64
      %v1327 = vpop.permute.xlu0 %1326
      %1328 = vrot.lane.b32.xlu0 %v1295, 64
      %v1329 = vpop.permute.xlu0 %1328
      %1330 = vrot.lane.b32.xlu0 %v1296, 64
      %v1331 = vpop.permute.xlu0 %1330
      %1332 = vrot.lane.b32.xlu0 %v1297, 64
      %v1333 = vpop.permute.xlu0 %1332
      %1334 = vrot.lane.b32.xlu0 %v1298, 64
      %v1335 = vpop.permute.xlu0 %1334
      %1336 = vrot.lane.b32.xlu0 %v1299, 64
      %v1337 = vpop.permute.xlu0 %1336
      %1338 = vrot.lane.b32.xlu0 %v1300, 64
      %v1339 = vpop.permute.xlu0 %1338
      %1340 = vrot.lane.b32.xlu0 %v1301, 64
      %v1341 = vpop.permute.xlu0 %1340
      %1342 = vrot.lane.b32.xlu0 %v1302, 64
      %v1343 = vpop.permute.xlu0 %1342
      %1344 = vrot.lane.b32.xlu0 %v1303, 64
      %v1345 = vpop.permute.xlu0 %1344
      %1346 = vrot.lane.b32.xlu0 %v1304, 64
      %v1347 = vpop.permute.xlu0 %1346
      %1348 = vrot.lane.b32.xlu0 %v1305, 64
      %v1349 = vpop.permute.xlu0 %1348
      %1350 = vrot.lane.b32.xlu0 %v1306, 64
      %v1351 = vpop.permute.xlu0 %1350
      %1352 = vrot.lane.b32.xlu0 %v1307, 64
      %v1353 = vpop.permute.xlu0 %1352
      %1354 = vrot.lane.b32.xlu0 %v1308, 64
      %v1355 = vpop.permute.xlu0 %1354
      %1356 = vrot.lane.b32.xlu0 %v1309, 64
      %v1357 = vpop.permute.xlu0 %1356
      %vm1374 = vcmask 589312
      %1375 = vst.msk [vmem:[#allocation3] sm:$0xff] %vm1374, %v1327
      %1376 = vst.msk [vmem:[#allocation3 + $0x8] sm:$0xff] %vm1374, %v1329
      %1377 = vst.msk [vmem:[#allocation3 + $0x10] sm:$0xff] %vm1374, %v1331
      %1378 = vst.msk [vmem:[#allocation3 + $0x18] sm:$0xff] %vm1374, %v1333
      %1379 = vst.msk [vmem:[#allocation3 + $0x20] sm:$0xff] %vm1374, %v1335
      %1380 = vst.msk [vmem:[#allocation3 + $0x28] sm:$0xff] %vm1374, %v1337
      %1381 = vst.msk [vmem:[#allocation3 + $0x30] sm:$0xff] %vm1374, %v1339
      %1382 = vst.msk [vmem:[#allocation3 + $0x38] sm:$0xff] %vm1374, %v1341
      %1383 = vst.msk [vmem:[#allocation3 + $0x40] sm:$0xff] %vm1374, %v1343
      %1384 = vst.msk [vmem:[#allocation3 + $0x48] sm:$0xff] %vm1374, %v1345
      %1385 = vst.msk [vmem:[#allocation3 + $0x50] sm:$0xff] %vm1374, %v1347
      %1386 = vst.msk [vmem:[#allocation3 + $0x58] sm:$0xff] %vm1374, %v1349
      %1387 = vst.msk [vmem:[#allocation3 + $0x60] sm:$0xff] %vm1374, %v1351
      %1388 = vst.msk [vmem:[#allocation3 + $0x68] sm:$0xff] %vm1374, %v1353
      %1389 = vst.msk [vmem:[#allocation3 + $0x70] sm:$0xff] %vm1374, %v1355
      %1390 = vst.msk [vmem:[#allocation3 + $0x78] sm:$0xff] %vm1374, %v1357
      %v1391 = vld [vmem:[#allocation3] sm:$0xff]
      %v1392 = vld [vmem:[#allocation3 + $0x8] sm:$0xff]
      %v1393 = vld [vmem:[#allocation3 + $0x10] sm:$0xff]
      %v1394 = vld [vmem:[#allocation3 + $0x18] sm:$0xff]
      %v1395 = vld [vmem:[#allocation3 + $0x20] sm:$0xff]
      %v1396 = vld [vmem:[#allocation3 + $0x28] sm:$0xff]
      %v1397 = vld [vmem:[#allocation3 + $0x30] sm:$0xff]
      %v1398 = vld [vmem:[#allocation3 + $0x38] sm:$0xff]
      %v1399 = vld [vmem:[#allocation3 + $0x40] sm:$0xff]
      %v1400 = vld [vmem:[#allocation3 + $0x48] sm:$0xff]
      %v1401 = vld [vmem:[#allocation3 + $0x50] sm:$0xff]
      %v1402 = vld [vmem:[#allocation3 + $0x58] sm:$0xff]
      %v1403 = vld [vmem:[#allocation3 + $0x60] sm:$0xff]
      %v1404 = vld [vmem:[#allocation3 + $0x68] sm:$0xff]
      %v1405 = vld [vmem:[#allocation3 + $0x70] sm:$0xff]
      %v1406 = vld [vmem:[#allocation3 + $0x78] sm:$0xff]
      %v1407 = vld [vmem:[%s1] sm:$0xf]
      %v1408 = vld [vmem:[%s1 + $0x4] sm:$0xf]
      %v1409 = vld [vmem:[%s1 + $0x8] sm:$0xf]
      %v1410 = vld [vmem:[%s1 + $0xc] sm:$0xf]
      %v1411 = vld [vmem:[%s1 + $0x10] sm:$0xf]
      %v1412 = vld [vmem:[%s1 + $0x14] sm:$0xf]
      %v1413 = vld [vmem:[%s1 + $0x18] sm:$0xf]
      %v1414 = vld [vmem:[%s1 + $0x1c] sm:$0xf]
      %v1415 = vld [vmem:[%s1 + $0x20] sm:$0xf]
      %v1425 = vunpack.c.l.b16 %v1407
      %v1426 = vunpack.c.l.b16 %v1408
      %v1427 = vunpack.c.l.b16 %v1409
      %v1428 = vunpack.c.l.b16 %v1410
      %v1429 = vunpack.c.l.b16 %v1411
      %v1430 = vunpack.c.l.b16 %v1412
      %v1431 = vunpack.c.l.b16 %v1413
      %v1432 = vunpack.c.l.b16 %v1414
      %v1433 = vunpack.c.l.b16 %v1415
      %v1434 = vpack.c.b16 %v1426, %v1425
      %v1435 = vpack.c.b16 %v1428, %v1427
      %v1436 = vpack.c.b16 %v1430, %v1429
      %v1437 = vpack.c.b16 %v1432, %v1431
      %v1438 = vpack.c.b16 %v1433, %v1433
      %vm1443 = vcmask 588800
      %v1445 = vsel %vm1443, %v1391, 0
      %v1448 = vsel %vm1443, %v1392, 0
      %v1451 = vsel %vm1443, %v1393, 0
      %v1454 = vsel %vm1443, %v1394, 0
      %v1457 = vsel %vm1443, %v1395, 0
      %v1460 = vsel %vm1443, %v1396, 0
      %v1463 = vsel %vm1443, %v1397, 0
      %v1466 = vsel %vm1443, %v1398, 0
      %v1469 = vsel %vm1443, %v1399, 0
      %v1472 = vsel %vm1443, %v1400, 0
      %v1475 = vsel %vm1443, %v1401, 0
      %v1478 = vsel %vm1443, %v1402, 0
      %v1481 = vsel %vm1443, %v1403, 0
      %v1484 = vsel %vm1443, %v1404, 0
      %v1487 = vsel %vm1443, %v1405, 0
      %v1490 = vsel %vm1443, %v1406, 0
      %vm1492 = vcmask 1043456
      %v1494 = vsel %vm1492, %v1438, 0
      %1496 = vmatprep.subr.bf16.mxu0 0
      %1497 = vmatpush1.bf16.msra.mxu0 %v1434
      %1498 = vmatprep.subr.bf16.mxu0 0
      %1499 = vmatpush1.bf16.msra.mxu0 %v1435
      %1500 = vmatprep.subr.bf16.mxu0 0
      %1501 = vmatpush1.bf16.msra.mxu0 %v1436
      %1502 = vmatprep.subr.bf16.mxu0 0
      %1503 = vmatpush1.bf16.msra.mxu0 %v1437
      %1504 = vmatprep.subr.bf16.mxu0 0
      %1505 = vmatpush1.bf16.msra.mxu0 %v1494
      %1506 = vmatprep.subr.bf16.mxu0 0
      %1507 = vmatpush1.bf16.msra.mxu0 0
      %1508 = vmatprep.subr.bf16.mxu0 0
      %1509 = vmatpush1.bf16.msra.mxu0 0
      %1510 = vmatprep.subr.bf16.mxu0 0
      %1511 = vmatpush1.bf16.msra.mxu0 0
      %1512 = vmatprep.subr.bf16.mxu0 0
      %1513 = vmatpush1.bf16.msra.mxu0 0
      %1514 = vmatprep.subr.bf16.mxu0 0
      %1515 = vmatpush1.bf16.msra.mxu0 0
      %1516 = vmatprep.subr.bf16.mxu0 0
      %1517 = vmatpush1.bf16.msra.mxu0 0
      %1518 = vmatprep.subr.bf16.mxu0 0
      %1519 = vmatpush1.bf16.msra.mxu0 0
      %1520 = vmatprep.subr.bf16.mxu0 0
      %1521 = vmatpush1.bf16.msra.mxu0 0
      %1522 = vmatprep.subr.bf16.mxu0 0
      %1523 = vmatpush1.bf16.msra.mxu0 0
      %1524 = vmatprep.subr.bf16.mxu0 0
      %1525 = vmatpush1.bf16.msra.mxu0 0
      %1526 = vmatprep.subr.bf16.mxu0 0
      %1527 = vmatpush1.bf16.msra.mxu0 0
      %1528 = vmatprep.mubr.bf16.mxu0 0
      %1529 = vmatmul.mubr.bf16.gmra.mrb[0].mxu0 %v1445
      %v1530 = vpop.f32.mrb[0].mxu0
      %v1531 = vadd.f32 0.0, %v1530
      %v1532 = vpop.f32.mrb[0].mxu0
      %v1533 = vpop.f32.mrb[0].mxu0
      %v1534 = vadd.f32 0.0, %v1533
      %v1535 = vpop.f32.mrb[0].mxu0
      %1536 = vmatprep.mubr.bf16.mxu0 0
      %1537 = vmatmul.mubr.bf16.gmra.mrb[0].mxu0 %v1448
      %v1538 = vpop.f32.mrb[0].mxu0
      %v1539 = vadd.f32 0.0, %v1538
      %v1540 = vpop.f32.mrb[0].mxu0
      %v1541 = vpop.f32.mrb[0].mxu0
      %v1542 = vadd.f32 0.0, %v1541
      %v1543 = vpop.f32.mrb[0].mxu0
      %1544 = vmatprep.mubr.bf16.mxu0 0
      %1545 = vmatmul.mubr.bf16.gmra.mrb[0].mxu0 %v1451
      %v1546 = vpop.f32.mrb[0].mxu0
      %v1547 = vadd.f32 0.0, %v1546
      %v1548 = vpop.f32.mrb[0].mxu0
      %v1549 = vpop.f32.mrb[0].mxu0
      %v1550 = vadd.f32 0.0, %v1549
      %v1551 = vpop.f32.mrb[0].mxu0
      %1552 = vmatprep.mubr.bf16.mxu0 0
      %1553 = vmatmul.mubr.bf16.gmra.mrb[0].mxu0 %v1454
      %v1554 = vpop.f32.mrb[0].mxu0
      %v1555 = vadd.f32 0.0, %v1554
      %v1556 = vpop.f32.mrb[0].mxu0
      %v1557 = vpop.f32.mrb[0].mxu0
      %v1558 = vadd.f32 0.0, %v1557
      %v1559 = vpop.f32.mrb[0].mxu0
      %1560 = vmatprep.mubr.bf16.mxu0 0
      %1561 = vmatmul.mubr.bf16.gmra.mrb[0].mxu0 %v1457
      %v1562 = vpop.f32.mrb[0].mxu0
      %v1563 = vadd.f32 0.0, %v1562
      %v1564 = vpop.f32.mrb[0].mxu0
      %v1565 = vpop.f32.mrb[0].mxu0
      %v1566 = vadd.f32 0.0, %v1565
      %v1567 = vpop.f32.mrb[0].mxu0
      %1568 = vmatprep.mubr.bf16.mxu0 0
      %1569 = vmatmul.mubr.bf16.gmra.mrb[0].mxu0 %v1460
      %v1570 = vpop.f32.mrb[0].mxu0
      %v1571 = vadd.f32 0.0, %v1570
      %v1572 = vpop.f32.mrb[0].mxu0
      %v1573 = vpop.f32.mrb[0].mxu0
      %v1574 = vadd.f32 0.0, %v1573
      %v1575 = vpop.f32.mrb[0].mxu0
      %1576 = vmatprep.mubr.bf16.mxu0 0
      %1577 = vmatmul.mubr.bf16.gmra.mrb[0].mxu0 %v1463
      %v1578 = vpop.f32.mrb[0].mxu0
      %v1579 = vadd.f32 0.0, %v1578
      %v1580 = vpop.f32.mrb[0].mxu0
      %v1581 = vpop.f32.mrb[0].mxu0
      %v1582 = vadd.f32 0.0, %v1581
      %v1583 = vpop.f32.mrb[0].mxu0
      %1584 = vmatprep.mubr.bf16.mxu0 0
      %1585 = vmatmul.mubr.bf16.gmra.mrb[0].mxu0 %v1466
      %v1586 = vpop.f32.mrb[0].mxu0
      %v1587 = vadd.f32 0.0, %v1586
      %v1588 = vpop.f32.mrb[0].mxu0
      %v1589 = vpop.f32.mrb[0].mxu0
      %v1590 = vadd.f32 0.0, %v1589
      %v1591 = vpop.f32.mrb[0].mxu0
      %1592 = vmatprep.mubr.bf16.mxu0 0
      %1593 = vmatmul.mubr.bf16.gmra.mrb[0].mxu0 %v1469
      %v1594 = vpop.f32.mrb[0].mxu0
      %v1595 = vadd.f32 0.0, %v1594
      %v1596 = vpop.f32.mrb[0].mxu0
      %v1597 = vpop.f32.mrb[0].mxu0
      %v1598 = vadd.f32 0.0, %v1597
      %v1599 = vpop.f32.mrb[0].mxu0
      %1600 = vmatprep.mubr.bf16.mxu0 0
      %1601 = vmatmul.mubr.bf16.gmra.mrb[0].mxu0 %v1472
      %v1602 = vpop.f32.mrb[0].mxu0
      %v1603 = vadd.f32 0.0, %v1602
      %v1604 = vpop.f32.mrb[0].mxu0
      %v1605 = vpop.f32.mrb[0].mxu0
      %v1606 = vadd.f32 0.0, %v1605
      %v1607 = vpop.f32.mrb[0].mxu0
      %1608 = vmatprep.mubr.bf16.mxu0 0
      %1609 = vmatmul.mubr.bf16.gmra.mrb[0].mxu0 %v1475
      %v1610 = vpop.f32.mrb[0].mxu0
      %v1611 = vadd.f32 0.0, %v1610
      %v1612 = vpop.f32.mrb[0].mxu0
      %v1613 = vpop.f32.mrb[0].mxu0
      %v1614 = vadd.f32 0.0, %v1613
      %v1615 = vpop.f32.mrb[0].mxu0
      %1616 = vmatprep.mubr.bf16.mxu0 0
      %1617 = vmatmul.mubr.bf16.gmra.mrb[0].mxu0 %v1478
      %v1618 = vpop.f32.mrb[0].mxu0
      %v1619 = vadd.f32 0.0, %v1618
      %v1620 = vpop.f32.mrb[0].mxu0
      %v1621 = vpop.f32.mrb[0].mxu0
      %v1622 = vadd.f32 0.0, %v1621
      %v1623 = vpop.f32.mrb[0].mxu0
      %1624 = vmatprep.mubr.bf16.mxu0 0
      %1625 = vmatmul.mubr.bf16.gmra.mrb[0].mxu0 %v1481
      %v1626 = vpop.f32.mrb[0].mxu0
      %v1627 = vadd.f32 0.0, %v1626
      %v1628 = vpop.f32.mrb[0].mxu0
      %v1629 = vpop.f32.mrb[0].mxu0
      %v1630 = vadd.f32 0.0, %v1629
      %v1631 = vpop.f32.mrb[0].mxu0
      %1632 = vmatprep.mubr.bf16.mxu0 0
      %1633 = vmatmul.mubr.bf16.gmra.mrb[0].mxu0 %v1484
      %v1634 = vpop.f32.mrb[0].mxu0
      %v1635 = vadd.f32 0.0, %v1634
      %v1636 = vpop.f32.mrb[0].mxu0
      %v1637 = vpop.f32.mrb[0].mxu0
      %v1638 = vadd.f32 0.0, %v1637
      %v1639 = vpop.f32.mrb[0].mxu0
      %1640 = vmatprep.mubr.bf16.mxu0 0
      %1641 = vmatmul.mubr.bf16.gmra.mrb[0].mxu0 %v1487
      %v1642 = vpop.f32.mrb[0].mxu0
      %v1643 = vadd.f32 0.0, %v1642
      %v1644 = vpop.f32.mrb[0].mxu0
      %v1645 = vpop.f32.mrb[0].mxu0
      %v1646 = vadd.f32 0.0, %v1645
      %v1647 = vpop.f32.mrb[0].mxu0
      %1648 = vmatprep.mubr.bf16.mxu0 0
      %1649 = vmatmul.mubr.bf16.gmra.mrb[0].mxu0 %v1490
      %v1650 = vpop.f32.mrb[0].mxu0
      %v1651 = vadd.f32 0.0, %v1650
      %v1652 = vpop.f32.mrb[0].mxu0
      %v1653 = vpop.f32.mrb[0].mxu0
      %v1654 = vadd.f32 0.0, %v1653
      %v1655 = vpop.f32.mrb[0].mxu0
      %1656 = vdwg.mxu0
      %1657 = vst.msk [vmem:[%s177] sm:$0xff] %vm215, %v1531
      %1658 = vst.msk [vmem:[%s177 + $0x8] sm:$0xff] %vm215, %v1534
      %1659 = vst.msk [vmem:[%s177 + $0x10] sm:$0xff] %vm215, %v1539
      %1660 = vst.msk [vmem:[%s177 + $0x18] sm:$0xff] %vm215, %v1542
      %1661 = vst.msk [vmem:[%s177 + $0x20] sm:$0xff] %vm215, %v1547
      %1662 = vst.msk [vmem:[%s177 + $0x28] sm:$0xff] %vm215, %v1550
      %1663 = vst.msk [vmem:[%s177 + $0x30] sm:$0xff] %vm215, %v1555
      %1664 = vst.msk [vmem:[%s177 + $0x38] sm:$0xff] %vm215, %v1558
      %1665 = vst.msk [vmem:[%s177 + $0x40] sm:$0xff] %vm215, %v1563
      %1666 = vst.msk [vmem:[%s177 + $0x48] sm:$0xff] %vm215, %v1566
      %1667 = vst.msk [vmem:[%s177 + $0x50] sm:$0xff] %vm215, %v1571
      %1668 = vst.msk [vmem:[%s177 + $0x58] sm:$0xff] %vm215, %v1574
      %1669 = vst.msk [vmem:[%s177 + $0x60] sm:$0xff] %vm215, %v1579
      %1670 = vst.msk [vmem:[%s177 + $0x68] sm:$0xff] %vm215, %v1582
      %1671 = vst.msk [vmem:[%s177 + $0x70] sm:$0xff] %vm215, %v1587
      %1672 = vst.msk [vmem:[%s177 + $0x78] sm:$0xff] %vm215, %v1590
      %1673 = vst.msk [vmem:[%s177 + $0x80] sm:$0xff] %vm215, %v1595
      %1674 = vst.msk [vmem:[%s177 + $0x88] sm:$0xff] %vm215, %v1598
      %1675 = vst.msk [vmem:[%s177 + $0x90] sm:$0xff] %vm215, %v1603
      %1676 = vst.msk [vmem:[%s177 + $0x98] sm:$0xff] %vm215, %v1606
      %1677 = vst.msk [vmem:[%s177 + $0xa0] sm:$0xff] %vm215, %v1611
      %1678 = vst.msk [vmem:[%s177 + $0xa8] sm:$0xff] %vm215, %v1614
      %1679 = vst.msk [vmem:[%s177 + $0xb0] sm:$0xff] %vm215, %v1619
      %1680 = vst.msk [vmem:[%s177 + $0xb8] sm:$0xff] %vm215, %v1622
      %1681 = vst.msk [vmem:[%s177 + $0xc0] sm:$0xff] %vm215, %v1627
      %1682 = vst.msk [vmem:[%s177 + $0xc8] sm:$0xff] %vm215, %v1630
      %1683 = vst.msk [vmem:[%s177 + $0xd0] sm:$0xff] %vm215, %v1635
      %1684 = vst.msk [vmem:[%s177 + $0xd8] sm:$0xff] %vm215, %v1638
      %1685 = vst.msk [vmem:[%s177 + $0xe0] sm:$0xff] %vm215, %v1643
      %1686 = vst.msk [vmem:[%s177 + $0xe8] sm:$0xff] %vm215, %v1646
      %1687 = vst.msk [vmem:[%s177 + $0xf0] sm:$0xff] %vm215, %v1651
      %1688 = vst.msk [vmem:[%s177 + $0xf8] sm:$0xff] %vm215, %v1654
      %v1689 = vsel %vm215, %v1531, 0.0
      %v1690 = vsel %vm215, %v1534, 0.0
      %v1691 = vadd.f32 %v1689, %v1690
      %v1692 = vsel %vm215, %v1539, 0.0
      %v1693 = vadd.f32 %v1691, %v1692
      %v1694 = vsel %vm215, %v1542, 0.0
      %v1695 = vadd.f32 %v1693, %v1694
      %v1696 = vsel %vm215, %v1547, 0.0
      %v1697 = vadd.f32 %v1695, %v1696
      %v1698 = vsel %vm215, %v1550, 0.0
      %v1699 = vadd.f32 %v1697, %v1698
      %v1700 = vsel %vm215, %v1555, 0.0
      %v1701 = vadd.f32 %v1699, %v1700
      %v1702 = vsel %vm215, %v1558, 0.0
      %v1703 = vadd.f32 %v1701, %v1702
      %v1704 = vsel %vm215, %v1563, 0.0
      %v1705 = vadd.f32 %v1703, %v1704
      %v1706 = vsel %vm215, %v1566, 0.0
      %v1707 = vadd.f32 %v1705, %v1706
      %v1708 = vsel %vm215, %v1571, 0.0
      %v1709 = vadd.f32 %v1707, %v1708
      %v1710 = vsel %vm215, %v1574, 0.0
      %v1711 = vadd.f32 %v1709, %v1710
      %v1712 = vsel %vm215, %v1579, 0.0
      %v1713 = vadd.f32 %v1711, %v1712
      %v1714 = vsel %vm215, %v1582, 0.0
      %v1715 = vadd.f32 %v1713, %v1714
      %v1716 = vsel %vm215, %v1587, 0.0
      %v1717 = vadd.f32 %v1715, %v1716
      %v1718 = vsel %vm215, %v1590, 0.0
      %v1719 = vadd.f32 %v1717, %v1718
      %v1720 = vsel %vm215, %v1595, 0.0
      %v1721 = vadd.f32 %v1719, %v1720
      %v1722 = vsel %vm215, %v1598, 0.0
      %v1723 = vadd.f32 %v1721, %v1722
      %v1724 = vsel %vm215, %v1603, 0.0
      %v1725 = vadd.f32 %v1723, %v1724
      %v1726 = vsel %vm215, %v1606, 0.0
      %v1727 = vadd.f32 %v1725, %v1726
      %v1728 = vsel %vm215, %v1611, 0.0
      %v1729 = vadd.f32 %v1727, %v1728
      %v1730 = vsel %vm215, %v1614, 0.0
      %v1731 = vadd.f32 %v1729, %v1730
      %v1732 = vsel %vm215, %v1619, 0.0
      %v1733 = vadd.f32 %v1731, %v1732
      %v1734 = vsel %vm215, %v1622, 0.0
      %v1735 = vadd.f32 %v1733, %v1734
      %v1736 = vsel %vm215, %v1627, 0.0
      %v1737 = vadd.f32 %v1735, %v1736
      %v1738 = vsel %vm215, %v1630, 0.0
      %v1739 = vadd.f32 %v1737, %v1738
      %v1740 = vsel %vm215, %v1635, 0.0
      %v1741 = vadd.f32 %v1739, %v1740
      %v1742 = vsel %vm215, %v1638, 0.0
      %v1743 = vadd.f32 %v1741, %v1742
      %v1744 = vsel %vm215, %v1643, 0.0
      %v1745 = vadd.f32 %v1743, %v1744
      %v1746 = vsel %vm215, %v1646, 0.0
      %v1747 = vadd.f32 %v1745, %v1746
      %v1748 = vsel %vm215, %v1651, 0.0
      %v1749 = vadd.f32 %v1747, %v1748
      %v1750 = vsel %vm215, %v1654, 0.0
      %v1751 = vadd.f32 %v1749, %v1750
      %v1752 = vrot.slane %v1751, 4
      %v1753 = vadd.f32 %v1751, %v1752
      %v1754 = vrot.slane %v1753, 2
      %v1755 = vadd.f32 %v1753, %v1754
      %v1756 = vrot.slane %v1755, 1
      %v1757 = vadd.f32 %v1755, %v1756
      %v1758 = vmul.f32 %v1531, %v1531
      %v1759 = vmul.f32 %v1534, %v1534
      %v1760 = vmul.f32 %v1539, %v1539
      %v1761 = vmul.f32 %v1542, %v1542
      %v1762 = vmul.f32 %v1547, %v1547
      %v1763 = vmul.f32 %v1550, %v1550
      %v1764 = vmul.f32 %v1555, %v1555
      %v1765 = vmul.f32 %v1558, %v1558
      %v1766 = vmul.f32 %v1563, %v1563
      %v1767 = vmul.f32 %v1566, %v1566
      %v1768 = vmul.f32 %v1571, %v1571
      %v1769 = vmul.f32 %v1574, %v1574
      %v1770 = vmul.f32 %v1579, %v1579
      %v1771 = vmul.f32 %v1582, %v1582
      %v1772 = vmul.f32 %v1587, %v1587
      %v1773 = vmul.f32 %v1590, %v1590
      %v1774 = vmul.f32 %v1595, %v1595
      %v1775 = vmul.f32 %v1598, %v1598
      %v1776 = vmul.f32 %v1603, %v1603
      %v1777 = vmul.f32 %v1606, %v1606
      %v1778 = vmul.f32 %v1611, %v1611
      %v1779 = vmul.f32 %v1614, %v1614
      %v1780 = vmul.f32 %v1619, %v1619
      %v1781 = vmul.f32 %v1622, %v1622
      %v1782 = vmul.f32 %v1627, %v1627
      %v1783 = vmul.f32 %v1630, %v1630
      %v1784 = vmul.f32 %v1635, %v1635
      %v1785 = vmul.f32 %v1638, %v1638
      %v1786 = vmul.f32 %v1643, %v1643
      %v1787 = vmul.f32 %v1646, %v1646
      %v1788 = vmul.f32 %v1651, %v1651
      %v1789 = vmul.f32 %v1654, %v1654
      %v1790 = vsel %vm215, %v1758, 0.0
      %v1791 = vsel %vm215, %v1759, 0.0
      %v1792 = vadd.f32 %v1790, %v1791
      %v1793 = vsel %vm215, %v1760, 0.0
      %v1794 = vadd.f32 %v1792, %v1793
      %v1795 = vsel %vm215, %v1761, 0.0
      %v1796 = vadd.f32 %v1794, %v1795
      %v1797 = vsel %vm215, %v1762, 0.0
      %v1798 = vadd.f32 %v1796, %v1797
      %v1799 = vsel %vm215, %v1763, 0.0
      %v1800 = vadd.f32 %v1798, %v1799
      %v1801 = vsel %vm215, %v1764, 0.0
      %v1802 = vadd.f32 %v1800, %v1801
      %v1803 = vsel %vm215, %v1765, 0.0
      %v1804 = vadd.f32 %v1802, %v1803
      %v1805 = vsel %vm215, %v1766, 0.0
      %v1806 = vadd.f32 %v1804, %v1805
      %v1807 = vsel %vm215, %v1767, 0.0
      %v1808 = vadd.f32 %v1806, %v1807
      %v1809 = vsel %vm215, %v1768, 0.0
      %v1810 = vadd.f32 %v1808, %v1809
      %v1811 = vsel %vm215, %v1769, 0.0
      %v1812 = vadd.f32 %v1810, %v1811
      %v1813 = vsel %vm215, %v1770, 0.0
      %v1814 = vadd.f32 %v1812, %v1813
      %v1815 = vsel %vm215, %v1771, 0.0
      %v1816 = vadd.f32 %v1814, %v1815
      %v1817 = vsel %vm215, %v1772, 0.0
      %v1818 = vadd.f32 %v1816, %v1817
      %v1819 = vsel %vm215, %v1773, 0.0
      %v1820 = vadd.f32 %v1818, %v1819
      %v1821 = vsel %vm215, %v1774, 0.0
      %v1822 = vadd.f32 %v1820, %v1821
      %v1823 = vsel %vm215, %v1775, 0.0
      %v1824 = vadd.f32 %v1822, %v1823
      %v1825 = vsel %vm215, %v1776, 0.0
      %v1826 = vadd.f32 %v1824, %v1825
      %v1827 = vsel %vm215, %v1777, 0.0
      %v1828 = vadd.f32 %v1826, %v1827
      %v1829 = vsel %vm215, %v1778, 0.0
      %v1830 = vadd.f32 %v1828, %v1829
      %v1831 = vsel %vm215, %v1779, 0.0
      %v1832 = vadd.f32 %v1830, %v1831
      %v1833 = vsel %vm215, %v1780, 0.0
      %v1834 = vadd.f32 %v1832, %v1833
      %v1835 = vsel %vm215, %v1781, 0.0
      %v1836 = vadd.f32 %v1834, %v1835
      %v1837 = vsel %vm215, %v1782, 0.0
      %v1838 = vadd.f32 %v1836, %v1837
      %v1839 = vsel %vm215, %v1783, 0.0
      %v1840 = vadd.f32 %v1838, %v1839
      %v1841 = vsel %vm215, %v1784, 0.0
      %v1842 = vadd.f32 %v1840, %v1841
      %v1843 = vsel %vm215, %v1785, 0.0
      %v1844 = vadd.f32 %v1842, %v1843
      %v1845 = vsel %vm215, %v1786, 0.0
      %v1846 = vadd.f32 %v1844, %v1845
      %v1847 = vsel %vm215, %v1787, 0.0
      %v1848 = vadd.f32 %v1846, %v1847
      %v1849 = vsel %vm215, %v1788, 0.0
      %v1850 = vadd.f32 %v1848, %v1849
      %v1851 = vsel %vm215, %v1789, 0.0
      %v1852 = vadd.f32 %v1850, %v1851
      %v1853 = vrot.slane %v1852, 4
      %v1854 = vadd.f32 %v1852, %v1853
      %v1855 = vrot.slane %v1854, 2
      %v1856 = vadd.f32 %v1854, %v1855
      %v1857 = vrot.slane %v1856, 1
      %v1858 = vadd.f32 %v1856, %v1857
      %vm1859 = vcmask 1040384
      %v1860 = vsel %vm1859, %v1757, %v1858
      %1861 = vst.msk [vmem:[%s181] sm:$0x3] %vm218, %v1860
      %p1862 = scmp.lt.s32.totalorder %s15, 1
      %s1863 = scalar_select %p1862, %s15, 1
      %s1864 = smul.addr %s1863, 32
      %s1865 = smul.addr %s1864, 8
      %s1866 = scalar_lea.vmem %s2, %s1865
      %p1867 = scmp.lt.s32.totalorder %s15, 1
      %s1868 = scalar_select %p1867, %s15, 1
      %s1869 = smul.addr %s1868, 2
      %s1870 = scalar_lea.vmem %s3, %s1869
      // Predicated region
      $region29: #{basic_block.3} parent=27 // pred_check
        %p1871 = pneg %p80
      $region30: #{basic_block.3} parent=27 // pred_check_branch
        %1873 = sbr.rel (%p1871) target = $region32
      $region31: #{basic_block.3} parent=27 // pred_region
        _
      $region32: #{basic_block.3} parent=27 // pred_fallthru
        _
      // Predicated region
      $region33: #{basic_block.3} parent=27 // pred_check
        %p1874 = pneg %p106
      $region34: #{basic_block.3} parent=27 // pred_check_branch
        %1876 = sbr.rel (%p1874) target = $region36
      $region35: #{basic_block.3} parent=27 // pred_region
        _
      $region36: #{basic_block.3} parent=27 // pred_fallthru
        _
    $region28: #{basic_block.3} parent=5 // pred_fallthru
      _
    %p1877 = scmp.le.s32.totalorder 2, %s10
    // Predicated region
    $region37: #{basic_block.3} parent=5 // pred_check
      %p1878 = pneg %p1877
    $region38: #{basic_block.3} parent=5 // pred_check_branch
      %1880 = sbr.rel (%p1878) target = $region40
    $region39: #{basic_block.3} parent=5 // pred_region
      %s1881 = ssub.s32 %s10, 2
      // Predicated region
      $region41: #{basic_block.3} parent=39 // pred_check
        %p1882 = pneg %p86
      $region42: #{basic_block.3} parent=39 // pred_check_branch
        %1884 = sbr.rel (%p1882) target = $region44
      $region43: #{basic_block.3} parent=39 // pred_region
        %p1885 = scmp.lt.s32.totalorder %s16, 1
        %s1886 = scalar_select %p1885, %s16, 1
        %s1887 = smul.addr %s1886, 32
        %s1888 = smul.addr %s1887, 8
        %s1889 = scalar_lea.vmem %s2, %s1888
      $region44: #{basic_block.3} parent=39 // pred_fallthru
        _
      // Predicated region
      $region45: #{basic_block.3} parent=39 // pred_check
        %p1890 = pneg %p112
      $region46: #{basic_block.3} parent=39 // pred_check_branch
        %1892 = sbr.rel (%p1890) target = $region48
      $region47: #{basic_block.3} parent=39 // pred_region
        %p1893 = scmp.lt.s32.totalorder %s16, 1
        %s1894 = scalar_select %p1893, %s16, 1
        %s1895 = smul.addr %s1894, 2
        %s1896 = scalar_lea.vmem %s3, %s1895
      $region48: #{basic_block.3} parent=39 // pred_fallthru
        _
    $region40: #{basic_block.3} parent=5 // pred_fallthru
      _
  $region6: #{basic_block.3} parent=0 // loop_footer
    %s14 = sadd.s32 1, %s10
  $region7: #{basic_block.3} parent=0 // loop_footer_branch
    %9 = sbr.rel target = $region3
  $region8: #{basic_block.3} parent=0 // loop_exit
    _

// kernel: basic_block.4
$region0: #{basic_block.4}
  #allocation0 [shape = 'u32[]', space=smem, size = 0x4, offset = 0x4, fixed_abs, tag = 'smem constant byte address 0x4 - core index']
  #allocation1 [shape = 'u32[144,128]{1,0:T(1,128)}', space=vmem, size = 0x12000, scoped, tag = 'internal scratch']
  #allocation2 [shape = 'f32[18,18,8]{2,1,0:T(8,128)}', space=vmem, size = 0x36000, scoped, tag = 'scratch operand']
  #allocation3 [shape = 'bf16[16,16,72]{2,1,0:T(16,128)(2,1)}', space=vmem, size = 0x10000, scoped, tag = 'scratch operand']
  %s0 = inlined_call_operand.vmem [shape: f32[2,16,16,8], index: 0, kind: input, shape index: {}]
  %s1 = inlined_call_operand.vmem [shape: f32[1,8], index: 1, kind: input, shape index: {}]
  %s2 = inlined_call_operand.vmem [shape: f32[1,8], index: 2, kind: input, shape index: {}]
  %s3 = inlined_call_operand.vmem [shape: bf16[72,8], index: 3, kind: input, shape index: {}]
  %s4 = inlined_call_operand.vmem [shape: f32[2,16,16,8], index: 4, kind: output, shape index: {0}]
  %s5 = inlined_call_operand.vmem [shape: f32[2,2,8], index: 5, kind: output, shape index: {1}]
  %6 = xla_tuple %s4, %s5
  %s7 = sld [smem:[#allocation0]]
  $region57: #{basic_block.4} parent=0
    _
  %s9 = ssub.s32 1, %s7
  %s10 = scalar_select 0, %s9, %s7
  loop: start=0, step=1, limit=4
  $region2: #{basic_block.4} parent=0 // loop_pre_header
    _
  $region3: #{basic_block.4} parent=0 // loop_header
    %s12 = sphi 0, %s16
    %p13 = scmp.ge.s32.totalorder %s12, 4
    %s22 = sphi 0, %s24
    %s25 = sphi 0, %s22
    %s26 = sphi 0, %s25
    %s42 = sphi 0, %s26
    %s46 = sphi 0, %s46
    %s48 = sphi 0, %s46
    %s49 = sphi 0, %s48
    %s63 = sphi 0, %s49
    %s67 = sphi 0, %s67
    %s69 = sphi 0, %s67
    %s70 = sphi 0, %s69
    %s84 = sphi 0, %s70
    %s88 = sphi 0, %s88
    %s90 = sphi 0, %s88
    %s91 = sphi 0, %s90
    %s105 = sphi 0, %s91
    %s111 = sphi 0, %s113
    %s114 = sphi 0, %s111
    %s115 = sphi 0, %s114
    %s131 = sphi 0, %s115
    %s137 = sphi 0, %s139
    %s140 = sphi 0, %s137
    %s141 = sphi 0, %s140
    %s157 = sphi 0, %s141
  $region4: #{basic_block.4} parent=0 // loop_header_branch
    %15 = sbr.rel (%p13) target = $region8
  $region5: #{basic_block.4} parent=0 // loop_body
    %s17 = ssub.s32 %s12, 1
    %s18 = ssub.s32 %s12, 2
    %s19 = sadd.s32 %s12, 1
    %s20 = ssub.s32 %s12, %s19
    %p21 = scmp.eq.s32.totalorder %s20, 0
    %s23 = sadd.s32 %s22, 1
    %s24 = scalar_select %p21, %s22, %s23
    %p27 = pneg %p21
    %p28 = scmp.eq.s32.totalorder %s12, 1
    %p29 = por %p27, %p28
    %p30 = scmp.ne.s32.totalorder %s22, %s25
    %p31 = scmp.eq.s32.totalorder %s12, 0
    %p32 = por %p30, %p31
    %p33 = scmp.ne.s32.totalorder %s22, %s25
    %p34 = scmp.eq.s32.totalorder %s17, 1
    %p35 = por %p33, %p34
    %p36 = scmp.ne.s32.totalorder %s25, %s26
    %p37 = scmp.eq.s32.totalorder %s17, 0
    %p38 = por %p36, %p37
    %p39 = scmp.ne.s32.totalorder %s25, %s26
    %p40 = scmp.eq.s32.totalorder %s18, 1
    %p41 = por %p39, %p40
    %p43 = scmp.ne.s32.totalorder %s26, %s42
    %p44 = scmp.eq.s32.totalorder %s18, 0
    %p45 = por %p43, %p44
    %s47 = sadd.s32 %s46, 1
    %p50 = scmp.eq.s32.totalorder %s12, 1
    %p51 = scmp.ne.s32.totalorder %s46, %s48
    %p52 = scmp.eq.s32.totalorder %s12, 0
    %p53 = por %p51, %p52
    %p54 = scmp.ne.s32.totalorder %s46, %s48
    %p55 = scmp.eq.s32.totalorder %s17, 1
    %p56 = por %p54, %p55
    %p57 = scmp.ne.s32.totalorder %s48, %s49
    %p58 = scmp.eq.s32.totalorder %s17, 0
    %p59 = por %p57, %p58
    %p60 = scmp.ne.s32.totalorder %s48, %s49
    %p61 = scmp.eq.s32.totalorder %s18, 1
    %p62 = por %p60, %p61
    %p64 = scmp.ne.s32.totalorder %s49, %s63
    %p65 = scmp.eq.s32.totalorder %s18, 0
    %p66 = por %p64, %p65
    %s68 = sadd.s32 %s67, 1
    %p71 = scmp.eq.s32.totalorder %s12, 1
    %p72 = scmp.ne.s32.totalorder %s67, %s69
    %p73 = scmp.eq.s32.totalorder %s12, 0
    %p74 = por %p72, %p73
    %p75 = scmp.ne.s32.totalorder %s67, %s69
    %p76 = scmp.eq.s32.totalorder %s17, 1
    %p77 = por %p75, %p76
    %p78 = scmp.ne.s32.totalorder %s69, %s70
    %p79 = scmp.eq.s32.totalorder %s17, 0
    %p80 = por %p78, %p79
    %p81 = scmp.ne.s32.totalorder %s69, %s70
    %p82 = scmp.eq.s32.totalorder %s18, 1
    %p83 = por %p81, %p82
    %p85 = scmp.ne.s32.totalorder %s70, %s84
    %p86 = scmp.eq.s32.totalorder %s18, 0
    %p87 = por %p85, %p86
    %s89 = sadd.s32 %s88, 1
    %p92 = scmp.eq.s32.totalorder %s12, 1
    %p93 = scmp.ne.s32.totalorder %s88, %s90
    %p94 = scmp.eq.s32.totalorder %s12, 0
    %p95 = por %p93, %p94
    %p96 = scmp.ne.s32.totalorder %s88, %s90
    %p97 = scmp.eq.s32.totalorder %s17, 1
    %p98 = por %p96, %p97
    %p99 = scmp.ne.s32.totalorder %s90, %s91
    %p100 = scmp.eq.s32.totalorder %s17, 0
    %p101 = por %p99, %p100
    %p102 = scmp.ne.s32.totalorder %s90, %s91
    %p103 = scmp.eq.s32.totalorder %s18, 1
    %p104 = por %p102, %p103
    %p106 = scmp.ne.s32.totalorder %s91, %s105
    %p107 = scmp.eq.s32.totalorder %s18, 0
    %p108 = por %p106, %p107
    %s109 = ssub.s32 %s12, %s19
    %p110 = scmp.eq.s32.totalorder %s109, 0
    %s112 = sadd.s32 %s111, 1
    %s113 = scalar_select %p110, %s111, %s112
    %p116 = pneg %p110
    %p117 = scmp.eq.s32.totalorder %s12, 1
    %p118 = por %p116, %p117
    %p119 = scmp.ne.s32.totalorder %s111, %s114
    %p120 = scmp.eq.s32.totalorder %s12, 0
    %p121 = por %p119, %p120
    %p122 = scmp.ne.s32.totalorder %s111, %s114
    %p123 = scmp.eq.s32.totalorder %s17, 1
    %p124 = por %p122, %p123
    %p125 = scmp.ne.s32.totalorder %s114, %s115
    %p126 = scmp.eq.s32.totalorder %s17, 0
    %p127 = por %p125, %p126
    %p128 = scmp.ne.s32.totalorder %s114, %s115
    %p129 = scmp.eq.s32.totalorder %s18, 1
    %p130 = por %p128, %p129
    %p132 = scmp.ne.s32.totalorder %s115, %s131
    %p133 = scmp.eq.s32.totalorder %s18, 0
    %p134 = por %p132, %p133
    %s135 = ssub.s32 %s12, %s19
    %p136 = scmp.eq.s32.totalorder %s135, 0
    %s138 = sadd.s32 %s137, 1
    %s139 = scalar_select %p136, %s137, %s138
    %p142 = pneg %p136
    %p143 = scmp.eq.s32.totalorder %s12, 1
    %p144 = por %p142, %p143
    %p145 = scmp.ne.s32.totalorder %s137, %s140
    %p146 = scmp.eq.s32.totalorder %s12, 0
    %p147 = por %p145, %p146
    %p148 = scmp.ne.s32.totalorder %s137, %s140
    %p149 = scmp.eq.s32.totalorder %s17, 1
    %p150 = por %p148, %p149
    %p151 = scmp.ne.s32.totalorder %s140, %s141
    %p152 = scmp.eq.s32.totalorder %s17, 0
    %p153 = por %p151, %p152
    %p154 = scmp.ne.s32.totalorder %s140, %s141
    %p155 = scmp.eq.s32.totalorder %s18, 1
    %p156 = por %p154, %p155
    %p158 = scmp.ne.s32.totalorder %s141, %s157
    %p159 = scmp.eq.s32.totalorder %s18, 0
    %p160 = por %p158, %p159
    %p161 = scmp.le.s32.totalorder 1, %s12
    %p162 = scmp.lt.s32.totalorder %s12, 3
    %p163 = pnand %p161, %p162
    %p164 = pneg %p163
    // Predicated region
    $region9: #{basic_block.4} parent=5 // pred_check
      _
    $region10: #{basic_block.4} parent=5 // pred_check_branch
      %166 = sbr.rel (%p163) target = $region12
    $region11: #{basic_block.4} parent=5 // pred_region
      %s167 = ssub.s32 %s12, 1
      // Predicated region
      $region13: #{basic_block.4} parent=11 // pred_check
        %p168 = pneg %p59
      $region14: #{basic_block.4} parent=11 // pred_check_branch
        %170 = sbr.rel (%p168) target = $region16
      $region15: #{basic_block.4} parent=11 // pred_region
        _
      $region16: #{basic_block.4} parent=11 // pred_fallthru
        _
      // Predicated region
      $region17: #{basic_block.4} parent=11 // pred_check
        %p171 = pneg %p80
      $region18: #{basic_block.4} parent=11 // pred_check_branch
        %173 = sbr.rel (%p171) target = $region20
      $region19: #{basic_block.4} parent=11 // pred_region
        _
      $region20: #{basic_block.4} parent=11 // pred_fallthru
        _
      // Predicated region
      $region21: #{basic_block.4} parent=11 // pred_check
        %p174 = pneg %p101
      $region22: #{basic_block.4} parent=11 // pred_check_branch
        %176 = sbr.rel (%p174) target = $region24
      $region23: #{basic_block.4} parent=11 // pred_region
        _
      $region24: #{basic_block.4} parent=11 // pred_fallthru
        _
    $region12: #{basic_block.4} parent=5 // pred_fallthru
      _
    %p177 = scmp.lt.s32.totalorder %s12, 2
    // Predicated region
    $region25: #{basic_block.4} parent=5 // pred_check
      %p178 = pneg %p177
    $region26: #{basic_block.4} parent=5 // pred_check_branch
      %180 = sbr.rel (%p178) target = $region28
    $region27: #{basic_block.4} parent=5 // pred_region
      // Predicated region
      $region29: #{basic_block.4} parent=27 // pred_check
        %p181 = pneg %p32
      $region30: #{basic_block.4} parent=27 // pred_check_branch
        %183 = sbr.rel (%p181) target = $region32
      $region31: #{basic_block.4} parent=27 // pred_region
        %p184 = scmp.lt.s32.totalorder %s12, 1
        %s185 = scalar_select %p184, %s12, 1
        %s186 = smul.addr %s185, 32
        %s187 = smul.addr %s186, 8
        %s188 = scalar_lea.vmem %s0, %s187
      $region32: #{basic_block.4} parent=27 // pred_fallthru
        _
    $region28: #{basic_block.4} parent=5 // pred_fallthru
      _
    %p189 = scmp.le.s32.totalorder 1, %s12
    %p190 = scmp.lt.s32.totalorder %s12, 3
    %p191 = pnand %p189, %p190
    %p192 = pneg %p191
    // Predicated region
    $region33: #{basic_block.4} parent=5 // pred_check
      _
    $region34: #{basic_block.4} parent=5 // pred_check_branch
      %194 = sbr.rel (%p191) target = $region36
    $region35: #{basic_block.4} parent=5 // pred_region
      %s195 = ssub.s32 %s12, 1
      %p196 = scmp.lt.s32.totalorder %s17, 1
      %s197 = scalar_select %p196, %s17, 1
      %s198 = smul.addr %s197, 32
      %s199 = smul.addr %s198, 8
      %s200 = scalar_lea.vmem %s0, %s199
      %p201 = pneg %p38
      %p202 = pneg %p35
      %p203 = pneg %p59
      %p204 = pneg %p56
      %p205 = pneg %p80
      %p206 = pneg %p77
      %p207 = pneg %p101
      %p208 = pneg %p98
      %p209 = pneg %p127
      %p210 = pneg %p124
      %p211 = scmp.lt.s32.totalorder %s17, 1
      %s212 = scalar_select %p211, %s17, 1
      %s213 = smul.addr %s212, 32
      %s214 = smul.addr %s213, 8
      %s215 = scalar_lea.vmem %s4, %s214
      %p216 = pneg %p153
      %p217 = pneg %p150
      %p218 = scmp.lt.s32.totalorder %s17, 1
      %s219 = scalar_select %p218, %s17, 1
      %s220 = smul.addr %s219, 2
      %s221 = scalar_lea.vmem %s5, %s220
      %p222 = scmp.lt.s32.totalorder %s17, 1
      %s223 = scalar_select %p222, %s17, 1
      %s224 = smul.addr %s223, 32
      %s225 = smul.addr %s224, 8
      %s226 = scalar_lea.vmem %s0, %s225
      %p227 = scmp.lt.s32.totalorder %s17, 1
      %s228 = scalar_select %p227, %s17, 1
      %s229 = smul.addr %s228, 32
      %s230 = smul.addr %s229, 8
      %s231 = scalar_lea.vmem %s4, %s230
      %p232 = scmp.lt.s32.totalorder %s17, 1
      %s233 = scalar_select %p232, %s17, 1
      %s234 = smul.addr %s233, 2
      %s235 = scalar_lea.vmem %s5, %s234
      %v237 = vld [vmem:[%s226] sm:$0xff]
      %v238 = vld [vmem:[%s226 + $0x8] sm:$0xff]
      %v239 = vld [vmem:[%s226 + $0x10] sm:$0xff]
      %v240 = vld [vmem:[%s226 + $0x18] sm:$0xff]
      %v241 = vld [vmem:[%s226 + $0x20] sm:$0xff]
      %v242 = vld [vmem:[%s226 + $0x28] sm:$0xff]
      %v243 = vld [vmem:[%s226 + $0x30] sm:$0xff]
      %v244 = vld [vmem:[%s226 + $0x38] sm:$0xff]
      %v245 = vld [vmem:[%s226 + $0x40] sm:$0xff]
      %v246 = vld [vmem:[%s226 + $0x48] sm:$0xff]
      %v247 = vld [vmem:[%s226 + $0x50] sm:$0xff]
      %v248 = vld [vmem:[%s226 + $0x58] sm:$0xff]
      %v249 = vld [vmem:[%s226 + $0x60] sm:$0xff]
      %v250 = vld [vmem:[%s226 + $0x68] sm:$0xff]
      %v251 = vld [vmem:[%s226 + $0x70] sm:$0xff]
      %v252 = vld [vmem:[%s226 + $0x78] sm:$0xff]
      %v253 = vld [vmem:[%s226 + $0x80] sm:$0xff]
      %v254 = vld [vmem:[%s226 + $0x88] sm:$0xff]
      %v255 = vld [vmem:[%s226 + $0x90] sm:$0xff]
      %v256 = vld [vmem:[%s226 + $0x98] sm:$0xff]
      %v257 = vld [vmem:[%s226 + $0xa0] sm:$0xff]
      %v258 = vld [vmem:[%s226 + $0xa8] sm:$0xff]
      %v259 = vld [vmem:[%s226 + $0xb0] sm:$0xff]
      %v260 = vld [vmem:[%s226 + $0xb8] sm:$0xff]
      %v261 = vld [vmem:[%s226 + $0xc0] sm:$0xff]
      %v262 = vld [vmem:[%s226 + $0xc8] sm:$0xff]
      %v263 = vld [vmem:[%s226 + $0xd0] sm:$0xff]
      %v264 = vld [vmem:[%s226 + $0xd8] sm:$0xff]
      %v265 = vld [vmem:[%s226 + $0xe0] sm:$0xff]
      %v266 = vld [vmem:[%s226 + $0xe8] sm:$0xff]
      %v267 = vld [vmem:[%s226 + $0xf0] sm:$0xff]
      %v268 = vld [vmem:[%s226 + $0xf8] sm:$0xff]
      %v269 = vld [vmem:[%s1] sm:$0x1]
      %v271 = vlaneseq
      %v272 = vshrl.u32 %v271, 7
      %v273 = vsub.s32 0, %v272
      %v274 = vrot.slane %v269, %v273
      %v276 = vmul.f32 %v237, %v274
      %v277 = vmul.f32 %v238, %v274
      %v278 = vmul.f32 %v239, %v274
      %v279 = vmul.f32 %v240, %v274
      %v280 = vmul.f32 %v241, %v274
      %v281 = vmul.f32 %v242, %v274
      %v282 = vmul.f32 %v243, %v274
      %v283 = vmul.f32 %v244, %v274
      %v284 = vmul.f32 %v245, %v274
      %v285 = vmul.f32 %v246, %v274
      %v286 = vmul.f32 %v247, %v274
      %v287 = vmul.f32 %v248, %v274
      %v288 = vmul.f32 %v249, %v274
      %v289 = vmul.f32 %v250, %v274
      %v290 = vmul.f32 %v251, %v274
      %v291 = vmul.f32 %v252, %v274
      %v292 = vmul.f32 %v253, %v274
      %v293 = vmul.f32 %v254, %v274
      %v294 = vmul.f32 %v255, %v274
      %v295 = vmul.f32 %v256, %v274
      %v296 = vmul.f32 %v257, %v274
      %v297 = vmul.f32 %v258, %v274
      %v298 = vmul.f32 %v259, %v274
      %v299 = vmul.f32 %v260, %v274
      %v300 = vmul.f32 %v261, %v274
      %v301 = vmul.f32 %v262, %v274
      %v302 = vmul.f32 %v263, %v274
      %v303 = vmul.f32 %v264, %v274
      %v304 = vmul.f32 %v265, %v274
      %v305 = vmul.f32 %v266, %v274
      %v306 = vmul.f32 %v267, %v274
      %v307 = vmul.f32 %v268, %v274
      %v308 = vld [vmem:[%s2] sm:$0x1]
      %v310 = vlaneseq
      %v311 = vshrl.u32 %v310, 7
      %v312 = vsub.s32 0, %v311
      %v313 = vrot.slane %v308, %v312
      %v315 = vadd.f32 %v276, %v313
      %v316 = vadd.f32 %v277, %v313
      %v317 = vadd.f32 %v278, %v313
      %v318 = vadd.f32 %v279, %v313
      %v319 = vadd.f32 %v280, %v313
      %v320 = vadd.f32 %v281, %v313
      %v321 = vadd.f32 %v282, %v313
      %v322 = vadd.f32 %v283, %v313
      %v323 = vadd.f32 %v284, %v313
      %v324 = vadd.f32 %v285, %v313
      %v325 = vadd.f32 %v286, %v313
      %v326 = vadd.f32 %v287, %v313
      %v327 = vadd.f32 %v288, %v313
      %v328 = vadd.f32 %v289, %v313
      %v329 = vadd.f32 %v290, %v313
      %v330 = vadd.f32 %v291, %v313
      %v331 = vadd.f32 %v292, %v313
      %v332 = vadd.f32 %v293, %v313
      %v333 = vadd.f32 %v294, %v313
      %v334 = vadd.f32 %v295, %v313
      %v335 = vadd.f32 %v296, %v313
      %v336 = vadd.f32 %v297, %v313
      %v337 = vadd.f32 %v298, %v313
      %v338 = vadd.f32 %v299, %v313
      %v339 = vadd.f32 %v300, %v313
      %v340 = vadd.f32 %v301, %v313
      %v341 = vadd.f32 %v302, %v313
      %v342 = vadd.f32 %v303, %v313
      %v343 = vadd.f32 %v304, %v313
      %v344 = vadd.f32 %v305, %v313
      %v345 = vadd.f32 %v306, %v313
      %v346 = vadd.f32 %v307, %v313
      %v347 = vmax.f32 %v315, 0.0
      %v348 = vmax.f32 %v316, 0.0
      %v349 = vmax.f32 %v317, 0.0
      %v350 = vmax.f32 %v318, 0.0
      %v351 = vmax.f32 %v319, 0.0
      %v352 = vmax.f32 %v320, 0.0
      %v353 = vmax.f32 %v321, 0.0
      %v354 = vmax.f32 %v322, 0.0
      %v355 = vmax.f32 %v323, 0.0
      %v356 = vmax.f32 %v324, 0.0
      %v357 = vmax.f32 %v325, 0.0
      %v358 = vmax.f32 %v326, 0.0
      %v359 = vmax.f32 %v327, 0.0
      %v360 = vmax.f32 %v328, 0.0
      %v361 = vmax.f32 %v329, 0.0
      %v362 = vmax.f32 %v330, 0.0
      %v363 = vmax.f32 %v331, 0.0
      %v364 = vmax.f32 %v332, 0.0
      %v365 = vmax.f32 %v333, 0.0
      %v366 = vmax.f32 %v334, 0.0
      %v367 = vmax.f32 %v335, 0.0
      %v368 = vmax.f32 %v336, 0.0
      %v369 = vmax.f32 %v337, 0.0
      %v370 = vmax.f32 %v338, 0.0
      %v371 = vmax.f32 %v339, 0.0
      %v372 = vmax.f32 %v340, 0.0
      %v373 = vmax.f32 %v341, 0.0
      %v374 = vmax.f32 %v342, 0.0
      %v375 = vmax.f32 %v343, 0.0
      %v376 = vmax.f32 %v344, 0.0
      %v377 = vmax.f32 %v345, 0.0
      %v378 = vmax.f32 %v346, 0.0
      %vm379 = vcmask 64512
      %380 = vst.msk [vmem:[#allocation2] sm:$0xff] %vm379, 0.0
      %381 = vst.msk [vmem:[#allocation2 + $0x8] sm:$0xff] %vm379, 0.0
      %vm382 = vcmask 58368
      %383 = vst.msk [vmem:[#allocation2 + $0x10] sm:$0x3] %vm382, 0.0
      %s384 = scalar_lea.vmem [#allocation2], 408
      %385 = vst.msk [vmem:[%s384] sm:$0xff] %vm379, 0.0
      %386 = vst.msk [vmem:[%s384 + $0x8] sm:$0xff] %vm379, 0.0
      %387 = vst.msk [vmem:[%s384 + $0x10] sm:$0x3] %vm382, 0.0
      %vm388 = vcmask 57344
      %389 = vst.msk [vmem:[#allocation2] sm:$0x1] %vm388, 0.0
      %390 = vst.msk [vmem:[#allocation2 + $0x18] sm:$0x1] %vm388, 0.0
      %391 = vst.msk [vmem:[#allocation2 + $0x30] sm:$0x1] %vm388, 0.0
      %392 = vst.msk [vmem:[#allocation2 + $0x48] sm:$0x1] %vm388, 0.0
      %393 = vst.msk [vmem:[#allocation2 + $0x60] sm:$0x1] %vm388, 0.0
      %394 = vst.msk [vmem:[#allocation2 + $0x78] sm:$0x1] %vm388, 0.0
      %395 = vst.msk [vmem:[#allocation2 + $0x90] sm:$0x1] %vm388, 0.0
      %396 = vst.msk [vmem:[#allocation2 + $0xa8] sm:$0x1] %vm388, 0.0
      %397 = vst.msk [vmem:[#allocation2 + $0xc0] sm:$0x1] %vm388, 0.0
      %398 = vst.msk [vmem:[#allocation2 + $0xd8] sm:$0x1] %vm388, 0.0
      %399 = vst.msk [vmem:[#allocation2 + $0xf0] sm:$0x1] %vm388, 0.0
      %400 = vst.msk [vmem:[#allocation2 + $0x108] sm:$0x1] %vm388, 0.0
      %401 = vst.msk [vmem:[#allocation2 + $0x120] sm:$0x1] %vm388, 0.0
      %402 = vst.msk [vmem:[#allocation2 + $0x138] sm:$0x1] %vm388, 0.0
      %403 = vst.msk [vmem:[#allocation2 + $0x150] sm:$0x1] %vm388, 0.0
      %404 = vst.msk [vmem:[#allocation2 + $0x168] sm:$0x1] %vm388, 0.0
      %405 = vst.msk [vmem:[#allocation2 + $0x180] sm:$0x1] %vm388, 0.0
      %406 = vst.msk [vmem:[#allocation2 + $0x198] sm:$0x1] %vm388, 0.0
      %407 = vst.msk [vmem:[#allocation2 + $0x11] sm:$0x1] %vm388, 0.0
      %408 = vst.msk [vmem:[#allocation2 + $0x29] sm:$0x1] %vm388, 0.0
      %409 = vst.msk [vmem:[#allocation2 + $0x41] sm:$0x1] %vm388, 0.0
      %410 = vst.msk [vmem:[#allocation2 + $0x59] sm:$0x1] %vm388, 0.0
      %411 = vst.msk [vmem:[#allocation2 + $0x71] sm:$0x1] %vm388, 0.0
      %412 = vst.msk [vmem:[#allocation2 + $0x89] sm:$0x1] %vm388, 0.0
      %413 = vst.msk [vmem:[#allocation2 + $0xa1] sm:$0x1] %vm388, 0.0
      %414 = vst.msk [vmem:[#allocation2 + $0xb9] sm:$0x1] %vm388, 0.0
      %415 = vst.msk [vmem:[#allocation2 + $0xd1] sm:$0x1] %vm388, 0.0
      %416 = vst.msk [vmem:[#allocation2 + $0xe9] sm:$0x1] %vm388, 0.0
      %417 = vst.msk [vmem:[#allocation2 + $0x101] sm:$0x1] %vm388, 0.0
      %418 = vst.msk [vmem:[#allocation2 + $0x119] sm:$0x1] %vm388, 0.0
      %419 = vst.msk [vmem:[#allocation2 + $0x131] sm:$0x1] %vm388, 0.0
      %420 = vst.msk [vmem:[#allocation2 + $0x149] sm:$0x1] %vm388, 0.0
      %421 = vst.msk [vmem:[#allocation2 + $0x161] sm:$0x1] %vm388, 0.0
      %422 = vst.msk [vmem:[#allocation2 + $0x179] sm:$0x1] %vm388, 0.0
      %423 = vst.msk [vmem:[#allocation2 + $0x191] sm:$0x1] %vm388, 0.0
      %424 = vst.msk [vmem:[#allocation2 + $0x1a9] sm:$0x1] %vm388, 0.0
      %s425 = scalar_lea.vmem [#allocation2], 24
      %426 = vst.msk [vmem:[%s425 + $0x1] sm:$0xff] %vm379, %v347
      %427 = vst.msk [vmem:[%s425 + $0x9] sm:$0xff] %vm379, %v348
      %428 = vst.msk [vmem:[%s425 + $0x19] sm:$0xff] %vm379, %v349
      %429 = vst.msk [vmem:[%s425 + $0x21] sm:$0xff] %vm379, %v350
      %430 = vst.msk [vmem:[%s425 + $0x31] sm:$0xff] %vm379, %v351
      %431 = vst.msk [vmem:[%s425 + $0x39] sm:$0xff] %vm379, %v352
      %432 = vst.msk [vmem:[%s425 + $0x49] sm:$0xff] %vm379, %v353
      %433 = vst.msk [vmem:[%s425 + $0x51] sm:$0xff] %vm379, %v354
      %434 = vst.msk [vmem:[%s425 + $0x61] sm:$0xff] %vm379, %v355
      %435 = vst.msk [vmem:[%s425 + $0x69] sm:$0xff] %vm379, %v356
      %436 = vst.msk [vmem:[%s425 + $0x79] sm:$0xff] %vm379, %v357
      %437 = vst.msk [vmem:[%s425 + $0x81] sm:$0xff] %vm379, %v358
      %438 = vst.msk [vmem:[%s425 + $0x91] sm:$0xff] %vm379, %v359
      %439 = vst.msk [vmem:[%s425 + $0x99] sm:$0xff] %vm379, %v360
      %440 = vst.msk [vmem:[%s425 + $0xa9] sm:$0xff] %vm379, %v361
      %441 = vst.msk [vmem:[%s425 + $0xb1] sm:$0xff] %vm379, %v362
      %442 = vst.msk [vmem:[%s425 + $0xc1] sm:$0xff] %vm379, %v363
      %443 = vst.msk [vmem:[%s425 + $0xc9] sm:$0xff] %vm379, %v364
      %444 = vst.msk [vmem:[%s425 + $0xd9] sm:$0xff] %vm379, %v365
      %445 = vst.msk [vmem:[%s425 + $0xe1] sm:$0xff] %vm379, %v366
      %446 = vst.msk [vmem:[%s425 + $0xf1] sm:$0xff] %vm379, %v367
      %447 = vst.msk [vmem:[%s425 + $0xf9] sm:$0xff] %vm379, %v368
      %448 = vst.msk [vmem:[%s425 + $0x109] sm:$0xff] %vm379, %v369
      %449 = vst.msk [vmem:[%s425 + $0x111] sm:$0xff] %vm379, %v370
      %450 = vst.msk [vmem:[%s425 + $0x121] sm:$0xff] %vm379, %v371
      %451 = vst.msk [vmem:[%s425 + $0x129] sm:$0xff] %vm379, %v372
      %452 = vst.msk [vmem:[%s425 + $0x139] sm:$0xff] %vm379, %v373
      %453 = vst.msk [vmem:[%s425 + $0x141] sm:$0xff] %vm379, %v374
      %454 = vst.msk [vmem:[%s425 + $0x151] sm:$0xff] %vm379, %v375
      %455 = vst.msk [vmem:[%s425 + $0x159] sm:$0xff] %vm379, %v376
      %456 = vst.msk [vmem:[%s425 + $0x169] sm:$0xff] %vm379, %v377
      %457 = vst.msk [vmem:[%s425 + $0x171] sm:$0xff] %vm379, %v378
      %v458 = vld [vmem:[#allocation2] sm:$0xff]
      %v459 = vld [vmem:[#allocation2 + $0x8] sm:$0xff]
      %v460 = vld [vmem:[#allocation2 + $0x18] sm:$0xff]
      %v461 = vld [vmem:[#allocation2 + $0x20] sm:$0xff]
      %v462 = vld [vmem:[#allocation2 + $0x30] sm:$0xff]
      %v463 = vld [vmem:[#allocation2 + $0x38] sm:$0xff]
      %v464 = vld [vmem:[#allocation2 + $0x48] sm:$0xff]
      %v465 = vld [vmem:[#allocation2 + $0x50] sm:$0xff]
      %v466 = vld [vmem:[#allocation2 + $0x60] sm:$0xff]
      %v467 = vld [vmem:[#allocation2 + $0x68] sm:$0xff]
      %v468 = vld [vmem:[#allocation2 + $0x78] sm:$0xff]
      %v469 = vld [vmem:[#allocation2 + $0x80] sm:$0xff]
      %v470 = vld [vmem:[#allocation2 + $0x90] sm:$0xff]
      %v471 = vld [vmem:[#allocation2 + $0x98] sm:$0xff]
      %v472 = vld [vmem:[#allocation2 + $0xa8] sm:$0xff]
      %v473 = vld [vmem:[#allocation2 + $0xb0] sm:$0xff]
      %v474 = vld [vmem:[#allocation2 + $0xc0] sm:$0xff]
      %v475 = vld [vmem:[#allocation2 + $0xc8] sm:$0xff]
      %v476 = vld [vmem:[#allocation2 + $0xd8] sm:$0xff]
      %v477 = vld [vmem:[#allocation2 + $0xe0] sm:$0xff]
      %v478 = vld [vmem:[#allocation2 + $0xf0] sm:$0xff]
      %v479 = vld [vmem:[#allocation2 + $0xf8] sm:$0xff]
      %v480 = vld [vmem:[#allocation2 + $0x108] sm:$0xff]
      %v481 = vld [vmem:[#allocation2 + $0x110] sm:$0xff]
      %v482 = vld [vmem:[#allocation2 + $0x120] sm:$0xff]
      %v483 = vld [vmem:[#allocation2 + $0x128] sm:$0xff]
      %v484 = vld [vmem:[#allocation2 + $0x138] sm:$0xff]
      %v485 = vld [vmem:[#allocation2 + $0x140] sm:$0xff]
      %v486 = vld [vmem:[#allocation2 + $0x150] sm:$0xff]
      %v487 = vld [vmem:[#allocation2 + $0x158] sm:$0xff]
      %v488 = vld [vmem:[#allocation2 + $0x168] sm:$0xff]
      %v489 = vld [vmem:[#allocation2 + $0x170] sm:$0xff]
      %v490 = vpack.c.bf16 %v459, %v458
      %v491 = vpack.c.bf16 %v461, %v460
      %v492 = vpack.c.bf16 %v463, %v462
      %v493 = vpack.c.bf16 %v465, %v464
      %v494 = vpack.c.bf16 %v467, %v466
      %v495 = vpack.c.bf16 %v469, %v468
      %v496 = vpack.c.bf16 %v471, %v470
      %v497 = vpack.c.bf16 %v473, %v472
      %v498 = vpack.c.bf16 %v475, %v474
      %v499 = vpack.c.bf16 %v477, %v476
      %v500 = vpack.c.bf16 %v479, %v478
      %v501 = vpack.c.bf16 %v481, %v480
      %v502 = vpack.c.bf16 %v483, %v482
      %v503 = vpack.c.bf16 %v485, %v484
      %v504 = vpack.c.bf16 %v487, %v486
      %v505 = vpack.c.bf16 %v489, %v488
      %506 = vst.msk [vmem:[#allocation3] sm:$0xff] %vm379, %v490
      %507 = vst.msk [vmem:[#allocation3 + $0x8] sm:$0xff] %vm379, %v491
      %508 = vst.msk [vmem:[#allocation3 + $0x10] sm:$0xff] %vm379, %v492
      %509 = vst.msk [vmem:[#allocation3 + $0x18] sm:$0xff] %vm379, %v493
      %510 = vst.msk [vmem:[#allocation3 + $0x20] sm:$0xff] %vm379, %v494
      %511 = vst.msk [vmem:[#allocation3 + $0x28] sm:$0xff] %vm379, %v495
      %512 = vst.msk [vmem:[#allocation3 + $0x30] sm:$0xff] %vm379, %v496
      %513 = vst.msk [vmem:[#allocation3 + $0x38] sm:$0xff] %vm379, %v497
      %514 = vst.msk [vmem:[#allocation3 + $0x40] sm:$0xff] %vm379, %v498
      %515 = vst.msk [vmem:[#allocation3 + $0x48] sm:$0xff] %vm379, %v499
      %516 = vst.msk [vmem:[#allocation3 + $0x50] sm:$0xff] %vm379, %v500
      %517 = vst.msk [vmem:[#allocation3 + $0x58] sm:$0xff] %vm379, %v501
      %518 = vst.msk [vmem:[#allocation3 + $0x60] sm:$0xff] %vm379, %v502
      %519 = vst.msk [vmem:[#allocation3 + $0x68] sm:$0xff] %vm379, %v503
      %520 = vst.msk [vmem:[#allocation3 + $0x70] sm:$0xff] %vm379, %v504
      %521 = vst.msk [vmem:[#allocation3 + $0x78] sm:$0xff] %vm379, %v505
      %v522 = vld [vmem:[#allocation2 + $0x1] sm:$0xff]
      %v523 = vld [vmem:[#allocation2 + $0x9] sm:$0xff]
      %v524 = vld [vmem:[#allocation2 + $0x19] sm:$0xff]
      %v525 = vld [vmem:[#allocation2 + $0x21] sm:$0xff]
      %v526 = vld [vmem:[#allocation2 + $0x31] sm:$0xff]
      %v527 = vld [vmem:[#allocation2 + $0x39] sm:$0xff]
      %v528 = vld [vmem:[#allocation2 + $0x49] sm:$0xff]
      %v529 = vld [vmem:[#allocation2 + $0x51] sm:$0xff]
      %v530 = vld [vmem:[#allocation2 + $0x61] sm:$0xff]
      %v531 = vld [vmem:[#allocation2 + $0x69] sm:$0xff]
      %v532 = vld [vmem:[#allocation2 + $0x79] sm:$0xff]
      %v533 = vld [vmem:[#allocation2 + $0x81] sm:$0xff]
      %v534 = vld [vmem:[#allocation2 + $0x91] sm:$0xff]
      %v535 = vld [vmem:[#allocation2 + $0x99] sm:$0xff]
      %v536 = vld [vmem:[#allocation2 + $0xa9] sm:$0xff]
      %v537 = vld [vmem:[#allocation2 + $0xb1] sm:$0xff]
      %v538 = vld [vmem:[#allocation2 + $0xc1] sm:$0xff]
      %v539 = vld [vmem:[#allocation2 + $0xc9] sm:$0xff]
      %v540 = vld [vmem:[#allocation2 + $0xd9] sm:$0xff]
      %v541 = vld [vmem:[#allocation2 + $0xe1] sm:$0xff]
      %v542 = vld [vmem:[#allocation2 + $0xf1] sm:$0xff]
      %v543 = vld [vmem:[#allocation2 + $0xf9] sm:$0xff]
      %v544 = vld [vmem:[#allocation2 + $0x109] sm:$0xff]
      %v545 = vld [vmem:[#allocation2 + $0x111] sm:$0xff]
      %v546 = vld [vmem:[#allocation2 + $0x121] sm:$0xff]
      %v547 = vld [vmem:[#allocation2 + $0x129] sm:$0xff]
      %v548 = vld [vmem:[#allocation2 + $0x139] sm:$0xff]
      %v549 = vld [vmem:[#allocation2 + $0x141] sm:$0xff]
      %v550 = vld [vmem:[#allocation2 + $0x151] sm:$0xff]
      %v551 = vld [vmem:[#allocation2 + $0x159] sm:$0xff]
      %v552 = vld [vmem:[#allocation2 + $0x169] sm:$0xff]
      %v553 = vld [vmem:[#allocation2 + $0x171] sm:$0xff]
      %v554 = vpack.c.bf16 %v523, %v522
      %v555 = vpack.c.bf16 %v525, %v524
      %v556 = vpack.c.bf16 %v527, %v526
      %v557 = vpack.c.bf16 %v529, %v528
      %v558 = vpack.c.bf16 %v531, %v530
      %v559 = vpack.c.bf16 %v533, %v532
      %v560 = vpack.c.bf16 %v535, %v534
      %v561 = vpack.c.bf16 %v537, %v536
      %v562 = vpack.c.bf16 %v539, %v538
      %v563 = vpack.c.bf16 %v541, %v540
      %v564 = vpack.c.bf16 %v543, %v542
      %v565 = vpack.c.bf16 %v545, %v544
      %v566 = vpack.c.bf16 %v547, %v546
      %v567 = vpack.c.bf16 %v549, %v548
      %v568 = vpack.c.bf16 %v551, %v550
      %v569 = vpack.c.bf16 %v553, %v552
      %586 = vrot.lane.b32.xlu0 %v554, 8
      %v587 = vpop.permute.xlu0 %586
      %588 = vrot.lane.b32.xlu0 %v555, 8
      %v589 = vpop.permute.xlu0 %588
      %590 = vrot.lane.b32.xlu0 %v556, 8
      %v591 = vpop.permute.xlu0 %590
      %592 = vrot.lane.b32.xlu0 %v557, 8
      %v593 = vpop.permute.xlu0 %592
      %594 = vrot.lane.b32.xlu0 %v558, 8
      %v595 = vpop.permute.xlu0 %594
      %596 = vrot.lane.b32.xlu0 %v559, 8
      %v597 = vpop.permute.xlu0 %596
      %598 = vrot.lane.b32.xlu0 %v560, 8
      %v599 = vpop.permute.xlu0 %598
      %600 = vrot.lane.b32.xlu0 %v561, 8
      %v601 = vpop.permute.xlu0 %600
      %602 = vrot.lane.b32.xlu0 %v562, 8
      %v603 = vpop.permute.xlu0 %602
      %604 = vrot.lane.b32.xlu0 %v563, 8
      %v605 = vpop.permute.xlu0 %604
      %606 = vrot.lane.b32.xlu0 %v564, 8
      %v607 = vpop.permute.xlu0 %606
      %608 = vrot.lane.b32.xlu0 %v565, 8
      %v609 = vpop.permute.xlu0 %608
      %610 = vrot.lane.b32.xlu0 %v566, 8
      %v611 = vpop.permute.xlu0 %610
      %612 = vrot.lane.b32.xlu0 %v567, 8
      %v613 = vpop.permute.xlu0 %612
      %614 = vrot.lane.b32.xlu0 %v568, 8
      %v615 = vpop.permute.xlu0 %614
      %616 = vrot.lane.b32.xlu0 %v569, 8
      %v617 = vpop.permute.xlu0 %616
      %vm634 = vcmask 130112
      %635 = vst.msk [vmem:[#allocation3] sm:$0xff] %vm634, %v587
      %636 = vst.msk [vmem:[#allocation3 + $0x8] sm:$0xff] %vm634, %v589
      %637 = vst.msk [vmem:[#allocation3 + $0x10] sm:$0xff] %vm634, %v591
      %638 = vst.msk [vmem:[#allocation3 + $0x18] sm:$0xff] %vm634, %v593
      %639 = vst.msk [vmem:[#allocation3 + $0x20] sm:$0xff] %vm634, %v595
      %640 = vst.msk [vmem:[#allocation3 + $0x28] sm:$0xff] %vm634, %v597
      %641 = vst.msk [vmem:[#allocation3 + $0x30] sm:$0xff] %vm634, %v599
      %642 = vst.msk [vmem:[#allocation3 + $0x38] sm:$0xff] %vm634, %v601
      %643 = vst.msk [vmem:[#allocation3 + $0x40] sm:$0xff] %vm634, %v603
      %644 = vst.msk [vmem:[#allocation3 + $0x48] sm:$0xff] %vm634, %v605
      %645 = vst.msk [vmem:[#allocation3 + $0x50] sm:$0xff] %vm634, %v607
      %646 = vst.msk [vmem:[#allocation3 + $0x58] sm:$0xff] %vm634, %v609
      %647 = vst.msk [vmem:[#allocation3 + $0x60] sm:$0xff] %vm634, %v611
      %648 = vst.msk [vmem:[#allocation3 + $0x68] sm:$0xff] %vm634, %v613
      %649 = vst.msk [vmem:[#allocation3 + $0x70] sm:$0xff] %vm634, %v615
      %650 = vst.msk [vmem:[#allocation3 + $0x78] sm:$0xff] %vm634, %v617
      %v651 = vld [vmem:[#allocation2 + $0x2] sm:$0xff]
      %v652 = vld [vmem:[#allocation2 + $0xa] sm:$0xff]
      %v653 = vld [vmem:[#allocation2 + $0x1a] sm:$0xff]
      %v654 = vld [vmem:[#allocation2 + $0x22] sm:$0xff]
      %v655 = vld [vmem:[#allocation2 + $0x32] sm:$0xff]
      %v656 = vld [vmem:[#allocation2 + $0x3a] sm:$0xff]
      %v657 = vld [vmem:[#allocation2 + $0x4a] sm:$0xff]
      %v658 = vld [vmem:[#allocation2 + $0x52] sm:$0xff]
      %v659 = vld [vmem:[#allocation2 + $0x62] sm:$0xff]
      %v660 = vld [vmem:[#allocation2 + $0x6a] sm:$0xff]
      %v661 = vld [vmem:[#allocation2 + $0x7a] sm:$0xff]
      %v662 = vld [vmem:[#allocation2 + $0x82] sm:$0xff]
      %v663 = vld [vmem:[#allocation2 + $0x92] sm:$0xff]
      %v664 = vld [vmem:[#allocation2 + $0x9a] sm:$0xff]
      %v665 = vld [vmem:[#allocation2 + $0xaa] sm:$0xff]
      %v666 = vld [vmem:[#allocation2 + $0xb2] sm:$0xff]
      %v667 = vld [vmem:[#allocation2 + $0xc2] sm:$0xff]
      %v668 = vld [vmem:[#allocation2 + $0xca] sm:$0xff]
      %v669 = vld [vmem:[#allocation2 + $0xda] sm:$0xff]
      %v670 = vld [vmem:[#allocation2 + $0xe2] sm:$0xff]
      %v671 = vld [vmem:[#allocation2 + $0xf2] sm:$0xff]
      %v672 = vld [vmem:[#allocation2 + $0xfa] sm:$0xff]
      %v673 = vld [vmem:[#allocation2 + $0x10a] sm:$0xff]
      %v674 = vld [vmem:[#allocation2 + $0x112] sm:$0xff]
      %v675 = vld [vmem:[#allocation2 + $0x122] sm:$0xff]
      %v676 = vld [vmem:[#allocation2 + $0x12a] sm:$0xff]
      %v677 = vld [vmem:[#allocation2 + $0x13a] sm:$0xff]
      %v678 = vld [vmem:[#allocation2 + $0x142] sm:$0xff]
      %v679 = vld [vmem:[#allocation2 + $0x152] sm:$0xff]
      %v680 = vld [vmem:[#allocation2 + $0x15a] sm:$0xff]
      %v681 = vld [vmem:[#allocation2 + $0x16a] sm:$0xff]
      %v682 = vld [vmem:[#allocation2 + $0x172] sm:$0xff]
      %v683 = vpack.c.bf16 %v652, %v651
      %v684 = vpack.c.bf16 %v654, %v653
      %v685 = vpack.c.bf16 %v656, %v655
      %v686 = vpack.c.bf16 %v658, %v657
      %v687 = vpack.c.bf16 %v660, %v659
      %v688 = vpack.c.bf16 %v662, %v661
      %v689 = vpack.c.bf16 %v664, %v663
      %v690 = vpack.c.bf16 %v666, %v665
      %v691 = vpack.c.bf16 %v668, %v667
      %v692 = vpack.c.bf16 %v670, %v669
      %v693 = vpack.c.bf16 %v672, %v671
      %v694 = vpack.c.bf16 %v674, %v673
      %v695 = vpack.c.bf16 %v676, %v675
      %v696 = vpack.c.bf16 %v678, %v677
      %v697 = vpack.c.bf16 %v680, %v679
      %v698 = vpack.c.bf16 %v682, %v681
      %715 = vrot.lane.b32.xlu0 %v683, 16
      %v716 = vpop.permute.xlu0 %715
      %717 = vrot.lane.b32.xlu0 %v684, 16
      %v718 = vpop.permute.xlu0 %717
      %719 = vrot.lane.b32.xlu0 %v685, 16
      %v720 = vpop.permute.xlu0 %719
      %721 = vrot.lane.b32.xlu0 %v686, 16
      %v722 = vpop.permute.xlu0 %721
      %723 = vrot.lane.b32.xlu0 %v687, 16
      %v724 = vpop.permute.xlu0 %723
      %725 = vrot.lane.b32.xlu0 %v688, 16
      %v726 = vpop.permute.xlu0 %725
      %727 = vrot.lane.b32.xlu0 %v689, 16
      %v728 = vpop.permute.xlu0 %727
      %729 = vrot.lane.b32.xlu0 %v690, 16
      %v730 = vpop.permute.xlu0 %729
      %731 = vrot.lane.b32.xlu0 %v691, 16
      %v732 = vpop.permute.xlu0 %731
      %733 = vrot.lane.b32.xlu0 %v692, 16
      %v734 = vpop.permute.xlu0 %733
      %735 = vrot.lane.b32.xlu0 %v693, 16
      %v736 = vpop.permute.xlu0 %735
      %737 = vrot.lane.b32.xlu0 %v694, 16
      %v738 = vpop.permute.xlu0 %737
      %739 = vrot.lane.b32.xlu0 %v695, 16
      %v740 = vpop.permute.xlu0 %739
      %741 = vrot.lane.b32.xlu0 %v696, 16
      %v742 = vpop.permute.xlu0 %741
      %743 = vrot.lane.b32.xlu0 %v697, 16
      %v744 = vpop.permute.xlu0 %743
      %745 = vrot.lane.b32.xlu0 %v698, 16
      %v746 = vpop.permute.xlu0 %745
      %vm763 = vcmask 195712
      %764 = vst.msk [vmem:[#allocation3] sm:$0xff] %vm763, %v716
      %765 = vst.msk [vmem:[#allocation3 + $0x8] sm:$0xff] %vm763, %v718
      %766 = vst.msk [vmem:[#allocation3 + $0x10] sm:$0xff] %vm763, %v720
      %767 = vst.msk [vmem:[#allocation3 + $0x18] sm:$0xff] %vm763, %v722
      %768 = vst.msk [vmem:[#allocation3 + $0x20] sm:$0xff] %vm763, %v724
      %769 = vst.msk [vmem:[#allocation3 + $0x28] sm:$0xff] %vm763, %v726
      %770 = vst.msk [vmem:[#allocation3 + $0x30] sm:$0xff] %vm763, %v728
      %771 = vst.msk [vmem:[#allocation3 + $0x38] sm:$0xff] %vm763, %v730
      %772 = vst.msk [vmem:[#allocation3 + $0x40] sm:$0xff] %vm763, %v732
      %773 = vst.msk [vmem:[#allocation3 + $0x48] sm:$0xff] %vm763, %v734
      %774 = vst.msk [vmem:[#allocation3 + $0x50] sm:$0xff] %vm763, %v736
      %775 = vst.msk [vmem:[#allocation3 + $0x58] sm:$0xff] %vm763, %v738
      %776 = vst.msk [vmem:[#allocation3 + $0x60] sm:$0xff] %vm763, %v740
      %777 = vst.msk [vmem:[#allocation3 + $0x68] sm:$0xff] %vm763, %v742
      %778 = vst.msk [vmem:[#allocation3 + $0x70] sm:$0xff] %vm763, %v744
      %779 = vst.msk [vmem:[#allocation3 + $0x78] sm:$0xff] %vm763, %v746
      %v780 = vld [vmem:[%s425] sm:$0xff]
      %v781 = vld [vmem:[%s425 + $0x8] sm:$0xff]
      %v782 = vld [vmem:[%s425 + $0x18] sm:$0xff]
      %v783 = vld [vmem:[%s425 + $0x20] sm:$0xff]
      %v784 = vld [vmem:[%s425 + $0x30] sm:$0xff]
      %v785 = vld [vmem:[%s425 + $0x38] sm:$0xff]
      %v786 = vld [vmem:[%s425 + $0x48] sm:$0xff]
      %v787 = vld [vmem:[%s425 + $0x50] sm:$0xff]
      %v788 = vld [vmem:[%s425 + $0x60] sm:$0xff]
      %v789 = vld [vmem:[%s425 + $0x68] sm:$0xff]
      %v790 = vld [vmem:[%s425 + $0x78] sm:$0xff]
      %v791 = vld [vmem:[%s425 + $0x80] sm:$0xff]
      %v792 = vld [vmem:[%s425 + $0x90] sm:$0xff]
      %v793 = vld [vmem:[%s425 + $0x98] sm:$0xff]
      %v794 = vld [vmem:[%s425 + $0xa8] sm:$0xff]
      %v795 = vld [vmem:[%s425 + $0xb0] sm:$0xff]
      %v796 = vld [vmem:[%s425 + $0xc0] sm:$0xff]
      %v797 = vld [vmem:[%s425 + $0xc8] sm:$0xff]
      %v798 = vld [vmem:[%s425 + $0xd8] sm:$0xff]
      %v799 = vld [vmem:[%s425 + $0xe0] sm:$0xff]
      %v800 = vld [vmem:[%s425 + $0xf0] sm:$0xff]
      %v801 = vld [vmem:[%s425 + $0xf8] sm:$0xff]
      %v802 = vld [vmem:[%s425 + $0x108] sm:$0xff]
      %v803 = vld [vmem:[%s425 + $0x110] sm:$0xff]
      %v804 = vld [vmem:[%s425 + $0x120] sm:$0xff]
      %v805 = vld [vmem:[%s425 + $0x128] sm:$0xff]
      %v806 = vld [vmem:[%s425 + $0x138] sm:$0xff]
      %v807 = vld [vmem:[%s425 + $0x140] sm:$0xff]
      %v808 = vld [vmem:[%s425 + $0x150] sm:$0xff]
      %v809 = vld [vmem:[%s425 + $0x158] sm:$0xff]
      %v810 = vld [vmem:[%s425 + $0x168] sm:$0xff]
      %v811 = vld [vmem:[%s425 + $0x170] sm:$0xff]
      %v812 = vpack.c.bf16 %v781, %v780
      %v813 = vpack.c.bf16 %v783, %v782
      %v814 = vpack.c.bf16 %v785, %v784
      %v815 = vpack.c.bf16 %v787, %v786
      %v816 = vpack.c.bf16 %v789, %v788
      %v817 = vpack.c.bf16 %v791, %v790
      %v818 = vpack.c.bf16 %v793, %v792
      %v819 = vpack.c.bf16 %v795, %v794
      %v820 = vpack.c.bf16 %v797, %v796
      %v821 = vpack.c.bf16 %v799, %v798
      %v822 = vpack.c.bf16 %v801, %v800
      %v823 = vpack.c.bf16 %v803, %v802
      %v824 = vpack.c.bf16 %v805, %v804
      %v825 = vpack.c.bf16 %v807, %v806
      %v826 = vpack.c.bf16 %v809, %v808
      %v827 = vpack.c.bf16 %v811, %v810
      %844 = vrot.lane.b32.xlu0 %v812, 24
      %v845 = vpop.permute.xlu0 %844
      %846 = vrot.lane.b32.xlu0 %v813, 24
      %v847 = vpop.permute.xlu0 %846
      %848 = vrot.lane.b32.xlu0 %v814, 24
      %v849 = vpop.permute.xlu0 %848
      %850 = vrot.lane.b32.xlu0 %v815, 24
      %v851 = vpop.permute.xlu0 %850
      %852 = vrot.lane.b32.xlu0 %v816, 24
      %v853 = vpop.permute.xlu0 %852
      %854 = vrot.lane.b32.xlu0 %v817, 24
      %v855 = vpop.permute.xlu0 %854
      %856 = vrot.lane.b32.xlu0 %v818, 24
      %v857 = vpop.permute.xlu0 %856
      %858 = vrot.lane.b32.xlu0 %v819, 24
      %v859 = vpop.permute.xlu0 %858
      %860 = vrot.lane.b32.xlu0 %v820, 24
      %v861 = vpop.permute.xlu0 %860
      %862 = vrot.lane.b32.xlu0 %v821, 24
      %v863 = vpop.permute.xlu0 %862
      %864 = vrot.lane.b32.xlu0 %v822, 24
      %v865 = vpop.permute.xlu0 %864
      %866 = vrot.lane.b32.xlu0 %v823, 24
      %v867 = vpop.permute.xlu0 %866
      %868 = vrot.lane.b32.xlu0 %v824, 24
      %v869 = vpop.permute.xlu0 %868
      %870 = vrot.lane.b32.xlu0 %v825, 24
      %v871 = vpop.permute.xlu0 %870
      %872 = vrot.lane.b32.xlu0 %v826, 24
      %v873 = vpop.permute.xlu0 %872
      %874 = vrot.lane.b32.xlu0 %v827, 24
      %v875 = vpop.permute.xlu0 %874
      %vm892 = vcmask 261312
      %893 = vst.msk [vmem:[#allocation3] sm:$0xff] %vm892, %v845
      %894 = vst.msk [vmem:[#allocation3 + $0x8] sm:$0xff] %vm892, %v847
      %895 = vst.msk [vmem:[#allocation3 + $0x10] sm:$0xff] %vm892, %v849
      %896 = vst.msk [vmem:[#allocation3 + $0x18] sm:$0xff] %vm892, %v851
      %897 = vst.msk [vmem:[#allocation3 + $0x20] sm:$0xff] %vm892, %v853
      %898 = vst.msk [vmem:[#allocation3 + $0x28] sm:$0xff] %vm892, %v855
      %899 = vst.msk [vmem:[#allocation3 + $0x30] sm:$0xff] %vm892, %v857
      %900 = vst.msk [vmem:[#allocation3 + $0x38] sm:$0xff] %vm892, %v859
      %901 = vst.msk [vmem:[#allocation3 + $0x40] sm:$0xff] %vm892, %v861
      %902 = vst.msk [vmem:[#allocation3 + $0x48] sm:$0xff] %vm892, %v863
      %903 = vst.msk [vmem:[#allocation3 + $0x50] sm:$0xff] %vm892, %v865
      %904 = vst.msk [vmem:[#allocation3 + $0x58] sm:$0xff] %vm892, %v867
      %905 = vst.msk [vmem:[#allocation3 + $0x60] sm:$0xff] %vm892, %v869
      %906 = vst.msk [vmem:[#allocation3 + $0x68] sm:$0xff] %vm892, %v871
      %907 = vst.msk [vmem:[#allocation3 + $0x70] sm:$0xff] %vm892, %v873
      %908 = vst.msk [vmem:[#allocation3 + $0x78] sm:$0xff] %vm892, %v875
      %v909 = vld [vmem:[%s425 + $0x1] sm:$0xff]
      %v910 = vld [vmem:[%s425 + $0x9] sm:$0xff]
      %v911 = vld [vmem:[%s425 + $0x19] sm:$0xff]
      %v912 = vld [vmem:[%s425 + $0x21] sm:$0xff]
      %v913 = vld [vmem:[%s425 + $0x31] sm:$0xff]
      %v914 = vld [vmem:[%s425 + $0x39] sm:$0xff]
      %v915 = vld [vmem:[%s425 + $0x49] sm:$0xff]
      %v916 = vld [vmem:[%s425 + $0x51] sm:$0xff]
      %v917 = vld [vmem:[%s425 + $0x61] sm:$0xff]
      %v918 = vld [vmem:[%s425 + $0x69] sm:$0xff]
      %v919 = vld [vmem:[%s425 + $0x79] sm:$0xff]
      %v920 = vld [vmem:[%s425 + $0x81] sm:$0xff]
      %v921 = vld [vmem:[%s425 + $0x91] sm:$0xff]
      %v922 = vld [vmem:[%s425 + $0x99] sm:$0xff]
      %v923 = vld [vmem:[%s425 + $0xa9] sm:$0xff]
      %v924 = vld [vmem:[%s425 + $0xb1] sm:$0xff]
      %v925 = vld [vmem:[%s425 + $0xc1] sm:$0xff]
      %v926 = vld [vmem:[%s425 + $0xc9] sm:$0xff]
      %v927 = vld [vmem:[%s425 + $0xd9] sm:$0xff]
      %v928 = vld [vmem:[%s425 + $0xe1] sm:$0xff]
      %v929 = vld [vmem:[%s425 + $0xf1] sm:$0xff]
      %v930 = vld [vmem:[%s425 + $0xf9] sm:$0xff]
      %v931 = vld [vmem:[%s425 + $0x109] sm:$0xff]
      %v932 = vld [vmem:[%s425 + $0x111] sm:$0xff]
      %v933 = vld [vmem:[%s425 + $0x121] sm:$0xff]
      %v934 = vld [vmem:[%s425 + $0x129] sm:$0xff]
      %v935 = vld [vmem:[%s425 + $0x139] sm:$0xff]
      %v936 = vld [vmem:[%s425 + $0x141] sm:$0xff]
      %v937 = vld [vmem:[%s425 + $0x151] sm:$0xff]
      %v938 = vld [vmem:[%s425 + $0x159] sm:$0xff]
      %v939 = vld [vmem:[%s425 + $0x169] sm:$0xff]
      %v940 = vld [vmem:[%s425 + $0x171] sm:$0xff]
      %v941 = vpack.c.bf16 %v910, %v909
      %v942 = vpack.c.bf16 %v912, %v911
      %v943 = vpack.c.bf16 %v914, %v913
      %v944 = vpack.c.bf16 %v916, %v915
      %v945 = vpack.c.bf16 %v918, %v917
      %v946 = vpack.c.bf16 %v920, %v919
      %v947 = vpack.c.bf16 %v922, %v921
      %v948 = vpack.c.bf16 %v924, %v923
      %v949 = vpack.c.bf16 %v926, %v925
      %v950 = vpack.c.bf16 %v928, %v927
      %v951 = vpack.c.bf16 %v930, %v929
      %v952 = vpack.c.bf16 %v932, %v931
      %v953 = vpack.c.bf16 %v934, %v933
      %v954 = vpack.c.bf16 %v936, %v935
      %v955 = vpack.c.bf16 %v938, %v937
      %v956 = vpack.c.bf16 %v940, %v939
      %973 = vrot.lane.b32.xlu0 %v941, 32
      %v974 = vpop.permute.xlu0 %973
      %975 = vrot.lane.b32.xlu0 %v942, 32
      %v976 = vpop.permute.xlu0 %975
      %977 = vrot.lane.b32.xlu0 %v943, 32
      %v978 = vpop.permute.xlu0 %977
      %979 = vrot.lane.b32.xlu0 %v944, 32
      %v980 = vpop.permute.xlu0 %979
      %981 = vrot.lane.b32.xlu0 %v945, 32
      %v982 = vpop.permute.xlu0 %981
      %983 = vrot.lane.b32.xlu0 %v946, 32
      %v984 = vpop.permute.xlu0 %983
      %985 = vrot.lane.b32.xlu0 %v947, 32
      %v986 = vpop.permute.xlu0 %985
      %987 = vrot.lane.b32.xlu0 %v948, 32
      %v988 = vpop.permute.xlu0 %987
      %989 = vrot.lane.b32.xlu0 %v949, 32
      %v990 = vpop.permute.xlu0 %989
      %991 = vrot.lane.b32.xlu0 %v950, 32
      %v992 = vpop.permute.xlu0 %991
      %993 = vrot.lane.b32.xlu0 %v951, 32
      %v994 = vpop.permute.xlu0 %993
      %995 = vrot.lane.b32.xlu0 %v952, 32
      %v996 = vpop.permute.xlu0 %995
      %997 = vrot.lane.b32.xlu0 %v953, 32
      %v998 = vpop.permute.xlu0 %997
      %999 = vrot.lane.b32.xlu0 %v954, 32
      %v1000 = vpop.permute.xlu0 %999
      %1001 = vrot.lane.b32.xlu0 %v955, 32
      %v1002 = vpop.permute.xlu0 %1001
      %1003 = vrot.lane.b32.xlu0 %v956, 32
      %v1004 = vpop.permute.xlu0 %1003
      %vm1021 = vcmask 326912
      %1022 = vst.msk [vmem:[#allocation3] sm:$0xff] %vm1021, %v974
      %1023 = vst.msk [vmem:[#allocation3 + $0x8] sm:$0xff] %vm1021, %v976
      %1024 = vst.msk [vmem:[#allocation3 + $0x10] sm:$0xff] %vm1021, %v978
      %1025 = vst.msk [vmem:[#allocation3 + $0x18] sm:$0xff] %vm1021, %v980
      %1026 = vst.msk [vmem:[#allocation3 + $0x20] sm:$0xff] %vm1021, %v982
      %1027 = vst.msk [vmem:[#allocation3 + $0x28] sm:$0xff] %vm1021, %v984
      %1028 = vst.msk [vmem:[#allocation3 + $0x30] sm:$0xff] %vm1021, %v986
      %1029 = vst.msk [vmem:[#allocation3 + $0x38] sm:$0xff] %vm1021, %v988
      %1030 = vst.msk [vmem:[#allocation3 + $0x40] sm:$0xff] %vm1021, %v990
      %1031 = vst.msk [vmem:[#allocation3 + $0x48] sm:$0xff] %vm1021, %v992
      %1032 = vst.msk [vmem:[#allocation3 + $0x50] sm:$0xff] %vm1021, %v994
      %1033 = vst.msk [vmem:[#allocation3 + $0x58] sm:$0xff] %vm1021, %v996
      %1034 = vst.msk [vmem:[#allocation3 + $0x60] sm:$0xff] %vm1021, %v998
      %1035 = vst.msk [vmem:[#allocation3 + $0x68] sm:$0xff] %vm1021, %v1000
      %1036 = vst.msk [vmem:[#allocation3 + $0x70] sm:$0xff] %vm1021, %v1002
      %1037 = vst.msk [vmem:[#allocation3 + $0x78] sm:$0xff] %vm1021, %v1004
      %v1038 = vld [vmem:[%s425 + $0x2] sm:$0xff]
      %v1039 = vld [vmem:[%s425 + $0xa] sm:$0xff]
      %v1040 = vld [vmem:[%s425 + $0x1a] sm:$0xff]
      %v1041 = vld [vmem:[%s425 + $0x22] sm:$0xff]
      %v1042 = vld [vmem:[%s425 + $0x32] sm:$0xff]
      %v1043 = vld [vmem:[%s425 + $0x3a] sm:$0xff]
      %v1044 = vld [vmem:[%s425 + $0x4a] sm:$0xff]
      %v1045 = vld [vmem:[%s425 + $0x52] sm:$0xff]
      %v1046 = vld [vmem:[%s425 + $0x62] sm:$0xff]
      %v1047 = vld [vmem:[%s425 + $0x6a] sm:$0xff]
      %v1048 = vld [vmem:[%s425 + $0x7a] sm:$0xff]
      %v1049 = vld [vmem:[%s425 + $0x82] sm:$0xff]
      %v1050 = vld [vmem:[%s425 + $0x92] sm:$0xff]
      %v1051 = vld [vmem:[%s425 + $0x9a] sm:$0xff]
      %v1052 = vld [vmem:[%s425 + $0xaa] sm:$0xff]
      %v1053 = vld [vmem:[%s425 + $0xb2] sm:$0xff]
      %v1054 = vld [vmem:[%s425 + $0xc2] sm:$0xff]
      %v1055 = vld [vmem:[%s425 + $0xca] sm:$0xff]
      %v1056 = vld [vmem:[%s425 + $0xda] sm:$0xff]
      %v1057 = vld [vmem:[%s425 + $0xe2] sm:$0xff]
      %v1058 = vld [vmem:[%s425 + $0xf2] sm:$0xff]
      %v1059 = vld [vmem:[%s425 + $0xfa] sm:$0xff]
      %v1060 = vld [vmem:[%s425 + $0x10a] sm:$0xff]
      %v1061 = vld [vmem:[%s425 + $0x112] sm:$0xff]
      %v1062 = vld [vmem:[%s425 + $0x122] sm:$0xff]
      %v1063 = vld [vmem:[%s425 + $0x12a] sm:$0xff]
      %v1064 = vld [vmem:[%s425 + $0x13a] sm:$0xff]
      %v1065 = vld [vmem:[%s425 + $0x142] sm:$0xff]
      %v1066 = vld [vmem:[%s425 + $0x152] sm:$0xff]
      %v1067 = vld [vmem:[%s425 + $0x15a] sm:$0xff]
      %v1068 = vld [vmem:[%s425 + $0x16a] sm:$0xff]
      %v1069 = vld [vmem:[%s425 + $0x172] sm:$0xff]
      %v1070 = vpack.c.bf16 %v1039, %v1038
      %v1071 = vpack.c.bf16 %v1041, %v1040
      %v1072 = vpack.c.bf16 %v1043, %v1042
      %v1073 = vpack.c.bf16 %v1045, %v1044
      %v1074 = vpack.c.bf16 %v1047, %v1046
      %v1075 = vpack.c.bf16 %v1049, %v1048
      %v1076 = vpack.c.bf16 %v1051, %v1050
      %v1077 = vpack.c.bf16 %v1053, %v1052
      %v1078 = vpack.c.bf16 %v1055, %v1054
      %v1079 = vpack.c.bf16 %v1057, %v1056
      %v1080 = vpack.c.bf16 %v1059, %v1058
      %v1081 = vpack.c.bf16 %v1061, %v1060
      %v1082 = vpack.c.bf16 %v1063, %v1062
      %v1083 = vpack.c.bf16 %v1065, %v1064
      %v1084 = vpack.c.bf16 %v1067, %v1066
      %v1085 = vpack.c.bf16 %v1069, %v1068
      %1102 = vrot.lane.b32.xlu0 %v1070, 40
      %v1103 = vpop.permute.xlu0 %1102
      %1104 = vrot.lane.b32.xlu0 %v1071, 40
      %v1105 = vpop.permute.xlu0 %1104
      %1106 = vrot.lane.b32.xlu0 %v1072, 40
      %v1107 = vpop.permute.xlu0 %1106
      %1108 = vrot.lane.b32.xlu0 %v1073, 40
      %v1109 = vpop.permute.xlu0 %1108
      %1110 = vrot.lane.b32.xlu0 %v1074, 40
      %v1111 = vpop.permute.xlu0 %1110
      %1112 = vrot.lane.b32.xlu0 %v1075, 40
      %v1113 = vpop.permute.xlu0 %1112
      %1114 = vrot.lane.b32.xlu0 %v1076, 40
      %v1115 = vpop.permute.xlu0 %1114
      %1116 = vrot.lane.b32.xlu0 %v1077, 40
      %v1117 = vpop.permute.xlu0 %1116
      %1118 = vrot.lane.b32.xlu0 %v1078, 40
      %v1119 = vpop.permute.xlu0 %1118
      %1120 = vrot.lane.b32.xlu0 %v1079, 40
      %v1121 = vpop.permute.xlu0 %1120
      %1122 = vrot.lane.b32.xlu0 %v1080, 40
      %v1123 = vpop.permute.xlu0 %1122
      %1124 = vrot.lane.b32.xlu0 %v1081, 40
      %v1125 = vpop.permute.xlu0 %1124
      %1126 = vrot.lane.b32.xlu0 %v1082, 40
      %v1127 = vpop.permute.xlu0 %1126
      %1128 = vrot.lane.b32.xlu0 %v1083, 40
      %v1129 = vpop.permute.xlu0 %1128
      %1130 = vrot.lane.b32.xlu0 %v1084, 40
      %v1131 = vpop.permute.xlu0 %1130
      %1132 = vrot.lane.b32.xlu0 %v1085, 40
      %v1133 = vpop.permute.xlu0 %1132
      %vm1150 = vcmask 392512
      %1151 = vst.msk [vmem:[#allocation3] sm:$0xff] %vm1150, %v1103
      %1152 = vst.msk [vmem:[#allocation3 + $0x8] sm:$0xff] %vm1150, %v1105
      %1153 = vst.msk [vmem:[#allocation3 + $0x10] sm:$0xff] %vm1150, %v1107
      %1154 = vst.msk [vmem:[#allocation3 + $0x18] sm:$0xff] %vm1150, %v1109
      %1155 = vst.msk [vmem:[#allocation3 + $0x20] sm:$0xff] %vm1150, %v1111
      %1156 = vst.msk [vmem:[#allocation3 + $0x28] sm:$0xff] %vm1150, %v1113
      %1157 = vst.msk [vmem:[#allocation3 + $0x30] sm:$0xff] %vm1150, %v1115
      %1158 = vst.msk [vmem:[#allocation3 + $0x38] sm:$0xff] %vm1150, %v1117
      %1159 = vst.msk [vmem:[#allocation3 + $0x40] sm:$0xff] %vm1150, %v1119
      %1160 = vst.msk [vmem:[#allocation3 + $0x48] sm:$0xff] %vm1150, %v1121
      %1161 = vst.msk [vmem:[#allocation3 + $0x50] sm:$0xff] %vm1150, %v1123
      %1162 = vst.msk [vmem:[#allocation3 + $0x58] sm:$0xff] %vm1150, %v1125
      %1163 = vst.msk [vmem:[#allocation3 + $0x60] sm:$0xff] %vm1150, %v1127
      %1164 = vst.msk [vmem:[#allocation3 + $0x68] sm:$0xff] %vm1150, %v1129
      %1165 = vst.msk [vmem:[#allocation3 + $0x70] sm:$0xff] %vm1150, %v1131
      %1166 = vst.msk [vmem:[#allocation3 + $0x78] sm:$0xff] %vm1150, %v1133
      %s1167 = scalar_lea.vmem [#allocation2], 48
      %v1168 = vld [vmem:[%s1167] sm:$0xff]
      %v1169 = vld [vmem:[%s1167 + $0x8] sm:$0xff]
      %v1170 = vld [vmem:[%s1167 + $0x18] sm:$0xff]
      %v1171 = vld [vmem:[%s1167 + $0x20] sm:$0xff]
      %v1172 = vld [vmem:[%s1167 + $0x30] sm:$0xff]
      %v1173 = vld [vmem:[%s1167 + $0x38] sm:$0xff]
      %v1174 = vld [vmem:[%s1167 + $0x48] sm:$0xff]
      %v1175 = vld [vmem:[%s1167 + $0x50] sm:$0xff]
      %v1176 = vld [vmem:[%s1167 + $0x60] sm:$0xff]
      %v1177 = vld [vmem:[%s1167 + $0x68] sm:$0xff]
      %v1178 = vld [vmem:[%s1167 + $0x78] sm:$0xff]
      %v1179 = vld [vmem:[%s1167 + $0x80] sm:$0xff]
      %v1180 = vld [vmem:[%s1167 + $0x90] sm:$0xff]
      %v1181 = vld [vmem:[%s1167 + $0x98] sm:$0xff]
      %v1182 = vld [vmem:[%s1167 + $0xa8] sm:$0xff]
      %v1183 = vld [vmem:[%s1167 + $0xb0] sm:$0xff]
      %v1184 = vld [vmem:[%s1167 + $0xc0] sm:$0xff]
      %v1185 = vld [vmem:[%s1167 + $0xc8] sm:$0xff]
      %v1186 = vld [vmem:[%s1167 + $0xd8] sm:$0xff]
      %v1187 = vld [vmem:[%s1167 + $0xe0] sm:$0xff]
      %v1188 = vld [vmem:[%s1167 + $0xf0] sm:$0xff]
      %v1189 = vld [vmem:[%s1167 + $0xf8] sm:$0xff]
      %v1190 = vld [vmem:[%s1167 + $0x108] sm:$0xff]
      %v1191 = vld [vmem:[%s1167 + $0x110] sm:$0xff]
      %v1192 = vld [vmem:[%s1167 + $0x120] sm:$0xff]
      %v1193 = vld [vmem:[%s1167 + $0x128] sm:$0xff]
      %v1194 = vld [vmem:[%s1167 + $0x138] sm:$0xff]
      %v1195 = vld [vmem:[%s1167 + $0x140] sm:$0xff]
      %v1196 = vld [vmem:[%s1167 + $0x150] sm:$0xff]
      %v1197 = vld [vmem:[%s1167 + $0x158] sm:$0xff]
      %v1198 = vld [vmem:[%s1167 + $0x168] sm:$0xff]
      %v1199 = vld [vmem:[%s1167 + $0x170] sm:$0xff]
      %v1200 = vpack.c.bf16 %v1169, %v1168
      %v1201 = vpack.c.bf16 %v1171, %v1170
      %v1202 = vpack.c.bf16 %v1173, %v1172
      %v1203 = vpack.c.bf16 %v1175, %v1174
      %v1204 = vpack.c.bf16 %v1177, %v1176
      %v1205 = vpack.c.bf16 %v1179, %v1178
      %v1206 = vpack.c.bf16 %v1181, %v1180
      %v1207 = vpack.c.bf16 %v1183, %v1182
      %v1208 = vpack.c.bf16 %v1185, %v1184
      %v1209 = vpack.c.bf16 %v1187, %v1186
      %v1210 = vpack.c.bf16 %v1189, %v1188
      %v1211 = vpack.c.bf16 %v1191, %v1190
      %v1212 = vpack.c.bf16 %v1193, %v1192
      %v1213 = vpack.c.bf16 %v1195, %v1194
      %v1214 = vpack.c.bf16 %v1197, %v1196
      %v1215 = vpack.c.bf16 %v1199, %v1198
      %1232 = vrot.lane.b32.xlu0 %v1200, 48
      %v1233 = vpop.permute.xlu0 %1232
      %1234 = vrot.lane.b32.xlu0 %v1201, 48
      %v1235 = vpop.permute.xlu0 %1234
      %1236 = vrot.lane.b32.xlu0 %v1202, 48
      %v1237 = vpop.permute.xlu0 %1236
      %1238 = vrot.lane.b32.xlu0 %v1203, 48
      %v1239 = vpop.permute.xlu0 %1238
      %1240 = vrot.lane.b32.xlu0 %v1204, 48
      %v1241 = vpop.permute.xlu0 %1240
      %1242 = vrot.lane.b32.xlu0 %v1205, 48
      %v1243 = vpop.permute.xlu0 %1242
      %1244 = vrot.lane.b32.xlu0 %v1206, 48
      %v1245 = vpop.permute.xlu0 %1244
      %1246 = vrot.lane.b32.xlu0 %v1207, 48
      %v1247 = vpop.permute.xlu0 %1246
      %1248 = vrot.lane.b32.xlu0 %v1208, 48
      %v1249 = vpop.permute.xlu0 %1248
      %1250 = vrot.lane.b32.xlu0 %v1209, 48
      %v1251 = vpop.permute.xlu0 %1250
      %1252 = vrot.lane.b32.xlu0 %v1210, 48
      %v1253 = vpop.permute.xlu0 %1252
      %1254 = vrot.lane.b32.xlu0 %v1211, 48
      %v1255 = vpop.permute.xlu0 %1254
      %1256 = vrot.lane.b32.xlu0 %v1212, 48
      %v1257 = vpop.permute.xlu0 %1256
      %1258 = vrot.lane.b32.xlu0 %v1213, 48
      %v1259 = vpop.permute.xlu0 %1258
      %1260 = vrot.lane.b32.xlu0 %v1214, 48
      %v1261 = vpop.permute.xlu0 %1260
      %1262 = vrot.lane.b32.xlu0 %v1215, 48
      %v1263 = vpop.permute.xlu0 %1262
      %vm1280 = vcmask 458112
      %1281 = vst.msk [vmem:[#allocation3] sm:$0xff] %vm1280, %v1233
      %1282 = vst.msk [vmem:[#allocation3 + $0x8] sm:$0xff] %vm1280, %v1235
      %1283 = vst.msk [vmem:[#allocation3 + $0x10] sm:$0xff] %vm1280, %v1237
      %1284 = vst.msk [vmem:[#allocation3 + $0x18] sm:$0xff] %vm1280, %v1239
      %1285 = vst.msk [vmem:[#allocation3 + $0x20] sm:$0xff] %vm1280, %v1241
      %1286 = vst.msk [vmem:[#allocation3 + $0x28] sm:$0xff] %vm1280, %v1243
      %1287 = vst.msk [vmem:[#allocation3 + $0x30] sm:$0xff] %vm1280, %v1245
      %1288 = vst.msk [vmem:[#allocation3 + $0x38] sm:$0xff] %vm1280, %v1247
      %1289 = vst.msk [vmem:[#allocation3 + $0x40] sm:$0xff] %vm1280, %v1249
      %1290 = vst.msk [vmem:[#allocation3 + $0x48] sm:$0xff] %vm1280, %v1251
      %1291 = vst.msk [vmem:[#allocation3 + $0x50] sm:$0xff] %vm1280, %v1253
      %1292 = vst.msk [vmem:[#allocation3 + $0x58] sm:$0xff] %vm1280, %v1255
      %1293 = vst.msk [vmem:[#allocation3 + $0x60] sm:$0xff] %vm1280, %v1257
      %1294 = vst.msk [vmem:[#allocation3 + $0x68] sm:$0xff] %vm1280, %v1259
      %1295 = vst.msk [vmem:[#allocation3 + $0x70] sm:$0xff] %vm1280, %v1261
      %1296 = vst.msk [vmem:[#allocation3 + $0x78] sm:$0xff] %vm1280, %v1263
      %v1297 = vld [vmem:[%s1167 + $0x1] sm:$0xff]
      %v1298 = vld [vmem:[%s1167 + $0x9] sm:$0xff]
      %v1299 = vld [vmem:[%s1167 + $0x19] sm:$0xff]
      %v1300 = vld [vmem:[%s1167 + $0x21] sm:$0xff]
      %v1301 = vld [vmem:[%s1167 + $0x31] sm:$0xff]
      %v1302 = vld [vmem:[%s1167 + $0x39] sm:$0xff]
      %v1303 = vld [vmem:[%s1167 + $0x49] sm:$0xff]
      %v1304 = vld [vmem:[%s1167 + $0x51] sm:$0xff]
      %v1305 = vld [vmem:[%s1167 + $0x61] sm:$0xff]
      %v1306 = vld [vmem:[%s1167 + $0x69] sm:$0xff]
      %v1307 = vld [vmem:[%s1167 + $0x79] sm:$0xff]
      %v1308 = vld [vmem:[%s1167 + $0x81] sm:$0xff]
      %v1309 = vld [vmem:[%s1167 + $0x91] sm:$0xff]
      %v1310 = vld [vmem:[%s1167 + $0x99] sm:$0xff]
      %v1311 = vld [vmem:[%s1167 + $0xa9] sm:$0xff]
      %v1312 = vld [vmem:[%s1167 + $0xb1] sm:$0xff]
      %v1313 = vld [vmem:[%s1167 + $0xc1] sm:$0xff]
      %v1314 = vld [vmem:[%s1167 + $0xc9] sm:$0xff]
      %v1315 = vld [vmem:[%s1167 + $0xd9] sm:$0xff]
      %v1316 = vld [vmem:[%s1167 + $0xe1] sm:$0xff]
      %v1317 = vld [vmem:[%s1167 + $0xf1] sm:$0xff]
      %v1318 = vld [vmem:[%s1167 + $0xf9] sm:$0xff]
      %v1319 = vld [vmem:[%s1167 + $0x109] sm:$0xff]
      %v1320 = vld [vmem:[%s1167 + $0x111] sm:$0xff]
      %v1321 = vld [vmem:[%s1167 + $0x121] sm:$0xff]
      %v1322 = vld [vmem:[%s1167 + $0x129] sm:$0xff]
      %v1323 = vld [vmem:[%s1167 + $0x139] sm:$0xff]
      %v1324 = vld [vmem:[%s1167 + $0x141] sm:$0xff]
      %v1325 = vld [vmem:[%s1167 + $0x151] sm:$0xff]
      %v1326 = vld [vmem:[%s1167 + $0x159] sm:$0xff]
      %v1327 = vld [vmem:[%s1167 + $0x169] sm:$0xff]
      %v1328 = vld [vmem:[%s1167 + $0x171] sm:$0xff]
      %v1329 = vpack.c.bf16 %v1298, %v1297
      %v1330 = vpack.c.bf16 %v1300, %v1299
      %v1331 = vpack.c.bf16 %v1302, %v1301
      %v1332 = vpack.c.bf16 %v1304, %v1303
      %v1333 = vpack.c.bf16 %v1306, %v1305
      %v1334 = vpack.c.bf16 %v1308, %v1307
      %v1335 = vpack.c.bf16 %v1310, %v1309
      %v1336 = vpack.c.bf16 %v1312, %v1311
      %v1337 = vpack.c.bf16 %v1314, %v1313
      %v1338 = vpack.c.bf16 %v1316, %v1315
      %v1339 = vpack.c.bf16 %v1318, %v1317
      %v1340 = vpack.c.bf16 %v1320, %v1319
      %v1341 = vpack.c.bf16 %v1322, %v1321
      %v1342 = vpack.c.bf16 %v1324, %v1323
      %v1343 = vpack.c.bf16 %v1326, %v1325
      %v1344 = vpack.c.bf16 %v1328, %v1327
      %1361 = vrot.lane.b32.xlu0 %v1329, 56
      %v1362 = vpop.permute.xlu0 %1361
      %1363 = vrot.lane.b32.xlu0 %v1330, 56
      %v1364 = vpop.permute.xlu0 %1363
      %1365 = vrot.lane.b32.xlu0 %v1331, 56
      %v1366 = vpop.permute.xlu0 %1365
      %1367 = vrot.lane.b32.xlu0 %v1332, 56
      %v1368 = vpop.permute.xlu0 %1367
      %1369 = vrot.lane.b32.xlu0 %v1333, 56
      %v1370 = vpop.permute.xlu0 %1369
      %1371 = vrot.lane.b32.xlu0 %v1334, 56
      %v1372 = vpop.permute.xlu0 %1371
      %1373 = vrot.lane.b32.xlu0 %v1335, 56
      %v1374 = vpop.permute.xlu0 %1373
      %1375 = vrot.lane.b32.xlu0 %v1336, 56
      %v1376 = vpop.permute.xlu0 %1375
      %1377 = vrot.lane.b32.xlu0 %v1337, 56
      %v1378 = vpop.permute.xlu0 %1377
      %1379 = vrot.lane.b32.xlu0 %v1338, 56
      %v1380 = vpop.permute.xlu0 %1379
      %1381 = vrot.lane.b32.xlu0 %v1339, 56
      %v1382 = vpop.permute.xlu0 %1381
      %1383 = vrot.lane.b32.xlu0 %v1340, 56
      %v1384 = vpop.permute.xlu0 %1383
      %1385 = vrot.lane.b32.xlu0 %v1341, 56
      %v1386 = vpop.permute.xlu0 %1385
      %1387 = vrot.lane.b32.xlu0 %v1342, 56
      %v1388 = vpop.permute.xlu0 %1387
      %1389 = vrot.lane.b32.xlu0 %v1343, 56
      %v1390 = vpop.permute.xlu0 %1389
      %1391 = vrot.lane.b32.xlu0 %v1344, 56
      %v1392 = vpop.permute.xlu0 %1391
      %vm1409 = vcmask 523712
      %1410 = vst.msk [vmem:[#allocation3] sm:$0xff] %vm1409, %v1362
      %1411 = vst.msk [vmem:[#allocation3 + $0x8] sm:$0xff] %vm1409, %v1364
      %1412 = vst.msk [vmem:[#allocation3 + $0x10] sm:$0xff] %vm1409, %v1366
      %1413 = vst.msk [vmem:[#allocation3 + $0x18] sm:$0xff] %vm1409, %v1368
      %1414 = vst.msk [vmem:[#allocation3 + $0x20] sm:$0xff] %vm1409, %v1370
      %1415 = vst.msk [vmem:[#allocation3 + $0x28] sm:$0xff] %vm1409, %v1372
      %1416 = vst.msk [vmem:[#allocation3 + $0x30] sm:$0xff] %vm1409, %v1374
      %1417 = vst.msk [vmem:[#allocation3 + $0x38] sm:$0xff] %vm1409, %v1376
      %1418 = vst.msk [vmem:[#allocation3 + $0x40] sm:$0xff] %vm1409, %v1378
      %1419 = vst.msk [vmem:[#allocation3 + $0x48] sm:$0xff] %vm1409, %v1380
      %1420 = vst.msk [vmem:[#allocation3 + $0x50] sm:$0xff] %vm1409, %v1382
      %1421 = vst.msk [vmem:[#allocation3 + $0x58] sm:$0xff] %vm1409, %v1384
      %1422 = vst.msk [vmem:[#allocation3 + $0x60] sm:$0xff] %vm1409, %v1386
      %1423 = vst.msk [vmem:[#allocation3 + $0x68] sm:$0xff] %vm1409, %v1388
      %1424 = vst.msk [vmem:[#allocation3 + $0x70] sm:$0xff] %vm1409, %v1390
      %1425 = vst.msk [vmem:[#allocation3 + $0x78] sm:$0xff] %vm1409, %v1392
      %v1426 = vld [vmem:[%s1167 + $0x2] sm:$0xff]
      %v1427 = vld [vmem:[%s1167 + $0xa] sm:$0xff]
      %v1428 = vld [vmem:[%s1167 + $0x1a] sm:$0xff]
      %v1429 = vld [vmem:[%s1167 + $0x22] sm:$0xff]
      %v1430 = vld [vmem:[%s1167 + $0x32] sm:$0xff]
      %v1431 = vld [vmem:[%s1167 + $0x3a] sm:$0xff]
      %v1432 = vld [vmem:[%s1167 + $0x4a] sm:$0xff]
      %v1433 = vld [vmem:[%s1167 + $0x52] sm:$0xff]
      %v1434 = vld [vmem:[%s1167 + $0x62] sm:$0xff]
      %v1435 = vld [vmem:[%s1167 + $0x6a] sm:$0xff]
      %v1436 = vld [vmem:[%s1167 + $0x7a] sm:$0xff]
      %v1437 = vld [vmem:[%s1167 + $0x82] sm:$0xff]
      %v1438 = vld [vmem:[%s1167 + $0x92] sm:$0xff]
      %v1439 = vld [vmem:[%s1167 + $0x9a] sm:$0xff]
      %v1440 = vld [vmem:[%s1167 + $0xaa] sm:$0xff]
      %v1441 = vld [vmem:[%s1167 + $0xb2] sm:$0xff]
      %v1442 = vld [vmem:[%s1167 + $0xc2] sm:$0xff]
      %v1443 = vld [vmem:[%s1167 + $0xca] sm:$0xff]
      %v1444 = vld [vmem:[%s1167 + $0xda] sm:$0xff]
      %v1445 = vld [vmem:[%s1167 + $0xe2] sm:$0xff]
      %v1446 = vld [vmem:[%s1167 + $0xf2] sm:$0xff]
      %v1447 = vld [vmem:[%s1167 + $0xfa] sm:$0xff]
      %v1448 = vld [vmem:[%s1167 + $0x10a] sm:$0xff]
      %v1449 = vld [vmem:[%s1167 + $0x112] sm:$0xff]
      %v1450 = vld [vmem:[%s1167 + $0x122] sm:$0xff]
      %v1451 = vld [vmem:[%s1167 + $0x12a] sm:$0xff]
      %v1452 = vld [vmem:[%s1167 + $0x13a] sm:$0xff]
      %v1453 = vld [vmem:[%s1167 + $0x142] sm:$0xff]
      %v1454 = vld [vmem:[%s1167 + $0x152] sm:$0xff]
      %v1455 = vld [vmem:[%s1167 + $0x15a] sm:$0xff]
      %v1456 = vld [vmem:[%s1167 + $0x16a] sm:$0xff]
      %v1457 = vld [vmem:[%s1167 + $0x172] sm:$0xff]
      %v1458 = vpack.c.bf16 %v1427, %v1426
      %v1459 = vpack.c.bf16 %v1429, %v1428
      %v1460 = vpack.c.bf16 %v1431, %v1430
      %v1461 = vpack.c.bf16 %v1433, %v1432
      %v1462 = vpack.c.bf16 %v1435, %v1434
      %v1463 = vpack.c.bf16 %v1437, %v1436
      %v1464 = vpack.c.bf16 %v1439, %v1438
      %v1465 = vpack.c.bf16 %v1441, %v1440
      %v1466 = vpack.c.bf16 %v1443, %v1442
      %v1467 = vpack.c.bf16 %v1445, %v1444
      %v1468 = vpack.c.bf16 %v1447, %v1446
      %v1469 = vpack.c.bf16 %v1449, %v1448
      %v1470 = vpack.c.bf16 %v1451, %v1450
      %v1471 = vpack.c.bf16 %v1453, %v1452
      %v1472 = vpack.c.bf16 %v1455, %v1454
      %v1473 = vpack.c.bf16 %v1457, %v1456
      %1490 = vrot.lane.b32.xlu0 %v1458, 64
      %v1491 = vpop.permute.xlu0 %1490
      %1492 = vrot.lane.b32.xlu0 %v1459, 64
      %v1493 = vpop.permute.xlu0 %1492
      %1494 = vrot.lane.b32.xlu0 %v1460, 64
      %v1495 = vpop.permute.xlu0 %1494
      %1496 = vrot.lane.b32.xlu0 %v1461, 64
      %v1497 = vpop.permute.xlu0 %1496
      %1498 = vrot.lane.b32.xlu0 %v1462, 64
      %v1499 = vpop.permute.xlu0 %1498
      %1500 = vrot.lane.b32.xlu0 %v1463, 64
      %v1501 = vpop.permute.xlu0 %1500
      %1502 = vrot.lane.b32.xlu0 %v1464, 64
      %v1503 = vpop.permute.xlu0 %1502
      %1504 = vrot.lane.b32.xlu0 %v1465, 64
      %v1505 = vpop.permute.xlu0 %1504
      %1506 = vrot.lane.b32.xlu0 %v1466, 64
      %v1507 = vpop.permute.xlu0 %1506
      %1508 = vrot.lane.b32.xlu0 %v1467, 64
      %v1509 = vpop.permute.xlu0 %1508
      %1510 = vrot.lane.b32.xlu0 %v1468, 64
      %v1511 = vpop.permute.xlu0 %1510
      %1512 = vrot.lane.b32.xlu0 %v1469, 64
      %v1513 = vpop.permute.xlu0 %1512
      %1514 = vrot.lane.b32.xlu0 %v1470, 64
      %v1515 = vpop.permute.xlu0 %1514
      %1516 = vrot.lane.b32.xlu0 %v1471, 64
      %v1517 = vpop.permute.xlu0 %1516
      %1518 = vrot.lane.b32.xlu0 %v1472, 64
      %v1519 = vpop.permute.xlu0 %1518
      %1520 = vrot.lane.b32.xlu0 %v1473, 64
      %v1521 = vpop.permute.xlu0 %1520
      %vm1538 = vcmask 589312
      %1539 = vst.msk [vmem:[#allocation3] sm:$0xff] %vm1538, %v1491
      %1540 = vst.msk [vmem:[#allocation3 + $0x8] sm:$0xff] %vm1538, %v1493
      %1541 = vst.msk [vmem:[#allocation3 + $0x10] sm:$0xff] %vm1538, %v1495
      %1542 = vst.msk [vmem:[#allocation3 + $0x18] sm:$0xff] %vm1538, %v1497
      %1543 = vst.msk [vmem:[#allocation3 + $0x20] sm:$0xff] %vm1538, %v1499
      %1544 = vst.msk [vmem:[#allocation3 + $0x28] sm:$0xff] %vm1538, %v1501
      %1545 = vst.msk [vmem:[#allocation3 + $0x30] sm:$0xff] %vm1538, %v1503
      %1546 = vst.msk [vmem:[#allocation3 + $0x38] sm:$0xff] %vm1538, %v1505
      %1547 = vst.msk [vmem:[#allocation3 + $0x40] sm:$0xff] %vm1538, %v1507
      %1548 = vst.msk [vmem:[#allocation3 + $0x48] sm:$0xff] %vm1538, %v1509
      %1549 = vst.msk [vmem:[#allocation3 + $0x50] sm:$0xff] %vm1538, %v1511
      %1550 = vst.msk [vmem:[#allocation3 + $0x58] sm:$0xff] %vm1538, %v1513
      %1551 = vst.msk [vmem:[#allocation3 + $0x60] sm:$0xff] %vm1538, %v1515
      %1552 = vst.msk [vmem:[#allocation3 + $0x68] sm:$0xff] %vm1538, %v1517
      %1553 = vst.msk [vmem:[#allocation3 + $0x70] sm:$0xff] %vm1538, %v1519
      %1554 = vst.msk [vmem:[#allocation3 + $0x78] sm:$0xff] %vm1538, %v1521
      %v1555 = vld [vmem:[#allocation3] sm:$0xff]
      %v1556 = vld [vmem:[#allocation3 + $0x8] sm:$0xff]
      %v1557 = vld [vmem:[#allocation3 + $0x10] sm:$0xff]
      %v1558 = vld [vmem:[#allocation3 + $0x18] sm:$0xff]
      %v1559 = vld [vmem:[#allocation3 + $0x20] sm:$0xff]
      %v1560 = vld [vmem:[#allocation3 + $0x28] sm:$0xff]
      %v1561 = vld [vmem:[#allocation3 + $0x30] sm:$0xff]
      %v1562 = vld [vmem:[#allocation3 + $0x38] sm:$0xff]
      %v1563 = vld [vmem:[#allocation3 + $0x40] sm:$0xff]
      %v1564 = vld [vmem:[#allocation3 + $0x48] sm:$0xff]
      %v1565 = vld [vmem:[#allocation3 + $0x50] sm:$0xff]
      %v1566 = vld [vmem:[#allocation3 + $0x58] sm:$0xff]
      %v1567 = vld [vmem:[#allocation3 + $0x60] sm:$0xff]
      %v1568 = vld [vmem:[#allocation3 + $0x68] sm:$0xff]
      %v1569 = vld [vmem:[#allocation3 + $0x70] sm:$0xff]
      %v1570 = vld [vmem:[#allocation3 + $0x78] sm:$0xff]
      %v1571 = vld [vmem:[%s3] sm:$0xf]
      %v1572 = vld [vmem:[%s3 + $0x4] sm:$0xf]
      %v1573 = vld [vmem:[%s3 + $0x8] sm:$0xf]
      %v1574 = vld [vmem:[%s3 + $0xc] sm:$0xf]
      %v1575 = vld [vmem:[%s3 + $0x10] sm:$0xf]
      %v1576 = vld [vmem:[%s3 + $0x14] sm:$0xf]
      %v1577 = vld [vmem:[%s3 + $0x18] sm:$0xf]
      %v1578 = vld [vmem:[%s3 + $0x1c] sm:$0xf]
      %v1579 = vld [vmem:[%s3 + $0x20] sm:$0xf]
      %v1589 = vunpack.c.l.b16 %v1571
      %v1590 = vunpack.c.l.b16 %v1572
      %v1591 = vunpack.c.l.b16 %v1573
      %v1592 = vunpack.c.l.b16 %v1574
      %v1593 = vunpack.c.l.b16 %v1575
      %v1594 = vunpack.c.l.b16 %v1576
      %v1595 = vunpack.c.l.b16 %v1577
      %v1596 = vunpack.c.l.b16 %v1578
      %v1597 = vunpack.c.l.b16 %v1579
      %v1598 = vpack.c.b16 %v1590, %v1589
      %v1599 = vpack.c.b16 %v1592, %v1591
      %v1600 = vpack.c.b16 %v1594, %v1593
      %v1601 = vpack.c.b16 %v1596, %v1595
      %v1602 = vpack.c.b16 %v1597, %v1597
      %vm1607 = vcmask 588800
      %v1609 = vsel %vm1607, %v1555, 0
      %v1612 = vsel %vm1607, %v1556, 0
      %v1615 = vsel %vm1607, %v1557, 0
      %v1618 = vsel %vm1607, %v1558, 0
      %v1621 = vsel %vm1607, %v1559, 0
      %v1624 = vsel %vm1607, %v1560, 0
      %v1627 = vsel %vm1607, %v1561, 0
      %v1630 = vsel %vm1607, %v1562, 0
      %v1633 = vsel %vm1607, %v1563, 0
      %v1636 = vsel %vm1607, %v1564, 0
      %v1639 = vsel %vm1607, %v1565, 0
      %v1642 = vsel %vm1607, %v1566, 0
      %v1645 = vsel %vm1607, %v1567, 0
      %v1648 = vsel %vm1607, %v1568, 0
      %v1651 = vsel %vm1607, %v1569, 0
      %v1654 = vsel %vm1607, %v1570, 0
      %vm1656 = vcmask 1043456
      %v1658 = vsel %vm1656, %v1602, 0
      %1660 = vmatprep.subr.bf16.mxu0 0
      %1661 = vmatpush1.bf16.msra.mxu0 %v1598
      %1662 = vmatprep.subr.bf16.mxu0 0
      %1663 = vmatpush1.bf16.msra.mxu0 %v1599
      %1664 = vmatprep.subr.bf16.mxu0 0
      %1665 = vmatpush1.bf16.msra.mxu0 %v1600
      %1666 = vmatprep.subr.bf16.mxu0 0
      %1667 = vmatpush1.bf16.msra.mxu0 %v1601
      %1668 = vmatprep.subr.bf16.mxu0 0
      %1669 = vmatpush1.bf16.msra.mxu0 %v1658
      %1670 = vmatprep.subr.bf16.mxu0 0
      %1671 = vmatpush1.bf16.msra.mxu0 0
      %1672 = vmatprep.subr.bf16.mxu0 0
      %1673 = vmatpush1.bf16.msra.mxu0 0
      %1674 = vmatprep.subr.bf16.mxu0 0
      %1675 = vmatpush1.bf16.msra.mxu0 0
      %1676 = vmatprep.subr.bf16.mxu0 0
      %1677 = vmatpush1.bf16.msra.mxu0 0
      %1678 = vmatprep.subr.bf16.mxu0 0
      %1679 = vmatpush1.bf16.msra.mxu0 0
      %1680 = vmatprep.subr.bf16.mxu0 0
      %1681 = vmatpush1.bf16.msra.mxu0 0
      %1682 = vmatprep.subr.bf16.mxu0 0
      %1683 = vmatpush1.bf16.msra.mxu0 0
      %1684 = vmatprep.subr.bf16.mxu0 0
      %1685 = vmatpush1.bf16.msra.mxu0 0
      %1686 = vmatprep.subr.bf16.mxu0 0
      %1687 = vmatpush1.bf16.msra.mxu0 0
      %1688 = vmatprep.subr.bf16.mxu0 0
      %1689 = vmatpush1.bf16.msra.mxu0 0
      %1690 = vmatprep.subr.bf16.mxu0 0
      %1691 = vmatpush1.bf16.msra.mxu0 0
      %1692 = vmatprep.mubr.bf16.mxu0 0
      %1693 = vmatmul.mubr.bf16.gmra.mrb[0].mxu0 %v1609
      %v1694 = vpop.f32.mrb[0].mxu0
      %v1695 = vadd.f32 0.0, %v1694
      %v1696 = vpop.f32.mrb[0].mxu0
      %v1697 = vpop.f32.mrb[0].mxu0
      %v1698 = vadd.f32 0.0, %v1697
      %v1699 = vpop.f32.mrb[0].mxu0
      %1700 = vmatprep.mubr.bf16.mxu0 0
      %1701 = vmatmul.mubr.bf16.gmra.mrb[0].mxu0 %v1612
      %v1702 = vpop.f32.mrb[0].mxu0
      %v1703 = vadd.f32 0.0, %v1702
      %v1704 = vpop.f32.mrb[0].mxu0
      %v1705 = vpop.f32.mrb[0].mxu0
      %v1706 = vadd.f32 0.0, %v1705
      %v1707 = vpop.f32.mrb[0].mxu0
      %1708 = vmatprep.mubr.bf16.mxu0 0
      %1709 = vmatmul.mubr.bf16.gmra.mrb[0].mxu0 %v1615
      %v1710 = vpop.f32.mrb[0].mxu0
      %v1711 = vadd.f32 0.0, %v1710
      %v1712 = vpop.f32.mrb[0].mxu0
      %v1713 = vpop.f32.mrb[0].mxu0
      %v1714 = vadd.f32 0.0, %v1713
      %v1715 = vpop.f32.mrb[0].mxu0
      %1716 = vmatprep.mubr.bf16.mxu0 0
      %1717 = vmatmul.mubr.bf16.gmra.mrb[0].mxu0 %v1618
      %v1718 = vpop.f32.mrb[0].mxu0
      %v1719 = vadd.f32 0.0, %v1718
      %v1720 = vpop.f32.mrb[0].mxu0
      %v1721 = vpop.f32.mrb[0].mxu0
      %v1722 = vadd.f32 0.0, %v1721
      %v1723 = vpop.f32.mrb[0].mxu0
      %1724 = vmatprep.mubr.bf16.mxu0 0
      %1725 = vmatmul.mubr.bf16.gmra.mrb[0].mxu0 %v1621
      %v1726 = vpop.f32.mrb[0].mxu0
      %v1727 = vadd.f32 0.0, %v1726
      %v1728 = vpop.f32.mrb[0].mxu0
      %v1729 = vpop.f32.mrb[0].mxu0
      %v1730 = vadd.f32 0.0, %v1729
      %v1731 = vpop.f32.mrb[0].mxu0
      %1732 = vmatprep.mubr.bf16.mxu0 0
      %1733 = vmatmul.mubr.bf16.gmra.mrb[0].mxu0 %v1624
      %v1734 = vpop.f32.mrb[0].mxu0
      %v1735 = vadd.f32 0.0, %v1734
      %v1736 = vpop.f32.mrb[0].mxu0
      %v1737 = vpop.f32.mrb[0].mxu0
      %v1738 = vadd.f32 0.0, %v1737
      %v1739 = vpop.f32.mrb[0].mxu0
      %1740 = vmatprep.mubr.bf16.mxu0 0
      %1741 = vmatmul.mubr.bf16.gmra.mrb[0].mxu0 %v1627
      %v1742 = vpop.f32.mrb[0].mxu0
      %v1743 = vadd.f32 0.0, %v1742
      %v1744 = vpop.f32.mrb[0].mxu0
      %v1745 = vpop.f32.mrb[0].mxu0
      %v1746 = vadd.f32 0.0, %v1745
      %v1747 = vpop.f32.mrb[0].mxu0
      %1748 = vmatprep.mubr.bf16.mxu0 0
      %1749 = vmatmul.mubr.bf16.gmra.mrb[0].mxu0 %v1630
      %v1750 = vpop.f32.mrb[0].mxu0
      %v1751 = vadd.f32 0.0, %v1750
      %v1752 = vpop.f32.mrb[0].mxu0
      %v1753 = vpop.f32.mrb[0].mxu0
      %v1754 = vadd.f32 0.0, %v1753
      %v1755 = vpop.f32.mrb[0].mxu0
      %1756 = vmatprep.mubr.bf16.mxu0 0
      %1757 = vmatmul.mubr.bf16.gmra.mrb[0].mxu0 %v1633
      %v1758 = vpop.f32.mrb[0].mxu0
      %v1759 = vadd.f32 0.0, %v1758
      %v1760 = vpop.f32.mrb[0].mxu0
      %v1761 = vpop.f32.mrb[0].mxu0
      %v1762 = vadd.f32 0.0, %v1761
      %v1763 = vpop.f32.mrb[0].mxu0
      %1764 = vmatprep.mubr.bf16.mxu0 0
      %1765 = vmatmul.mubr.bf16.gmra.mrb[0].mxu0 %v1636
      %v1766 = vpop.f32.mrb[0].mxu0
      %v1767 = vadd.f32 0.0, %v1766
      %v1768 = vpop.f32.mrb[0].mxu0
      %v1769 = vpop.f32.mrb[0].mxu0
      %v1770 = vadd.f32 0.0, %v1769
      %v1771 = vpop.f32.mrb[0].mxu0
      %1772 = vmatprep.mubr.bf16.mxu0 0
      %1773 = vmatmul.mubr.bf16.gmra.mrb[0].mxu0 %v1639
      %v1774 = vpop.f32.mrb[0].mxu0
      %v1775 = vadd.f32 0.0, %v1774
      %v1776 = vpop.f32.mrb[0].mxu0
      %v1777 = vpop.f32.mrb[0].mxu0
      %v1778 = vadd.f32 0.0, %v1777
      %v1779 = vpop.f32.mrb[0].mxu0
      %1780 = vmatprep.mubr.bf16.mxu0 0
      %1781 = vmatmul.mubr.bf16.gmra.mrb[0].mxu0 %v1642
      %v1782 = vpop.f32.mrb[0].mxu0
      %v1783 = vadd.f32 0.0, %v1782
      %v1784 = vpop.f32.mrb[0].mxu0
      %v1785 = vpop.f32.mrb[0].mxu0
      %v1786 = vadd.f32 0.0, %v1785
      %v1787 = vpop.f32.mrb[0].mxu0
      %1788 = vmatprep.mubr.bf16.mxu0 0
      %1789 = vmatmul.mubr.bf16.gmra.mrb[0].mxu0 %v1645
      %v1790 = vpop.f32.mrb[0].mxu0
      %v1791 = vadd.f32 0.0, %v1790
      %v1792 = vpop.f32.mrb[0].mxu0
      %v1793 = vpop.f32.mrb[0].mxu0
      %v1794 = vadd.f32 0.0, %v1793
      %v1795 = vpop.f32.mrb[0].mxu0
      %1796 = vmatprep.mubr.bf16.mxu0 0
      %1797 = vmatmul.mubr.bf16.gmra.mrb[0].mxu0 %v1648
      %v1798 = vpop.f32.mrb[0].mxu0
      %v1799 = vadd.f32 0.0, %v1798
      %v1800 = vpop.f32.mrb[0].mxu0
      %v1801 = vpop.f32.mrb[0].mxu0
      %v1802 = vadd.f32 0.0, %v1801
      %v1803 = vpop.f32.mrb[0].mxu0
      %1804 = vmatprep.mubr.bf16.mxu0 0
      %1805 = vmatmul.mubr.bf16.gmra.mrb[0].mxu0 %v1651
      %v1806 = vpop.f32.mrb[0].mxu0
      %v1807 = vadd.f32 0.0, %v1806
      %v1808 = vpop.f32.mrb[0].mxu0
      %v1809 = vpop.f32.mrb[0].mxu0
      %v1810 = vadd.f32 0.0, %v1809
      %v1811 = vpop.f32.mrb[0].mxu0
      %1812 = vmatprep.mubr.bf16.mxu0 0
      %1813 = vmatmul.mubr.bf16.gmra.mrb[0].mxu0 %v1654
      %v1814 = vpop.f32.mrb[0].mxu0
      %v1815 = vadd.f32 0.0, %v1814
      %v1816 = vpop.f32.mrb[0].mxu0
      %v1817 = vpop.f32.mrb[0].mxu0
      %v1818 = vadd.f32 0.0, %v1817
      %v1819 = vpop.f32.mrb[0].mxu0
      %1820 = vdwg.mxu0
      %1821 = vst.msk [vmem:[%s231] sm:$0xff] %vm379, %v1695
      %1822 = vst.msk [vmem:[%s231 + $0x8] sm:$0xff] %vm379, %v1698
      %1823 = vst.msk [vmem:[%s231 + $0x10] sm:$0xff] %vm379, %v1703
      %1824 = vst.msk [vmem:[%s231 + $0x18] sm:$0xff] %vm379, %v1706
      %1825 = vst.msk [vmem:[%s231 + $0x20] sm:$0xff] %vm379, %v1711
      %1826 = vst.msk [vmem:[%s231 + $0x28] sm:$0xff] %vm379, %v1714
      %1827 = vst.msk [vmem:[%s231 + $0x30] sm:$0xff] %vm379, %v1719
      %1828 = vst.msk [vmem:[%s231 + $0x38] sm:$0xff] %vm379, %v1722
      %1829 = vst.msk [vmem:[%s231 + $0x40] sm:$0xff] %vm379, %v1727
      %1830 = vst.msk [vmem:[%s231 + $0x48] sm:$0xff] %vm379, %v1730
      %1831 = vst.msk [vmem:[%s231 + $0x50] sm:$0xff] %vm379, %v1735
      %1832 = vst.msk [vmem:[%s231 + $0x58] sm:$0xff] %vm379, %v1738
      %1833 = vst.msk [vmem:[%s231 + $0x60] sm:$0xff] %vm379, %v1743
      %1834 = vst.msk [vmem:[%s231 + $0x68] sm:$0xff] %vm379, %v1746
      %1835 = vst.msk [vmem:[%s231 + $0x70] sm:$0xff] %vm379, %v1751
      %1836 = vst.msk [vmem:[%s231 + $0x78] sm:$0xff] %vm379, %v1754
      %1837 = vst.msk [vmem:[%s231 + $0x80] sm:$0xff] %vm379, %v1759
      %1838 = vst.msk [vmem:[%s231 + $0x88] sm:$0xff] %vm379, %v1762
      %1839 = vst.msk [vmem:[%s231 + $0x90] sm:$0xff] %vm379, %v1767
      %1840 = vst.msk [vmem:[%s231 + $0x98] sm:$0xff] %vm379, %v1770
      %1841 = vst.msk [vmem:[%s231 + $0xa0] sm:$0xff] %vm379, %v1775
      %1842 = vst.msk [vmem:[%s231 + $0xa8] sm:$0xff] %vm379, %v1778
      %1843 = vst.msk [vmem:[%s231 + $0xb0] sm:$0xff] %vm379, %v1783
      %1844 = vst.msk [vmem:[%s231 + $0xb8] sm:$0xff] %vm379, %v1786
      %1845 = vst.msk [vmem:[%s231 + $0xc0] sm:$0xff] %vm379, %v1791
      %1846 = vst.msk [vmem:[%s231 + $0xc8] sm:$0xff] %vm379, %v1794
      %1847 = vst.msk [vmem:[%s231 + $0xd0] sm:$0xff] %vm379, %v1799
      %1848 = vst.msk [vmem:[%s231 + $0xd8] sm:$0xff] %vm379, %v1802
      %1849 = vst.msk [vmem:[%s231 + $0xe0] sm:$0xff] %vm379, %v1807
      %1850 = vst.msk [vmem:[%s231 + $0xe8] sm:$0xff] %vm379, %v1810
      %1851 = vst.msk [vmem:[%s231 + $0xf0] sm:$0xff] %vm379, %v1815
      %1852 = vst.msk [vmem:[%s231 + $0xf8] sm:$0xff] %vm379, %v1818
      %v1853 = vsel %vm379, %v1695, 0.0
      %v1854 = vsel %vm379, %v1698, 0.0
      %v1855 = vadd.f32 %v1853, %v1854
      %v1856 = vsel %vm379, %v1703, 0.0
      %v1857 = vadd.f32 %v1855, %v1856
      %v1858 = vsel %vm379, %v1706, 0.0
      %v1859 = vadd.f32 %v1857, %v1858
      %v1860 = vsel %vm379, %v1711, 0.0
      %v1861 = vadd.f32 %v1859, %v1860
      %v1862 = vsel %vm379, %v1714, 0.0
      %v1863 = vadd.f32 %v1861, %v1862
      %v1864 = vsel %vm379, %v1719, 0.0
      %v1865 = vadd.f32 %v1863, %v1864
      %v1866 = vsel %vm379, %v1722, 0.0
      %v1867 = vadd.f32 %v1865, %v1866
      %v1868 = vsel %vm379, %v1727, 0.0
      %v1869 = vadd.f32 %v1867, %v1868
      %v1870 = vsel %vm379, %v1730, 0.0
      %v1871 = vadd.f32 %v1869, %v1870
      %v1872 = vsel %vm379, %v1735, 0.0
      %v1873 = vadd.f32 %v1871, %v1872
      %v1874 = vsel %vm379, %v1738, 0.0
      %v1875 = vadd.f32 %v1873, %v1874
      %v1876 = vsel %vm379, %v1743, 0.0
      %v1877 = vadd.f32 %v1875, %v1876
      %v1878 = vsel %vm379, %v1746, 0.0
      %v1879 = vadd.f32 %v1877, %v1878
      %v1880 = vsel %vm379, %v1751, 0.0
      %v1881 = vadd.f32 %v1879, %v1880
      %v1882 = vsel %vm379, %v1754, 0.0
      %v1883 = vadd.f32 %v1881, %v1882
      %v1884 = vsel %vm379, %v1759, 0.0
      %v1885 = vadd.f32 %v1883, %v1884
      %v1886 = vsel %vm379, %v1762, 0.0
      %v1887 = vadd.f32 %v1885, %v1886
      %v1888 = vsel %vm379, %v1767, 0.0
      %v1889 = vadd.f32 %v1887, %v1888
      %v1890 = vsel %vm379, %v1770, 0.0
      %v1891 = vadd.f32 %v1889, %v1890
      %v1892 = vsel %vm379, %v1775, 0.0
      %v1893 = vadd.f32 %v1891, %v1892
      %v1894 = vsel %vm379, %v1778, 0.0
      %v1895 = vadd.f32 %v1893, %v1894
      %v1896 = vsel %vm379, %v1783, 0.0
      %v1897 = vadd.f32 %v1895, %v1896
      %v1898 = vsel %vm379, %v1786, 0.0
      %v1899 = vadd.f32 %v1897, %v1898
      %v1900 = vsel %vm379, %v1791, 0.0
      %v1901 = vadd.f32 %v1899, %v1900
      %v1902 = vsel %vm379, %v1794, 0.0
      %v1903 = vadd.f32 %v1901, %v1902
      %v1904 = vsel %vm379, %v1799, 0.0
      %v1905 = vadd.f32 %v1903, %v1904
      %v1906 = vsel %vm379, %v1802, 0.0
      %v1907 = vadd.f32 %v1905, %v1906
      %v1908 = vsel %vm379, %v1807, 0.0
      %v1909 = vadd.f32 %v1907, %v1908
      %v1910 = vsel %vm379, %v1810, 0.0
      %v1911 = vadd.f32 %v1909, %v1910
      %v1912 = vsel %vm379, %v1815, 0.0
      %v1913 = vadd.f32 %v1911, %v1912
      %v1914 = vsel %vm379, %v1818, 0.0
      %v1915 = vadd.f32 %v1913, %v1914
      %v1916 = vrot.slane %v1915, 4
      %v1917 = vadd.f32 %v1915, %v1916
      %v1918 = vrot.slane %v1917, 2
      %v1919 = vadd.f32 %v1917, %v1918
      %v1920 = vrot.slane %v1919, 1
      %v1921 = vadd.f32 %v1919, %v1920
      %v1922 = vmul.f32 %v1695, %v1695
      %v1923 = vmul.f32 %v1698, %v1698
      %v1924 = vmul.f32 %v1703, %v1703
      %v1925 = vmul.f32 %v1706, %v1706
      %v1926 = vmul.f32 %v1711, %v1711
      %v1927 = vmul.f32 %v1714, %v1714
      %v1928 = vmul.f32 %v1719, %v1719
      %v1929 = vmul.f32 %v1722, %v1722
      %v1930 = vmul.f32 %v1727, %v1727
      %v1931 = vmul.f32 %v1730, %v1730
      %v1932 = vmul.f32 %v1735, %v1735
      %v1933 = vmul.f32 %v1738, %v1738
      %v1934 = vmul.f32 %v1743, %v1743
      %v1935 = vmul.f32 %v1746, %v1746
      %v1936 = vmul.f32 %v1751, %v1751
      %v1937 = vmul.f32 %v1754, %v1754
      %v1938 = vmul.f32 %v1759, %v1759
      %v1939 = vmul.f32 %v1762, %v1762
      %v1940 = vmul.f32 %v1767, %v1767
      %v1941 = vmul.f32 %v1770, %v1770
      %v1942 = vmul.f32 %v1775, %v1775
      %v1943 = vmul.f32 %v1778, %v1778
      %v1944 = vmul.f32 %v1783, %v1783
      %v1945 = vmul.f32 %v1786, %v1786
      %v1946 = vmul.f32 %v1791, %v1791
      %v1947 = vmul.f32 %v1794, %v1794
      %v1948 = vmul.f32 %v1799, %v1799
      %v1949 = vmul.f32 %v1802, %v1802
      %v1950 = vmul.f32 %v1807, %v1807
      %v1951 = vmul.f32 %v1810, %v1810
      %v1952 = vmul.f32 %v1815, %v1815
      %v1953 = vmul.f32 %v1818, %v1818
      %v1954 = vsel %vm379, %v1922, 0.0
      %v1955 = vsel %vm379, %v1923, 0.0
      %v1956 = vadd.f32 %v1954, %v1955
      %v1957 = vsel %vm379, %v1924, 0.0
      %v1958 = vadd.f32 %v1956, %v1957
      %v1959 = vsel %vm379, %v1925, 0.0
      %v1960 = vadd.f32 %v1958, %v1959
      %v1961 = vsel %vm379, %v1926, 0.0
      %v1962 = vadd.f32 %v1960, %v1961
      %v1963 = vsel %vm379, %v1927, 0.0
      %v1964 = vadd.f32 %v1962, %v1963
      %v1965 = vsel %vm379, %v1928, 0.0
      %v1966 = vadd.f32 %v1964, %v1965
      %v1967 = vsel %vm379, %v1929, 0.0
      %v1968 = vadd.f32 %v1966, %v1967
      %v1969 = vsel %vm379, %v1930, 0.0
      %v1970 = vadd.f32 %v1968, %v1969
      %v1971 = vsel %vm379, %v1931, 0.0
      %v1972 = vadd.f32 %v1970, %v1971
      %v1973 = vsel %vm379, %v1932, 0.0
      %v1974 = vadd.f32 %v1972, %v1973
      %v1975 = vsel %vm379, %v1933, 0.0
      %v1976 = vadd.f32 %v1974, %v1975
      %v1977 = vsel %vm379, %v1934, 0.0
      %v1978 = vadd.f32 %v1976, %v1977
      %v1979 = vsel %vm379, %v1935, 0.0
      %v1980 = vadd.f32 %v1978, %v1979
      %v1981 = vsel %vm379, %v1936, 0.0
      %v1982 = vadd.f32 %v1980, %v1981
      %v1983 = vsel %vm379, %v1937, 0.0
      %v1984 = vadd.f32 %v1982, %v1983
      %v1985 = vsel %vm379, %v1938, 0.0
      %v1986 = vadd.f32 %v1984, %v1985
      %v1987 = vsel %vm379, %v1939, 0.0
      %v1988 = vadd.f32 %v1986, %v1987
      %v1989 = vsel %vm379, %v1940, 0.0
      %v1990 = vadd.f32 %v1988, %v1989
      %v1991 = vsel %vm379, %v1941, 0.0
      %v1992 = vadd.f32 %v1990, %v1991
      %v1993 = vsel %vm379, %v1942, 0.0
      %v1994 = vadd.f32 %v1992, %v1993
      %v1995 = vsel %vm379, %v1943, 0.0
      %v1996 = vadd.f32 %v1994, %v1995
      %v1997 = vsel %vm379, %v1944, 0.0
      %v1998 = vadd.f32 %v1996, %v1997
      %v1999 = vsel %vm379, %v1945, 0.0
      %v2000 = vadd.f32 %v1998, %v1999
      %v2001 = vsel %vm379, %v1946, 0.0
      %v2002 = vadd.f32 %v2000, %v2001
      %v2003 = vsel %vm379, %v1947, 0.0
      %v2004 = vadd.f32 %v2002, %v2003
      %v2005 = vsel %vm379, %v1948, 0.0
      %v2006 = vadd.f32 %v2004, %v2005
      %v2007 = vsel %vm379, %v1949, 0.0
      %v2008 = vadd.f32 %v2006, %v2007
      %v2009 = vsel %vm379, %v1950, 0.0
      %v2010 = vadd.f32 %v2008, %v2009
      %v2011 = vsel %vm379, %v1951, 0.0
      %v2012 = vadd.f32 %v2010, %v2011
      %v2013 = vsel %vm379, %v1952, 0.0
      %v2014 = vadd.f32 %v2012, %v2013
      %v2015 = vsel %vm379, %v1953, 0.0
      %v2016 = vadd.f32 %v2014, %v2015
      %v2017 = vrot.slane %v2016, 4
      %v2018 = vadd.f32 %v2016, %v2017
      %v2019 = vrot.slane %v2018, 2
      %v2020 = vadd.f32 %v2018, %v2019
      %v2021 = vrot.slane %v2020, 1
      %v2022 = vadd.f32 %v2020, %v2021
      %vm2023 = vcmask 1040384
      %v2024 = vsel %vm2023, %v1921, %v2022
      %2025 = vst.msk [vmem:[%s235] sm:$0x3] %vm382, %v2024
      %p2026 = scmp.lt.s32.totalorder %s17, 1
      %s2027 = scalar_select %p2026, %s17, 1
      %s2028 = smul.addr %s2027, 32
      %s2029 = smul.addr %s2028, 8
      %s2030 = scalar_lea.vmem %s4, %s2029
      %p2031 = scmp.lt.s32.totalorder %s17, 1
      %s2032 = scalar_select %p2031, %s17, 1
      %s2033 = smul.addr %s2032, 2
      %s2034 = scalar_lea.vmem %s5, %s2033
      // Predicated region
      $region37: #{basic_block.4} parent=35 // pred_check
        %p2035 = pneg %p124
      $region38: #{basic_block.4} parent=35 // pred_check_branch
        %2037 = sbr.rel (%p2035) target = $region40
      $region39: #{basic_block.4} parent=35 // pred_region
        _
      $region40: #{basic_block.4} parent=35 // pred_fallthru
        _
      // Predicated region
      $region41: #{basic_block.4} parent=35 // pred_check
        %p2038 = pneg %p150
      $region42: #{basic_block.4} parent=35 // pred_check_branch
        %2040 = sbr.rel (%p2038) target = $region44
      $region43: #{basic_block.4} parent=35 // pred_region
        _
      $region44: #{basic_block.4} parent=35 // pred_fallthru
        _
    $region36: #{basic_block.4} parent=5 // pred_fallthru
      _
    %p2041 = scmp.le.s32.totalorder 2, %s12
    // Predicated region
    $region45: #{basic_block.4} parent=5 // pred_check
      %p2042 = pneg %p2041
    $region46: #{basic_block.4} parent=5 // pred_check_branch
      %2044 = sbr.rel (%p2042) target = $region48
    $region47: #{basic_block.4} parent=5 // pred_region
      %s2045 = ssub.s32 %s12, 2
      // Predicated region
      $region49: #{basic_block.4} parent=47 // pred_check
        %p2046 = pneg %p130
      $region50: #{basic_block.4} parent=47 // pred_check_branch
        %2048 = sbr.rel (%p2046) target = $region52
      $region51: #{basic_block.4} parent=47 // pred_region
        %p2049 = scmp.lt.s32.totalorder %s18, 1
        %s2050 = scalar_select %p2049, %s18, 1
        %s2051 = smul.addr %s2050, 32
        %s2052 = smul.addr %s2051, 8
        %s2053 = scalar_lea.vmem %s4, %s2052
      $region52: #{basic_block.4} parent=47 // pred_fallthru
        _
      // Predicated region
      $region53: #{basic_block.4} parent=47 // pred_check
        %p2054 = pneg %p156
      $region54: #{basic_block.4} parent=47 // pred_check_branch
        %2056 = sbr.rel (%p2054) target = $region56
      $region55: #{basic_block.4} parent=47 // pred_region
        %p2057 = scmp.lt.s32.totalorder %s18, 1
        %s2058 = scalar_select %p2057, %s18, 1
        %s2059 = smul.addr %s2058, 2
        %s2060 = scalar_lea.vmem %s5, %s2059
      $region56: #{basic_block.4} parent=47 // pred_fallthru
        _
    $region48: #{basic_block.4} parent=5 // pred_fallthru
      _
  $region6: #{basic_block.4} parent=0 // loop_footer
    %s16 = sadd.s32 1, %s12
  $region7: #{basic_block.4} parent=0 // loop_footer_branch
    %11 = sbr.rel target = $region3
  $region8: #{basic_block.4} parent=0 // loop_exit
    _

</llo_original>
